<compile_context>
chip_gen: v6e
topology: v6e:2x2x1
jax: 0.10.0
libtpu: 0.0.40
codegen_flags: <defaults>
</compile_context>

<pallas_src>
import functools

import jax
import jax.numpy as jnp
from jax.experimental import pallas as pl
from jax.experimental.pallas import tpu as pltpu


def _rup(x, m):
    return ((x + m - 1) // m) * m


def _cdiv(a, b):
    return -(-a // b)


# ----------------------------------------------------------------------------
# Pallas kernel: matmul + bias (+ optional ReLU).
#   A (tm, K) bf16 @ B (K, N) bf16 -> f32 accumulation, + bias (1|tm, N) f32,
#   store in o_ref.dtype (f32 or bf16).  K and N are full-extent (no K-grid).
# ----------------------------------------------------------------------------
def _mm_bias_kernel(a_ref, b_ref, bias_ref, o_ref, *, relu):
    acc = jnp.dot(a_ref[...], b_ref[...], preferred_element_type=jnp.float32)
    acc = acc + bias_ref[...]
    if relu:
        acc = jnp.maximum(acc, 0.0)
    o_ref[...] = acc.astype(o_ref.dtype)


def matmul_bias(a, b, bias, *, relu=False, out_dtype=jnp.float32,
                row_block=None, tile_m=512):
    """a: (M, K), b: (K, N), bias: (1 or row_block, N) f32 -> (M, N).

    row_block: if given (and valid), tile M in blocks of exactly row_block rows
    (used so one grid step == one image, and per-pixel bias maps line up).
    Otherwise use balanced tiles: nt = cdiv(M, tile_m), tm = rup(M/nt, 8).
    """
    M, K = a.shape
    K2, N = b.shape
    assert K == K2
    a = a.astype(jnp.bfloat16)
    b = b.astype(jnp.bfloat16)
    bias = bias.astype(jnp.float32)

    if row_block is not None and row_block % 8 == 0 and M % row_block == 0:
        tm, Mp = row_block, M
    else:
        nt = max(1, _cdiv(M, tile_m))
        tm = _rup(_cdiv(M, nt), 8)
        Mp = nt * tm
    if Mp != M:
        a = jnp.pad(a, ((0, Mp - M), (0, 0)))

    br = bias.shape[0]
    assert br in (1, tm), f"bias rows {br} must be 1 or tile rows {tm}"

    out = pl.pallas_call(
        functools.partial(_mm_bias_kernel, relu=relu),
        grid=(Mp // tm,),
        in_specs=[
            pl.BlockSpec((tm, K), lambda i: (i, 0)),   # A: row-tiled
            pl.BlockSpec((K, N), lambda i: (0, 0)),    # B: resident, full extent
            pl.BlockSpec((br, N), lambda i: (0, 0)),   # bias: resident
        ],
        out_specs=pl.BlockSpec((tm, N), lambda i: (i, 0)),
        out_shape=jax.ShapeDtypeStruct((Mp, N), out_dtype),
        compiler_params=pltpu.CompilerParams(
            dimension_semantics=("parallel",)),
    )(a, b, bias)
    return out[:M] if Mp != M else out


# ----------------------------------------------------------------------------
# XLA glue: im2col (bf16), max-pool 2x2/s2, avg-pool 3x3/s1/p1 (count_include_pad).
# (Per perf review: pools/im2col are cheaper as XLA glue than as extra
#  pallas_calls at this scale.)
# ----------------------------------------------------------------------------
def _im2col_nhwc(x, k, pad):
    N, H, W, C = x.shape
    xb = x.astype(jnp.bfloat16)
    if pad:
        xb = jnp.pad(xb, ((0, 0), (pad, pad), (pad, pad), (0, 0)))
    Ho = H + 2 * pad - k + 1
    Wo = W + 2 * pad - k + 1
    patches = [xb[:, i:i + Ho, j:j + Wo, :] for i in range(k) for j in range(k)]
    cols = jnp.concatenate(patches, axis=-1)           # (N, Ho, Wo, k*k*C)
    return cols.reshape(N * Ho * Wo, k * k * C), Ho, Wo


def max_pool2x2(x):
    return jnp.maximum(
        jnp.maximum(x[:, 0::2, 0::2, :], x[:, 0::2, 1::2, :]),
        jnp.maximum(x[:, 1::2, 0::2, :], x[:, 1::2, 1::2, :]))


def avg_pool3x3_s1_p1(x):
    N, H, W, C = x.shape
    xp = jnp.pad(x, ((0, 0), (1, 1), (1, 1), (0, 0)))
    s = None
    for i in range(3):
        for j in range(3):
            t = xp[:, i:i + H, j:j + W, :]
            s = t if s is None else s + t
    return s * (1.0 / 9.0)


def conv2d_matmul(x, w_packed, b_packed, *, k, pad=0, relu=False,
                  out_dtype=jnp.float32):
    """x: NHWC; w_packed: (k*k*Cin, Cout); bias: (1 or Ho*Wo, Cout)."""
    N = x.shape[0]
    cols, Ho, Wo = _im2col_nhwc(x, k, pad)
    out = matmul_bias(cols, w_packed, b_packed, relu=relu, out_dtype=out_dtype,
                      row_block=Ho * Wo)
    return out.reshape(N, Ho, Wo, -1)


# ----------------------------------------------------------------------------
# Parameter init (PyTorch-style) -- raw, unpacked.
# ----------------------------------------------------------------------------
def _conv_init(key, cout, cin, k):
    kw_, kb_ = jax.random.split(key)
    bound = 1.0 / jnp.sqrt(cin * k * k)
    w = jax.random.uniform(kw_, (cout, cin, k, k), jnp.float32, -bound, bound)
    b = jax.random.uniform(kb_, (cout,), jnp.float32, -bound, bound)
    return w, b


def _linear_init(key, out_f, in_f):
    kw_, kb_ = jax.random.split(key)
    bound = 1.0 / jnp.sqrt(in_f)
    w = jax.random.uniform(kw_, (out_f, in_f), jnp.float32, -bound, bound)
    b = jax.random.uniform(kb_, (out_f,), jnp.float32, -bound, bound)
    return w, b


def init_inception(key, in_ch):
    ks = jax.random.split(key, 7)
    return {
        "b1x1":   _conv_init(ks[0], 16, in_ch, 1),
        "b5x5_1": _conv_init(ks[1], 16, in_ch, 1),
        "b5x5_2": _conv_init(ks[2], 24, 16, 5),
        "b3x3_1": _conv_init(ks[3], 16, in_ch, 1),
        "b3x3_2": _conv_init(ks[4], 24, 16, 3),
        "b3x3_3": _conv_init(ks[5], 24, 24, 3),
        "bpool":  _conv_init(ks[6], 24, in_ch, 1),
    }


def init_net(key):
    ks = jax.random.split(key, 5)
    return {
        "conv1": _conv_init(ks[0], 10, 1, 5),
        "conv2": _conv_init(ks[1], 20, 88, 5),
        "incep1": init_inception(ks[2], 10),
        "incep2": init_inception(ks[3], 20),
        "fc": _linear_init(ks[4], 10, 1408),
    }


# ----------------------------------------------------------------------------
# One-time weight packing / composition (f32, outside the jitted forward).
# Params passed to the forward contain ONLY arrays (no Python ints -> no
# tracer-as-index crash under jit).
# ----------------------------------------------------------------------------
_HI = jax.lax.Precision.HIGHEST


def pack_conv(w, b):
    """(Cout,Cin,kh,kw) -> ((kh*kw*Cin, Cout) bf16, (1,Cout) f32)."""
    cout, cin, kh, kw = w.shape
    wp = w.transpose(2, 3, 1, 0).reshape(kh * kw * cin, cout).astype(jnp.bfloat16)
    return wp, b.reshape(1, cout).astype(jnp.float32)


def _compose_1x1_kxk(w1, b1, w2, b2, H, W):
    """conv_kxk(conv_1x1(x) + b1, pad=(k-1)/2) + b2  ==
       conv_comp(x, zero-pad) + bias_map(h, w)   (exact, incl. borders)."""
    cout, _, k, _ = w2.shape
    cin = w1.shape[1]
    p = (k - 1) // 2
    w1m = w1.reshape(w1.shape[0], cin)
    w_comp = jnp.einsum('omij,mc->ocij', w2, w1m, precision=_HI)   # (cout,cin,k,k)
    s = jnp.einsum('omij,m->oij', w2, b1, precision=_HI)           # (cout,k,k)
    hs = jnp.arange(H)
    ws = jnp.arange(W)
    bias_map = jnp.zeros((H, W, cout), jnp.float32)
    for i in range(k):
        for j in range(k):
            valid = ((hs[:, None] + i - p >= 0) & (hs[:, None] + i - p < H) &
                     (ws[None, :] + j - p >= 0) & (ws[None, :] + j - p < W))
            bias_map = bias_map + valid[:, :, None].astype(jnp.float32) * s[:, i, j][None, None, :]
    bias_map = bias_map + b2[None, None, :]
    return w_comp, bias_map


def pack_inception(p, H, W):
    """Fuse branch1x1 + composed 5x5 + composed 3x3(first two) + bpool 1x1 into
    ONE (25*Cin, 88) weight over a 5x5/pad2 im2col, plus a per-pixel bias map.
    Column layout: [0:16]=b1x1, [16:40]=b5x5, [40:64]=b3x3 intermediate,
    [64:88]=bpool pre-pool (bias added after the avg-pool)."""
    w1, b1 = p["b1x1"]
    w5c, b5map = _compose_1x1_kxk(*p["b5x5_1"], *p["b5x5_2"], H, W)
    w3c, b3map = _compose_1x1_kxk(*p["b3x3_1"], *p["b3x3_2"], H, W)
    wp, bp = p["bpool"]
    cin = w1.shape[1]

    wbig = jnp.zeros((5, 5, cin, 88), jnp.float32)
    wbig = wbig.at[2, 2, :, 0:16].set(w1.reshape(16, cin).T)
    wbig = wbig.at[:, :, :, 16:40].set(jnp.transpose(w5c, (2, 3, 1, 0)))
    wbig = wbig.at[1:4, 1:4, :, 40:64].set(jnp.transpose(w3c, (2, 3, 1, 0)))
    wbig = wbig.at[2, 2, :, 64:88].set(wp.reshape(24, cin).T)
    wbig = wbig.reshape(25 * cin, 88).astype(jnp.bfloat16)

    bmap = jnp.zeros((H * W, 88), jnp.float32)
    bmap = bmap.at[:, 0:16].set(jnp.broadcast_to(b1[None, :], (H * W, 16)))
    bmap = bmap.at[:, 16:40].set(b5map.reshape(H * W, 24))
    bmap = bmap.at[:, 40:64].set(b3map.reshape(H * W, 24))
    # cols 64:88 stay 0: bpool bias is added after the pool.

    w33, b33 = pack_conv(*p["b3x3_3"])
    return {"w_fused": wbig, "b_fused": bmap,
            "w_3x3_3": w33, "b_3x3_3": b33,
            "b_pool": bp.reshape(1, 1, 1, 24).astype(jnp.float32)}


def pack_net(p):
    c1w, c1b = pack_conv(*p["conv1"])
    c2w, c2b = pack_conv(*p["conv2"])
    w_fc, b_fc = p["fc"]
    # Pre-permute fc rows so it consumes the NHWC flatten order (h, w, c)
    # instead of PyTorch's NCHW flatten (removes a transpose from the forward).
    w_fc_perm = (w_fc.reshape(10, 88, 4, 4).transpose(2, 3, 1, 0)
                 .reshape(1408, 10).astype(jnp.bfloat16))
    return {
        "conv1_w": c1w, "conv1_b": c1b,
        "conv2_w": c2w, "conv2_b": c2b,
        "incep1": pack_inception(p["incep1"], 12, 12),
        "incep2": pack_inception(p["incep2"], 4, 4),
        "fc_w": w_fc_perm,
        "fc_b": b_fc.reshape(1, -1).astype(jnp.float32),
    }


# ----------------------------------------------------------------------------
# Forward pass (semantics match the PyTorch module; internal layout NHWC).
# ----------------------------------------------------------------------------
def inception_a(p, x):
    N, H, W, _ = x.shape
    # Matmul 1: all branches' first stage in one (25*Cin, 88) matmul.
    y = conv2d_matmul(x, p["w_fused"], p["b_fused"], k=5, pad=2,
                      out_dtype=jnp.float32)                    # (N,H,W,88)
    b1x1 = y[..., 0:16]
    b5x5 = y[..., 16:40]
    b3mid = y[..., 40:64]
    bpool_pre = y[..., 64:88]
    # Matmul 2: trailing 3x3_3 conv on the 24-ch intermediate.
    b3x3 = conv2d_matmul(b3mid, p["w_3x3_3"], p["b_3x3_3"], k=3, pad=1,
                         out_dtype=jnp.float32)                 # (N,H,W,24)
    # branch_pool: avg-pool the (bias-free) pre-pool 1x1 output, bias after.
    bpool = avg_pool3x3_s1_p1(bpool_pre) + p["b_pool"]          # (N,H,W,24)
    return jnp.concatenate([b1x1, b5x5, b3x3, bpool], axis=-1)  # (N,H,W,88)


def net_forward(params, x_nchw):
    n = x_nchw.shape[0]
    x = x_nchw.transpose(0, 2, 3, 1)                            # NCHW -> NHWC once
    # relu fused into the conv epilogue: relu(maxpool(y)) == maxpool(relu(y)).
    # bf16 output is exact through max-pool (monotone rounding) and the next
    # conv's im2col truncates to bf16 anyway.
    x = conv2d_matmul(x, params["conv1_w"], params["conv1_b"], k=5, pad=0,
                      relu=True, out_dtype=jnp.bfloat16)        # (N,24,24,10)
    x = max_pool2x2(x)                                          # (N,12,12,10)
    x = inception_a(params["incep1"], x)                        # (N,12,12,88)
    x = conv2d_matmul(x, params["conv2_w"], params["conv2_b"], k=5, pad=0,
                      relu=True, out_dtype=jnp.bfloat16)        # (N,8,8,20)
    x = max_pool2x2(x)                                          # (N,4,4,20)
    x = inception_a(params["incep2"], x)                        # (N,4,4,88)
    x = x.reshape(n, -1)                                        # (N,1408) (h,w,c) order
    return matmul_bias(x, params["fc_w"], params["fc_b"],
                       out_dtype=jnp.float32)                   # (N,10)


if __name__ == "__main__":
    key = jax.random.PRNGKey(0)
    k_param, k_data = jax.random.split(key)
    params = pack_net(init_net(k_param))       # one-time packing / composition
    # MNIST-shaped input required by fc(1408, 10): batch=2, 1 channel, 28x28.
    x = jax.random.normal(k_data, (2, 1, 28, 28), dtype=jnp.float32)
    out = jax.jit(net_forward)(params, x)
    out = jax.block_until_ready(out)
    assert out.shape == (2, 10) and out.dtype == jnp.float32
    print("KERNEL_OK")
</pallas_src>

<mosaic_0001>
module attributes {stable_mosaic.version = 11 : i64} {
  func.func @_mm_bias_kernel(%arg0: i32, %arg1: memref<576x25xbf16, #tpu.memory_space<vmem>>, %arg2: memref<25x10xbf16, #tpu.memory_space<vmem>>, %arg3: memref<1x10xf32, #tpu.memory_space<vmem>>, %arg4: memref<576x10xbf16, #tpu.memory_space<vmem>>) attributes {dimension_semantics = [#tpu.dimension_semantics<parallel>], iteration_bounds = array<i64: 2>, scalar_prefetch = 0 : i64, scratch_operands = 0 : i64, tpu.core_type = #tpu.core_type<tc>, window_params = [{transform_indices = @transform_0, window_bounds = array<i64: 576, 25>}, {pipeline_mode = #tpu.pipeline_mode<synchronous>, transform_indices = @transform_1, window_bounds = array<i64: 25, 10>}, {pipeline_mode = #tpu.pipeline_mode<synchronous>, transform_indices = @transform_2, window_bounds = array<i64: 1, 10>}, {transform_indices = @transform_3, window_bounds = array<i64: 576, 10>}]} {
    %c0 = arith.constant 0 : index
    %c0_0 = arith.constant 0 : index
    %0 = vector.load %arg1[%c0, %c0_0] : memref<576x25xbf16, #tpu.memory_space<vmem>>, vector<576x25xbf16>
    %c0_1 = arith.constant 0 : index
    %c0_2 = arith.constant 0 : index
    %1 = vector.load %arg2[%c0_1, %c0_2] : memref<25x10xbf16, #tpu.memory_space<vmem>>, vector<25x10xbf16>
    %cst = arith.constant dense<0.000000e+00> : vector<576x10xf32>
    %2 = tpu.matmul %0, %1, %cst {dimension_numbers = #tpu.dot_dimension_numbers<[1], [0], [0], [1], [0, 0, 1, 1], [], []>} : vector<576x25xbf16>, vector<25x10xbf16>, vector<576x10xf32> -> vector<576x10xf32>
    %c0_3 = arith.constant 0 : index
    %c0_4 = arith.constant 0 : index
    %3 = vector.load %arg3[%c0_3, %c0_4] : memref<1x10xf32, #tpu.memory_space<vmem>>, vector<1x10xf32>
    %4 = vector.broadcast %3 : vector<1x10xf32> to vector<576x10xf32>
    %5 = arith.addf %2, %4 : vector<576x10xf32>
    %cst_5 = arith.constant 0.000000e+00 : f32
    %6 = vector.broadcast %cst_5 : f32 to vector<576x10xf32>
    %7 = arith.maximumf %5, %6 : vector<576x10xf32>
    %8 = arith.truncf %7 : vector<576x10xf32> to vector<576x10xbf16>
    %c0_6 = arith.constant 0 : index
    %c0_7 = arith.constant 0 : index
    %9 = vector.load %arg4[%c0_6, %c0_7] : memref<576x10xbf16, #tpu.memory_space<vmem>>, vector<576x10xbf16>
    tpu.vector_store %arg4[%c0_6, %c0_7], %8 {strides = array<i32>} : memref<576x10xbf16, #tpu.memory_space<vmem>>, vector<576x10xbf16>,
    return
  }
  func.func @transform_0(%arg0: i32) -> (i32, i32) {
    %c0_i32 = arith.constant 0 : i32
    %c0_i32_0 = arith.constant 0 : i32
    return %arg0, %c0_i32 : i32, i32
  }
  func.func @transform_1(%arg0: i32) -> (i32, i32) {
    %c0_i32 = arith.constant 0 : i32
    %c0_i32_0 = arith.constant 0 : i32
    %c0_i32_1 = arith.constant 0 : i32
    return %c0_i32, %c0_i32_0 : i32, i32
  }
  func.func @transform_2(%arg0: i32) -> (i32, i32) {
    %c0_i32 = arith.constant 0 : i32
    %c0_i32_0 = arith.constant 0 : i32
    %c0_i32_1 = arith.constant 0 : i32
    return %c0_i32, %c0_i32_0 : i32, i32
  }
  func.func @transform_3(%arg0: i32) -> (i32, i32) {
    %c0_i32 = arith.constant 0 : i32
    %c0_i32_0 = arith.constant 0 : i32
    return %arg0, %c0_i32 : i32, i32
  }
}

module attributes {stable_mosaic.version = 11 : i64} {
  func.func @_mm_bias_kernel(%arg0: i32, %arg1: memref<144x250xbf16, #tpu.memory_space<vmem>>, %arg2: memref<250x88xbf16, #tpu.memory_space<vmem>>, %arg3: memref<144x88xf32, #tpu.memory_space<vmem>>, %arg4: memref<144x88xf32, #tpu.memory_space<vmem>>) attributes {dimension_semantics = [#tpu.dimension_semantics<parallel>], iteration_bounds = array<i64: 2>, scalar_prefetch = 0 : i64, scratch_operands = 0 : i64, tpu.core_type = #tpu.core_type<tc>, window_params = [{transform_indices = @transform_0, window_bounds = array<i64: 144, 250>}, {pipeline_mode = #tpu.pipeline_mode<synchronous>, transform_indices = @transform_1, window_bounds = array<i64: 250, 88>}, {pipeline_mode = #tpu.pipeline_mode<synchronous>, transform_indices = @transform_2, window_bounds = array<i64: 144, 88>}, {transform_indices = @transform_3, window_bounds = array<i64: 144, 88>}]} {
    %c0 = arith.constant 0 : index
    %c0_0 = arith.constant 0 : index
    %0 = vector.load %arg1[%c0, %c0_0] : memref<144x250xbf16, #tpu.memory_space<vmem>>, vector<144x250xbf16>
    %c0_1 = arith.constant 0 : index
    %c0_2 = arith.constant 0 : index
    %1 = vector.load %arg2[%c0_1, %c0_2] : memref<250x88xbf16, #tpu.memory_space<vmem>>, vector<250x88xbf16>
    %cst = arith.constant dense<0.000000e+00> : vector<144x88xf32>
    %2 = tpu.matmul %0, %1, %cst {dimension_numbers = #tpu.dot_dimension_numbers<[1], [0], [0], [1], [0, 0, 1, 1], [], []>} : vector<144x250xbf16>, vector<250x88xbf16>, vector<144x88xf32> -> vector<144x88xf32>
    %c0_3 = arith.constant 0 : index
    %c0_4 = arith.constant 0 : index
    %3 = vector.load %arg3[%c0_3, %c0_4] : memref<144x88xf32, #tpu.memory_space<vmem>>, vector<144x88xf32>
    %4 = arith.addf %2, %3 : vector<144x88xf32>
    %c0_5 = arith.constant 0 : index
    %c0_6 = arith.constant 0 : index
    %5 = vector.load %arg4[%c0_5, %c0_6] : memref<144x88xf32, #tpu.memory_space<vmem>>, vector<144x88xf32>
    tpu.vector_store %arg4[%c0_5, %c0_6], %4 {strides = array<i32>} : memref<144x88xf32, #tpu.memory_space<vmem>>, vector<144x88xf32>,
    return
  }
  func.func @transform_0(%arg0: i32) -> (i32, i32) {
    %c0_i32 = arith.constant 0 : i32
    %c0_i32_0 = arith.constant 0 : i32
    return %arg0, %c0_i32 : i32, i32
  }
  func.func @transform_1(%arg0: i32) -> (i32, i32) {
    %c0_i32 = arith.constant 0 : i32
    %c0_i32_0 = arith.constant 0 : i32
    %c0_i32_1 = arith.constant 0 : i32
    return %c0_i32, %c0_i32_0 : i32, i32
  }
  func.func @transform_2(%arg0: i32) -> (i32, i32) {
    %c0_i32 = arith.constant 0 : i32
    %c0_i32_0 = arith.constant 0 : i32
    %c0_i32_1 = arith.constant 0 : i32
    return %c0_i32, %c0_i32_0 : i32, i32
  }
  func.func @transform_3(%arg0: i32) -> (i32, i32) {
    %c0_i32 = arith.constant 0 : i32
    %c0_i32_0 = arith.constant 0 : i32
    return %arg0, %c0_i32 : i32, i32
  }
}

module attributes {stable_mosaic.version = 11 : i64} {
  func.func @_mm_bias_kernel(%arg0: i32, %arg1: memref<144x216xbf16, #tpu.memory_space<vmem>>, %arg2: memref<216x24xbf16, #tpu.memory_space<vmem>>, %arg3: memref<1x24xf32, #tpu.memory_space<vmem>>, %arg4: memref<144x24xf32, #tpu.memory_space<vmem>>) attributes {dimension_semantics = [#tpu.dimension_semantics<parallel>], iteration_bounds = array<i64: 2>, scalar_prefetch = 0 : i64, scratch_operands = 0 : i64, tpu.core_type = #tpu.core_type<tc>, window_params = [{transform_indices = @transform_0, window_bounds = array<i64: 144, 216>}, {pipeline_mode = #tpu.pipeline_mode<synchronous>, transform_indices = @transform_1, window_bounds = array<i64: 216, 24>}, {pipeline_mode = #tpu.pipeline_mode<synchronous>, transform_indices = @transform_2, window_bounds = array<i64: 1, 24>}, {transform_indices = @transform_3, window_bounds = array<i64: 144, 24>}]} {
    %c0 = arith.constant 0 : index
    %c0_0 = arith.constant 0 : index
    %0 = vector.load %arg1[%c0, %c0_0] : memref<144x216xbf16, #tpu.memory_space<vmem>>, vector<144x216xbf16>
    %c0_1 = arith.constant 0 : index
    %c0_2 = arith.constant 0 : index
    %1 = vector.load %arg2[%c0_1, %c0_2] : memref<216x24xbf16, #tpu.memory_space<vmem>>, vector<216x24xbf16>
    %cst = arith.constant dense<0.000000e+00> : vector<144x24xf32>
    %2 = tpu.matmul %0, %1, %cst {dimension_numbers = #tpu.dot_dimension_numbers<[1], [0], [0], [1], [0, 0, 1, 1], [], []>} : vector<144x216xbf16>, vector<216x24xbf16>, vector<144x24xf32> -> vector<144x24xf32>
    %c0_3 = arith.constant 0 : index
    %c0_4 = arith.constant 0 : index
    %3 = vector.load %arg3[%c0_3, %c0_4] : memref<1x24xf32, #tpu.memory_space<vmem>>, vector<1x24xf32>
    %4 = vector.broadcast %3 : vector<1x24xf32> to vector<144x24xf32>
    %5 = arith.addf %2, %4 : vector<144x24xf32>
    %c0_5 = arith.constant 0 : index
    %c0_6 = arith.constant 0 : index
    %6 = vector.load %arg4[%c0_5, %c0_6] : memref<144x24xf32, #tpu.memory_space<vmem>>, vector<144x24xf32>
    tpu.vector_store %arg4[%c0_5, %c0_6], %5 {strides = array<i32>} : memref<144x24xf32, #tpu.memory_space<vmem>>, vector<144x24xf32>,
    return
  }
  func.func @transform_0(%arg0: i32) -> (i32, i32) {
    %c0_i32 = arith.constant 0 : i32
    %c0_i32_0 = arith.constant 0 : i32
    return %arg0, %c0_i32 : i32, i32
  }
  func.func @transform_1(%arg0: i32) -> (i32, i32) {
    %c0_i32 = arith.constant 0 : i32
    %c0_i32_0 = arith.constant 0 : i32
    %c0_i32_1 = arith.constant 0 : i32
    return %c0_i32, %c0_i32_0 : i32, i32
  }
  func.func @transform_2(%arg0: i32) -> (i32, i32) {
    %c0_i32 = arith.constant 0 : i32
    %c0_i32_0 = arith.constant 0 : i32
    %c0_i32_1 = arith.constant 0 : i32
    return %c0_i32, %c0_i32_0 : i32, i32
  }
  func.func @transform_3(%arg0: i32) -> (i32, i32) {
    %c0_i32 = arith.constant 0 : i32
    %c0_i32_0 = arith.constant 0 : i32
    return %arg0, %c0_i32 : i32, i32
  }
}

module attributes {stable_mosaic.version = 11 : i64} {
  func.func @_mm_bias_kernel(%arg0: i32, %arg1: memref<64x2200xbf16, #tpu.memory_space<vmem>>, %arg2: memref<2200x20xbf16, #tpu.memory_space<vmem>>, %arg3: memref<1x20xf32, #tpu.memory_space<vmem>>, %arg4: memref<64x20xbf16, #tpu.memory_space<vmem>>) attributes {dimension_semantics = [#tpu.dimension_semantics<parallel>], iteration_bounds = array<i64: 2>, scalar_prefetch = 0 : i64, scratch_operands = 0 : i64, tpu.core_type = #tpu.core_type<tc>, window_params = [{transform_indices = @transform_0, window_bounds = array<i64: 64, 2200>}, {pipeline_mode = #tpu.pipeline_mode<synchronous>, transform_indices = @transform_1, window_bounds = array<i64: 2200, 20>}, {pipeline_mode = #tpu.pipeline_mode<synchronous>, transform_indices = @transform_2, window_bounds = array<i64: 1, 20>}, {transform_indices = @transform_3, window_bounds = array<i64: 64, 20>}]} {
    %c0 = arith.constant 0 : index
    %c0_0 = arith.constant 0 : index
    %0 = vector.load %arg1[%c0, %c0_0] : memref<64x2200xbf16, #tpu.memory_space<vmem>>, vector<64x2200xbf16>
    %c0_1 = arith.constant 0 : index
    %c0_2 = arith.constant 0 : index
    %1 = vector.load %arg2[%c0_1, %c0_2] : memref<2200x20xbf16, #tpu.memory_space<vmem>>, vector<2200x20xbf16>
    %cst = arith.constant dense<0.000000e+00> : vector<64x20xf32>
    %2 = tpu.matmul %0, %1, %cst {dimension_numbers = #tpu.dot_dimension_numbers<[1], [0], [0], [1], [0, 0, 1, 1], [], []>} : vector<64x2200xbf16>, vector<2200x20xbf16>, vector<64x20xf32> -> vector<64x20xf32>
    %c0_3 = arith.constant 0 : index
    %c0_4 = arith.constant 0 : index
    %3 = vector.load %arg3[%c0_3, %c0_4] : memref<1x20xf32, #tpu.memory_space<vmem>>, vector<1x20xf32>
    %4 = vector.broadcast %3 : vector<1x20xf32> to vector<64x20xf32>
    %5 = arith.addf %2, %4 : vector<64x20xf32>
    %cst_5 = arith.constant 0.000000e+00 : f32
    %6 = vector.broadcast %cst_5 : f32 to vector<64x20xf32>
    %7 = arith.maximumf %5, %6 : vector<64x20xf32>
    %8 = arith.truncf %7 : vector<64x20xf32> to vector<64x20xbf16>
    %c0_6 = arith.constant 0 : index
    %c0_7 = arith.constant 0 : index
    %9 = vector.load %arg4[%c0_6, %c0_7] : memref<64x20xbf16, #tpu.memory_space<vmem>>, vector<64x20xbf16>
    tpu.vector_store %arg4[%c0_6, %c0_7], %8 {strides = array<i32>} : memref<64x20xbf16, #tpu.memory_space<vmem>>, vector<64x20xbf16>,
    return
  }
  func.func @transform_0(%arg0: i32) -> (i32, i32) {
    %c0_i32 = arith.constant 0 : i32
    %c0_i32_0 = arith.constant 0 : i32
    return %arg0, %c0_i32 : i32, i32
  }
  func.func @transform_1(%arg0: i32) -> (i32, i32) {
    %c0_i32 = arith.constant 0 : i32
    %c0_i32_0 = arith.constant 0 : i32
    %c0_i32_1 = arith.constant 0 : i32
    return %c0_i32, %c0_i32_0 : i32, i32
  }
  func.func @transform_2(%arg0: i32) -> (i32, i32) {
    %c0_i32 = arith.constant 0 : i32
    %c0_i32_0 = arith.constant 0 : i32
    %c0_i32_1 = arith.constant 0 : i32
    return %c0_i32, %c0_i32_0 : i32, i32
  }
  func.func @transform_3(%arg0: i32) -> (i32, i32) {
    %c0_i32 = arith.constant 0 : i32
    %c0_i32_0 = arith.constant 0 : i32
    return %arg0, %c0_i32 : i32, i32
  }
}

module attributes {stable_mosaic.version = 11 : i64} {
  func.func @_mm_bias_kernel(%arg0: i32, %arg1: memref<16x500xbf16, #tpu.memory_space<vmem>>, %arg2: memref<500x88xbf16, #tpu.memory_space<vmem>>, %arg3: memref<16x88xf32, #tpu.memory_space<vmem>>, %arg4: memref<16x88xf32, #tpu.memory_space<vmem>>) attributes {dimension_semantics = [#tpu.dimension_semantics<parallel>], iteration_bounds = array<i64: 2>, scalar_prefetch = 0 : i64, scratch_operands = 0 : i64, tpu.core_type = #tpu.core_type<tc>, window_params = [{transform_indices = @transform_0, window_bounds = array<i64: 16, 500>}, {pipeline_mode = #tpu.pipeline_mode<synchronous>, transform_indices = @transform_1, window_bounds = array<i64: 500, 88>}, {pipeline_mode = #tpu.pipeline_mode<synchronous>, transform_indices = @transform_2, window_bounds = array<i64: 16, 88>}, {transform_indices = @transform_3, window_bounds = array<i64: 16, 88>}]} {
    %c0 = arith.constant 0 : index
    %c0_0 = arith.constant 0 : index
    %0 = vector.load %arg1[%c0, %c0_0] : memref<16x500xbf16, #tpu.memory_space<vmem>>, vector<16x500xbf16>
    %c0_1 = arith.constant 0 : index
    %c0_2 = arith.constant 0 : index
    %1 = vector.load %arg2[%c0_1, %c0_2] : memref<500x88xbf16, #tpu.memory_space<vmem>>, vector<500x88xbf16>
    %cst = arith.constant dense<0.000000e+00> : vector<16x88xf32>
    %2 = tpu.matmul %0, %1, %cst {dimension_numbers = #tpu.dot_dimension_numbers<[1], [0], [0], [1], [0, 0, 1, 1], [], []>} : vector<16x500xbf16>, vector<500x88xbf16>, vector<16x88xf32> -> vector<16x88xf32>
    %c0_3 = arith.constant 0 : index
    %c0_4 = arith.constant 0 : index
    %3 = vector.load %arg3[%c0_3, %c0_4] : memref<16x88xf32, #tpu.memory_space<vmem>>, vector<16x88xf32>
    %4 = arith.addf %2, %3 : vector<16x88xf32>
    %c0_5 = arith.constant 0 : index
    %c0_6 = arith.constant 0 : index
    %5 = vector.load %arg4[%c0_5, %c0_6] : memref<16x88xf32, #tpu.memory_space<vmem>>, vector<16x88xf32>
    tpu.vector_store %arg4[%c0_5, %c0_6], %4 {strides = array<i32>} : memref<16x88xf32, #tpu.memory_space<vmem>>, vector<16x88xf32>,
    return
  }
  func.func @transform_0(%arg0: i32) -> (i32, i32) {
    %c0_i32 = arith.constant 0 : i32
    %c0_i32_0 = arith.constant 0 : i32
    return %arg0, %c0_i32 : i32, i32
  }
  func.func @transform_1(%arg0: i32) -> (i32, i32) {
    %c0_i32 = arith.constant 0 : i32
    %c0_i32_0 = arith.constant 0 : i32
    %c0_i32_1 = arith.constant 0 : i32
    return %c0_i32, %c0_i32_0 : i32, i32
  }
  func.func @transform_2(%arg0: i32) -> (i32, i32) {
    %c0_i32 = arith.constant 0 : i32
    %c0_i32_0 = arith.constant 0 : i32
    %c0_i32_1 = arith.constant 0 : i32
    return %c0_i32, %c0_i32_0 : i32, i32
  }
  func.func @transform_3(%arg0: i32) -> (i32, i32) {
    %c0_i32 = arith.constant 0 : i32
    %c0_i32_0 = arith.constant 0 : i32
    return %arg0, %c0_i32 : i32, i32
  }
}

module attributes {stable_mosaic.version = 11 : i64} {
  func.func @_mm_bias_kernel(%arg0: i32, %arg1: memref<16x216xbf16, #tpu.memory_space<vmem>>, %arg2: memref<216x24xbf16, #tpu.memory_space<vmem>>, %arg3: memref<1x24xf32, #tpu.memory_space<vmem>>, %arg4: memref<16x24xf32, #tpu.memory_space<vmem>>) attributes {dimension_semantics = [#tpu.dimension_semantics<parallel>], iteration_bounds = array<i64: 2>, scalar_prefetch = 0 : i64, scratch_operands = 0 : i64, tpu.core_type = #tpu.core_type<tc>, window_params = [{transform_indices = @transform_0, window_bounds = array<i64: 16, 216>}, {pipeline_mode = #tpu.pipeline_mode<synchronous>, transform_indices = @transform_1, window_bounds = array<i64: 216, 24>}, {pipeline_mode = #tpu.pipeline_mode<synchronous>, transform_indices = @transform_2, window_bounds = array<i64: 1, 24>}, {transform_indices = @transform_3, window_bounds = array<i64: 16, 24>}]} {
    %c0 = arith.constant 0 : index
    %c0_0 = arith.constant 0 : index
    %0 = vector.load %arg1[%c0, %c0_0] : memref<16x216xbf16, #tpu.memory_space<vmem>>, vector<16x216xbf16>
    %c0_1 = arith.constant 0 : index
    %c0_2 = arith.constant 0 : index
    %1 = vector.load %arg2[%c0_1, %c0_2] : memref<216x24xbf16, #tpu.memory_space<vmem>>, vector<216x24xbf16>
    %cst = arith.constant dense<0.000000e+00> : vector<16x24xf32>
    %2 = tpu.matmul %0, %1, %cst {dimension_numbers = #tpu.dot_dimension_numbers<[1], [0], [0], [1], [0, 0, 1, 1], [], []>} : vector<16x216xbf16>, vector<216x24xbf16>, vector<16x24xf32> -> vector<16x24xf32>
    %c0_3 = arith.constant 0 : index
    %c0_4 = arith.constant 0 : index
    %3 = vector.load %arg3[%c0_3, %c0_4] : memref<1x24xf32, #tpu.memory_space<vmem>>, vector<1x24xf32>
    %4 = vector.broadcast %3 : vector<1x24xf32> to vector<16x24xf32>
    %5 = arith.addf %2, %4 : vector<16x24xf32>
    %c0_5 = arith.constant 0 : index
    %c0_6 = arith.constant 0 : index
    %6 = vector.load %arg4[%c0_5, %c0_6] : memref<16x24xf32, #tpu.memory_space<vmem>>, vector<16x24xf32>
    tpu.vector_store %arg4[%c0_5, %c0_6], %5 {strides = array<i32>} : memref<16x24xf32, #tpu.memory_space<vmem>>, vector<16x24xf32>,
    return
  }
  func.func @transform_0(%arg0: i32) -> (i32, i32) {
    %c0_i32 = arith.constant 0 : i32
    %c0_i32_0 = arith.constant 0 : i32
    return %arg0, %c0_i32 : i32, i32
  }
  func.func @transform_1(%arg0: i32) -> (i32, i32) {
    %c0_i32 = arith.constant 0 : i32
    %c0_i32_0 = arith.constant 0 : i32
    %c0_i32_1 = arith.constant 0 : i32
    return %c0_i32, %c0_i32_0 : i32, i32
  }
  func.func @transform_2(%arg0: i32) -> (i32, i32) {
    %c0_i32 = arith.constant 0 : i32
    %c0_i32_0 = arith.constant 0 : i32
    %c0_i32_1 = arith.constant 0 : i32
    return %c0_i32, %c0_i32_0 : i32, i32
  }
  func.func @transform_3(%arg0: i32) -> (i32, i32) {
    %c0_i32 = arith.constant 0 : i32
    %c0_i32_0 = arith.constant 0 : i32
    return %arg0, %c0_i32 : i32, i32
  }
}

module attributes {stable_mosaic.version = 11 : i64} {
  func.func @_mm_bias_kernel(%arg0: i32, %arg1: memref<8x1408xbf16, #tpu.memory_space<vmem>>, %arg2: memref<1408x10xbf16, #tpu.memory_space<vmem>>, %arg3: memref<1x10xf32, #tpu.memory_space<vmem>>, %arg4: memref<8x10xf32, #tpu.memory_space<vmem>>) attributes {dimension_semantics = [#tpu.dimension_semantics<parallel>], iteration_bounds = array<i64: 1>, scalar_prefetch = 0 : i64, scratch_operands = 0 : i64, tpu.core_type = #tpu.core_type<tc>, window_params = [{transform_indices = @transform_0, window_bounds = array<i64: 8, 1408>}, {pipeline_mode = #tpu.pipeline_mode<synchronous>, transform_indices = @transform_1, window_bounds = array<i64: 1408, 10>}, {pipeline_mode = #tpu.pipeline_mode<synchronous>, transform_indices = @transform_2, window_bounds = array<i64: 1, 10>}, {transform_indices = @transform_3, window_bounds = array<i64: 8, 10>}]} {
    %c0 = arith.constant 0 : index
    %c0_0 = arith.constant 0 : index
    %0 = vector.load %arg1[%c0, %c0_0] : memref<8x1408xbf16, #tpu.memory_space<vmem>>, vector<8x1408xbf16>
    %c0_1 = arith.constant 0 : index
    %c0_2 = arith.constant 0 : index
    %1 = vector.load %arg2[%c0_1, %c0_2] : memref<1408x10xbf16, #tpu.memory_space<vmem>>, vector<1408x10xbf16>
    %cst = arith.constant dense<0.000000e+00> : vector<8x10xf32>
    %2 = tpu.matmul %0, %1, %cst {dimension_numbers = #tpu.dot_dimension_numbers<[1], [0], [0], [1], [0, 0, 1, 1], [], []>} : vector<8x1408xbf16>, vector<1408x10xbf16>, vector<8x10xf32> -> vector<8x10xf32>
    %c0_3 = arith.constant 0 : index
    %c0_4 = arith.constant 0 : index
    %3 = vector.load %arg3[%c0_3, %c0_4] : memref<1x10xf32, #tpu.memory_space<vmem>>, vector<1x10xf32>
    %4 = vector.broadcast %3 : vector<1x10xf32> to vector<8x10xf32>
    %5 = arith.addf %2, %4 : vector<8x10xf32>
    %c0_5 = arith.constant 0 : index
    %c0_6 = arith.constant 0 : index
    %6 = vector.load %arg4[%c0_5, %c0_6] : memref<8x10xf32, #tpu.memory_space<vmem>>, vector<8x10xf32>
    tpu.vector_store %arg4[%c0_5, %c0_6], %5 {strides = array<i32>} : memref<8x10xf32, #tpu.memory_space<vmem>>, vector<8x10xf32>,
    return
  }
  func.func @transform_0(%arg0: i32) -> (i32, i32) {
    %c0_i32 = arith.constant 0 : i32
    %c0_i32_0 = arith.constant 0 : i32
    return %arg0, %c0_i32 : i32, i32
  }
  func.func @transform_1(%arg0: i32) -> (i32, i32) {
    %c0_i32 = arith.constant 0 : i32
    %c0_i32_0 = arith.constant 0 : i32
    %c0_i32_1 = arith.constant 0 : i32
    return %c0_i32, %c0_i32_0 : i32, i32
  }
  func.func @transform_2(%arg0: i32) -> (i32, i32) {
    %c0_i32 = arith.constant 0 : i32
    %c0_i32_0 = arith.constant 0 : i32
    %c0_i32_1 = arith.constant 0 : i32
    return %c0_i32, %c0_i32_0 : i32, i32
  }
  func.func @transform_3(%arg0: i32) -> (i32, i32) {
    %c0_i32 = arith.constant 0 : i32
    %c0_i32_0 = arith.constant 0 : i32
    return %arg0, %c0_i32 : i32, i32
  }
}

</mosaic_0001>

<llo_original>
// kernel: net_forward.7
$region0: #{net_forward.7}
  #allocation0 [shape = 'u32[]', space=smem, size = 0x4, offset = 0x4, fixed_abs, tag = 'smem constant byte address 0x4 - core index']
  #allocation1 [shape = 'u32[144,128]{1,0:T(1,128)}', space=vmem, size = 0x12000, scoped, tag = 'internal scratch']
  %s0 = inlined_call_operand.vmem [shape: bf16[1152,25], index: 0, kind: input, shape index: {}]
  %s1 = inlined_call_operand.vmem [shape: bf16[25,10], index: 1, kind: input, shape index: {}]
  %s2 = inlined_call_operand.vmem [shape: f32[1,10], index: 2, kind: input, shape index: {}]
  %s3 = inlined_call_operand.vmem [shape: bf16[1152,10], index: 3, kind: output, shape index: {}]
  %s4 = sld [smem:[#allocation0]]
  $region45: #{net_forward.7} parent=0
    _
  %s6 = ssub.s32 1, %s4
  %s7 = scalar_select 0, %s6, %s4
  loop: start=0, step=1, limit=4
  $region2: #{net_forward.7} parent=0 // loop_pre_header
    _
  $region3: #{net_forward.7} parent=0 // loop_header
    %s9 = sphi 0, %s13
    %p10 = scmp.ge.s32.totalorder %s9, 4
    %s19 = sphi 0, %s21
    %s22 = sphi 0, %s19
    %s23 = sphi 0, %s22
    %s39 = sphi 0, %s23
    %s43 = sphi 0, %s43
    %s45 = sphi 0, %s43
    %s46 = sphi 0, %s45
    %s60 = sphi 0, %s46
    %s64 = sphi 0, %s64
    %s66 = sphi 0, %s64
    %s67 = sphi 0, %s66
    %s81 = sphi 0, %s67
    %s87 = sphi 0, %s89
    %s90 = sphi 0, %s87
    %s91 = sphi 0, %s90
    %s107 = sphi 0, %s91
  $region4: #{net_forward.7} parent=0 // loop_header_branch
    %12 = sbr.rel (%p10) target = $region8
  $region5: #{net_forward.7} parent=0 // loop_body
    %s14 = ssub.s32 %s9, 1
    %s15 = ssub.s32 %s9, 2
    %s16 = sadd.s32 %s9, 1
    %s17 = ssub.s32 %s9, %s16
    %p18 = scmp.eq.s32.totalorder %s17, 0
    %s20 = sadd.s32 %s19, 1
    %s21 = scalar_select %p18, %s19, %s20
    %p24 = pneg %p18
    %p25 = scmp.eq.s32.totalorder %s9, 1
    %p26 = por %p24, %p25
    %p27 = scmp.ne.s32.totalorder %s19, %s22
    %p28 = scmp.eq.s32.totalorder %s9, 0
    %p29 = por %p27, %p28
    %p30 = scmp.ne.s32.totalorder %s19, %s22
    %p31 = scmp.eq.s32.totalorder %s14, 1
    %p32 = por %p30, %p31
    %p33 = scmp.ne.s32.totalorder %s22, %s23
    %p34 = scmp.eq.s32.totalorder %s14, 0
    %p35 = por %p33, %p34
    %p36 = scmp.ne.s32.totalorder %s22, %s23
    %p37 = scmp.eq.s32.totalorder %s15, 1
    %p38 = por %p36, %p37
    %p40 = scmp.ne.s32.totalorder %s23, %s39
    %p41 = scmp.eq.s32.totalorder %s15, 0
    %p42 = por %p40, %p41
    %s44 = sadd.s32 %s43, 1
    %p47 = scmp.eq.s32.totalorder %s9, 1
    %p48 = scmp.ne.s32.totalorder %s43, %s45
    %p49 = scmp.eq.s32.totalorder %s9, 0
    %p50 = por %p48, %p49
    %p51 = scmp.ne.s32.totalorder %s43, %s45
    %p52 = scmp.eq.s32.totalorder %s14, 1
    %p53 = por %p51, %p52
    %p54 = scmp.ne.s32.totalorder %s45, %s46
    %p55 = scmp.eq.s32.totalorder %s14, 0
    %p56 = por %p54, %p55
    %p57 = scmp.ne.s32.totalorder %s45, %s46
    %p58 = scmp.eq.s32.totalorder %s15, 1
    %p59 = por %p57, %p58
    %p61 = scmp.ne.s32.totalorder %s46, %s60
    %p62 = scmp.eq.s32.totalorder %s15, 0
    %p63 = por %p61, %p62
    %s65 = sadd.s32 %s64, 1
    %p68 = scmp.eq.s32.totalorder %s9, 1
    %p69 = scmp.ne.s32.totalorder %s64, %s66
    %p70 = scmp.eq.s32.totalorder %s9, 0
    %p71 = por %p69, %p70
    %p72 = scmp.ne.s32.totalorder %s64, %s66
    %p73 = scmp.eq.s32.totalorder %s14, 1
    %p74 = por %p72, %p73
    %p75 = scmp.ne.s32.totalorder %s66, %s67
    %p76 = scmp.eq.s32.totalorder %s14, 0
    %p77 = por %p75, %p76
    %p78 = scmp.ne.s32.totalorder %s66, %s67
    %p79 = scmp.eq.s32.totalorder %s15, 1
    %p80 = por %p78, %p79
    %p82 = scmp.ne.s32.totalorder %s67, %s81
    %p83 = scmp.eq.s32.totalorder %s15, 0
    %p84 = por %p82, %p83
    %s85 = ssub.s32 %s9, %s16
    %p86 = scmp.eq.s32.totalorder %s85, 0
    %s88 = sadd.s32 %s87, 1
    %s89 = scalar_select %p86, %s87, %s88
    %p92 = pneg %p86
    %p93 = scmp.eq.s32.totalorder %s9, 1
    %p94 = por %p92, %p93
    %p95 = scmp.ne.s32.totalorder %s87, %s90
    %p96 = scmp.eq.s32.totalorder %s9, 0
    %p97 = por %p95, %p96
    %p98 = scmp.ne.s32.totalorder %s87, %s90
    %p99 = scmp.eq.s32.totalorder %s14, 1
    %p100 = por %p98, %p99
    %p101 = scmp.ne.s32.totalorder %s90, %s91
    %p102 = scmp.eq.s32.totalorder %s14, 0
    %p103 = por %p101, %p102
    %p104 = scmp.ne.s32.totalorder %s90, %s91
    %p105 = scmp.eq.s32.totalorder %s15, 1
    %p106 = por %p104, %p105
    %p108 = scmp.ne.s32.totalorder %s91, %s107
    %p109 = scmp.eq.s32.totalorder %s15, 0
    %p110 = por %p108, %p109
    %p111 = scmp.le.s32.totalorder 1, %s9
    %p112 = scmp.lt.s32.totalorder %s9, 3
    %p113 = pnand %p111, %p112
    %p114 = pneg %p113
    // Predicated region
    $region9: #{net_forward.7} parent=5 // pred_check
      _
    $region10: #{net_forward.7} parent=5 // pred_check_branch
      %116 = sbr.rel (%p113) target = $region12
    $region11: #{net_forward.7} parent=5 // pred_region
      %s117 = ssub.s32 %s9, 1
      // Predicated region
      $region13: #{net_forward.7} parent=11 // pred_check
        %p118 = pneg %p56
      $region14: #{net_forward.7} parent=11 // pred_check_branch
        %120 = sbr.rel (%p118) target = $region16
      $region15: #{net_forward.7} parent=11 // pred_region
        _
      $region16: #{net_forward.7} parent=11 // pred_fallthru
        _
      // Predicated region
      $region17: #{net_forward.7} parent=11 // pred_check
        %p121 = pneg %p77
      $region18: #{net_forward.7} parent=11 // pred_check_branch
        %123 = sbr.rel (%p121) target = $region20
      $region19: #{net_forward.7} parent=11 // pred_region
        _
      $region20: #{net_forward.7} parent=11 // pred_fallthru
        _
    $region12: #{net_forward.7} parent=5 // pred_fallthru
      _
    %p124 = scmp.lt.s32.totalorder %s9, 2
    // Predicated region
    $region21: #{net_forward.7} parent=5 // pred_check
      %p125 = pneg %p124
    $region22: #{net_forward.7} parent=5 // pred_check_branch
      %127 = sbr.rel (%p125) target = $region24
    $region23: #{net_forward.7} parent=5 // pred_region
      // Predicated region
      $region25: #{net_forward.7} parent=23 // pred_check
        %p128 = pneg %p29
      $region26: #{net_forward.7} parent=23 // pred_check_branch
        %130 = sbr.rel (%p128) target = $region28
      $region27: #{net_forward.7} parent=23 // pred_region
        %s131 = smul.u32 72, %s9
        %p132 = scmp.lt.s32.totalorder %s131, 143
        %s133 = scalar_select %p132, %s131, 143
        %s134 = smul.addr %s133, 4
        %s135 = scalar_lea.vmem %s0, %s134
        %s136 = smul.u32 72, %s9
      $region28: #{net_forward.7} parent=23 // pred_fallthru
        _
    $region24: #{net_forward.7} parent=5 // pred_fallthru
      _
    %p137 = scmp.le.s32.totalorder 1, %s9
    %p138 = scmp.lt.s32.totalorder %s9, 3
    %p139 = pnand %p137, %p138
    %p140 = pneg %p139
    // Predicated region
    $region29: #{net_forward.7} parent=5 // pred_check
      _
    $region30: #{net_forward.7} parent=5 // pred_check_branch
      %142 = sbr.rel (%p139) target = $region32
    $region31: #{net_forward.7} parent=5 // pred_region
      %s143 = ssub.s32 %s9, 1
      %s144 = smul.u32 72, %s14
      %p145 = scmp.lt.s32.totalorder %s144, 143
      %s146 = scalar_select %p145, %s144, 143
      %s147 = smul.addr %s146, 4
      %s148 = scalar_lea.vmem %s0, %s147
      %p149 = pneg %p35
      %p150 = pneg %p32
      %p151 = pneg %p56
      %p152 = pneg %p53
      %p153 = pneg %p77
      %p154 = pneg %p74
      %p155 = pneg %p103
      %p156 = pneg %p100
      %s157 = smul.u32 72, %s14
      %p158 = scmp.lt.s32.totalorder %s157, 143
      %s159 = scalar_select %p158, %s157, 143
      %s160 = smul.addr %s159, 4
      %s161 = scalar_lea.vmem %s3, %s160
      %s162 = smul.u32 72, %s14
      %p163 = scmp.lt.s32.totalorder %s162, 143
      %s164 = scalar_select %p163, %s162, 143
      %s165 = smul.addr %s164, 4
      %s166 = scalar_lea.vmem %s0, %s165
      %s167 = smul.u32 72, %s14
      %s168 = smul.u32 72, %s14
      %p169 = scmp.lt.s32.totalorder %s168, 143
      %s170 = scalar_select %p169, %s168, 143
      %s171 = smul.addr %s170, 4
      %s172 = scalar_lea.vmem %s3, %s171
      %s173 = smul.u32 72, %s14
      %v175 = vld [vmem:[%s166] sm:$0xf]
      %v176 = vld [vmem:[%s166 + $0x4] sm:$0xf]
      %v177 = vld [vmem:[%s166 + $0x8] sm:$0xf]
      %v178 = vld [vmem:[%s166 + $0xc] sm:$0xf]
      %v179 = vld [vmem:[%s166 + $0x10] sm:$0xf]
      %v180 = vld [vmem:[%s166 + $0x14] sm:$0xf]
      %v181 = vld [vmem:[%s166 + $0x18] sm:$0xf]
      %v182 = vld [vmem:[%s166 + $0x1c] sm:$0xf]
      %v183 = vld [vmem:[%s166 + $0x20] sm:$0xf]
      %v184 = vld [vmem:[%s166 + $0x24] sm:$0xf]
      %v185 = vld [vmem:[%s166 + $0x28] sm:$0xf]
      %v186 = vld [vmem:[%s166 + $0x2c] sm:$0xf]
      %v187 = vld [vmem:[%s166 + $0x30] sm:$0xf]
      %v188 = vld [vmem:[%s166 + $0x34] sm:$0xf]
      %v189 = vld [vmem:[%s166 + $0x38] sm:$0xf]
      %v190 = vld [vmem:[%s166 + $0x3c] sm:$0xf]
      %v191 = vld [vmem:[%s166 + $0x40] sm:$0xf]
      %v192 = vld [vmem:[%s166 + $0x44] sm:$0xf]
      %v193 = vld [vmem:[%s166 + $0x48] sm:$0xf]
      %v194 = vld [vmem:[%s166 + $0x4c] sm:$0xf]
      %v195 = vld [vmem:[%s166 + $0x50] sm:$0xf]
      %v196 = vld [vmem:[%s166 + $0x54] sm:$0xf]
      %v197 = vld [vmem:[%s166 + $0x58] sm:$0xf]
      %v198 = vld [vmem:[%s166 + $0x5c] sm:$0xf]
      %v199 = vld [vmem:[%s166 + $0x60] sm:$0xf]
      %v200 = vld [vmem:[%s166 + $0x64] sm:$0xf]
      %v201 = vld [vmem:[%s166 + $0x68] sm:$0xf]
      %v202 = vld [vmem:[%s166 + $0x6c] sm:$0xf]
      %v203 = vld [vmem:[%s166 + $0x70] sm:$0xf]
      %v204 = vld [vmem:[%s166 + $0x74] sm:$0xf]
      %v205 = vld [vmem:[%s166 + $0x78] sm:$0xf]
      %v206 = vld [vmem:[%s166 + $0x7c] sm:$0xf]
      %v207 = vld [vmem:[%s166 + $0x80] sm:$0xf]
      %v208 = vld [vmem:[%s166 + $0x84] sm:$0xf]
      %v209 = vld [vmem:[%s166 + $0x88] sm:$0xf]
      %v210 = vld [vmem:[%s166 + $0x8c] sm:$0xf]
      %v211 = vld [vmem:[%s166 + $0x90] sm:$0xf]
      %v212 = vld [vmem:[%s166 + $0x94] sm:$0xf]
      %v213 = vld [vmem:[%s166 + $0x98] sm:$0xf]
      %v214 = vld [vmem:[%s166 + $0x9c] sm:$0xf]
      %v215 = vld [vmem:[%s166 + $0xa0] sm:$0xf]
      %v216 = vld [vmem:[%s166 + $0xa4] sm:$0xf]
      %v217 = vld [vmem:[%s166 + $0xa8] sm:$0xf]
      %v218 = vld [vmem:[%s166 + $0xac] sm:$0xf]
      %v219 = vld [vmem:[%s166 + $0xb0] sm:$0xf]
      %v220 = vld [vmem:[%s166 + $0xb4] sm:$0xf]
      %v221 = vld [vmem:[%s166 + $0xb8] sm:$0xf]
      %v222 = vld [vmem:[%s166 + $0xbc] sm:$0xf]
      %v223 = vld [vmem:[%s166 + $0xc0] sm:$0xf]
      %v224 = vld [vmem:[%s166 + $0xc4] sm:$0xf]
      %v225 = vld [vmem:[%s166 + $0xc8] sm:$0xf]
      %v226 = vld [vmem:[%s166 + $0xcc] sm:$0xf]
      %v227 = vld [vmem:[%s166 + $0xd0] sm:$0xf]
      %v228 = vld [vmem:[%s166 + $0xd4] sm:$0xf]
      %v229 = vld [vmem:[%s166 + $0xd8] sm:$0xf]
      %v230 = vld [vmem:[%s166 + $0xdc] sm:$0xf]
      %v231 = vld [vmem:[%s166 + $0xe0] sm:$0xf]
      %v232 = vld [vmem:[%s166 + $0xe4] sm:$0xf]
      %v233 = vld [vmem:[%s166 + $0xe8] sm:$0xf]
      %v234 = vld [vmem:[%s166 + $0xec] sm:$0xf]
      %v235 = vld [vmem:[%s166 + $0xf0] sm:$0xf]
      %v236 = vld [vmem:[%s166 + $0xf4] sm:$0xf]
      %v237 = vld [vmem:[%s166 + $0xf8] sm:$0xf]
      %v238 = vld [vmem:[%s166 + $0xfc] sm:$0xf]
      %v239 = vld [vmem:[%s166 + $0x100] sm:$0xf]
      %v240 = vld [vmem:[%s166 + $0x104] sm:$0xf]
      %v241 = vld [vmem:[%s166 + $0x108] sm:$0xf]
      %v242 = vld [vmem:[%s166 + $0x10c] sm:$0xf]
      %v243 = vld [vmem:[%s166 + $0x110] sm:$0xf]
      %v244 = vld [vmem:[%s166 + $0x114] sm:$0xf]
      %v245 = vld [vmem:[%s166 + $0x118] sm:$0xf]
      %v246 = vld [vmem:[%s166 + $0x11c] sm:$0xf]
      %v247 = vld [vmem:[%s1] sm:$0xf]
      %v248 = vld [vmem:[%s1 + $0x4] sm:$0xf]
      %v249 = vld [vmem:[%s1 + $0x8] sm:$0xf]
      %v250 = vld [vmem:[%s1 + $0xc] sm:$0x1]
      %v251 = vld [vmem:[%s2] sm:$0x1]
      %v253 = vlaneseq
      %v254 = vshrl.u32 %v253, 7
      %v255 = vsub.s32 0, %v254
      %v256 = vrot.slane %v251, %v255
      %v330 = vunpack.c.l.b16 %v175
      %v331 = vunpack.c.l.b16 %v176
      %v332 = vunpack.c.l.b16 %v177
      %v333 = vunpack.c.l.b16 %v178
      %v334 = vunpack.c.l.b16 %v179
      %v335 = vunpack.c.l.b16 %v180
      %v336 = vunpack.c.l.b16 %v181
      %v337 = vunpack.c.l.b16 %v182
      %v338 = vunpack.c.l.b16 %v183
      %v339 = vunpack.c.l.b16 %v184
      %v340 = vunpack.c.l.b16 %v185
      %v341 = vunpack.c.l.b16 %v186
      %v342 = vunpack.c.l.b16 %v187
      %v343 = vunpack.c.l.b16 %v188
      %v344 = vunpack.c.l.b16 %v189
      %v345 = vunpack.c.l.b16 %v190
      %v346 = vunpack.c.l.b16 %v191
      %v347 = vunpack.c.l.b16 %v192
      %v348 = vunpack.c.l.b16 %v193
      %v349 = vunpack.c.l.b16 %v194
      %v350 = vunpack.c.l.b16 %v195
      %v351 = vunpack.c.l.b16 %v196
      %v352 = vunpack.c.l.b16 %v197
      %v353 = vunpack.c.l.b16 %v198
      %v354 = vunpack.c.l.b16 %v199
      %v355 = vunpack.c.l.b16 %v200
      %v356 = vunpack.c.l.b16 %v201
      %v357 = vunpack.c.l.b16 %v202
      %v358 = vunpack.c.l.b16 %v203
      %v359 = vunpack.c.l.b16 %v204
      %v360 = vunpack.c.l.b16 %v205
      %v361 = vunpack.c.l.b16 %v206
      %v362 = vunpack.c.l.b16 %v207
      %v363 = vunpack.c.l.b16 %v208
      %v364 = vunpack.c.l.b16 %v209
      %v365 = vunpack.c.l.b16 %v210
      %v366 = vunpack.c.l.b16 %v211
      %v367 = vunpack.c.l.b16 %v212
      %v368 = vunpack.c.l.b16 %v213
      %v369 = vunpack.c.l.b16 %v214
      %v370 = vunpack.c.l.b16 %v215
      %v371 = vunpack.c.l.b16 %v216
      %v372 = vunpack.c.l.b16 %v217
      %v373 = vunpack.c.l.b16 %v218
      %v374 = vunpack.c.l.b16 %v219
      %v375 = vunpack.c.l.b16 %v220
      %v376 = vunpack.c.l.b16 %v221
      %v377 = vunpack.c.l.b16 %v222
      %v378 = vunpack.c.l.b16 %v223
      %v379 = vunpack.c.l.b16 %v224
      %v380 = vunpack.c.l.b16 %v225
      %v381 = vunpack.c.l.b16 %v226
      %v382 = vunpack.c.l.b16 %v227
      %v383 = vunpack.c.l.b16 %v228
      %v384 = vunpack.c.l.b16 %v229
      %v385 = vunpack.c.l.b16 %v230
      %v386 = vunpack.c.l.b16 %v231
      %v387 = vunpack.c.l.b16 %v232
      %v388 = vunpack.c.l.b16 %v233
      %v389 = vunpack.c.l.b16 %v234
      %v390 = vunpack.c.l.b16 %v235
      %v391 = vunpack.c.l.b16 %v236
      %v392 = vunpack.c.l.b16 %v237
      %v393 = vunpack.c.l.b16 %v238
      %v394 = vunpack.c.l.b16 %v239
      %v395 = vunpack.c.l.b16 %v240
      %v396 = vunpack.c.l.b16 %v241
      %v397 = vunpack.c.l.b16 %v242
      %v398 = vunpack.c.l.b16 %v243
      %v399 = vunpack.c.l.b16 %v244
      %v400 = vunpack.c.l.b16 %v245
      %v401 = vunpack.c.l.b16 %v246
      %v402 = vpack.c.b16 %v331, %v330
      %v403 = vpack.c.b16 %v333, %v332
      %v404 = vpack.c.b16 %v335, %v334
      %v405 = vpack.c.b16 %v337, %v336
      %v406 = vpack.c.b16 %v339, %v338
      %v407 = vpack.c.b16 %v341, %v340
      %v408 = vpack.c.b16 %v343, %v342
      %v409 = vpack.c.b16 %v345, %v344
      %v410 = vpack.c.b16 %v347, %v346
      %v411 = vpack.c.b16 %v349, %v348
      %v412 = vpack.c.b16 %v351, %v350
      %v413 = vpack.c.b16 %v353, %v352
      %v414 = vpack.c.b16 %v355, %v354
      %v415 = vpack.c.b16 %v357, %v356
      %v416 = vpack.c.b16 %v359, %v358
      %v417 = vpack.c.b16 %v361, %v360
      %v418 = vpack.c.b16 %v363, %v362
      %v419 = vpack.c.b16 %v365, %v364
      %v420 = vpack.c.b16 %v367, %v366
      %v421 = vpack.c.b16 %v369, %v368
      %v422 = vpack.c.b16 %v371, %v370
      %v423 = vpack.c.b16 %v373, %v372
      %v424 = vpack.c.b16 %v375, %v374
      %v425 = vpack.c.b16 %v377, %v376
      %v426 = vpack.c.b16 %v379, %v378
      %v427 = vpack.c.b16 %v381, %v380
      %v428 = vpack.c.b16 %v383, %v382
      %v429 = vpack.c.b16 %v385, %v384
      %v430 = vpack.c.b16 %v387, %v386
      %v431 = vpack.c.b16 %v389, %v388
      %v432 = vpack.c.b16 %v391, %v390
      %v433 = vpack.c.b16 %v393, %v392
      %v434 = vpack.c.b16 %v395, %v394
      %v435 = vpack.c.b16 %v397, %v396
      %v436 = vpack.c.b16 %v399, %v398
      %v437 = vpack.c.b16 %v401, %v400
      %v442 = vunpack.c.l.b16 %v247
      %v443 = vunpack.c.l.b16 %v248
      %v444 = vunpack.c.l.b16 %v249
      %v445 = vunpack.c.l.b16 %v250
      %v446 = vpack.c.b16 %v443, %v442
      %v447 = vpack.c.b16 %v445, %v444
      %vm449 = vcmask 203776
      %v451 = vsel %vm449, %v402, 0
      %v454 = vsel %vm449, %v403, 0
      %v457 = vsel %vm449, %v404, 0
      %v460 = vsel %vm449, %v405, 0
      %v463 = vsel %vm449, %v406, 0
      %v466 = vsel %vm449, %v407, 0
      %v469 = vsel %vm449, %v408, 0
      %v472 = vsel %vm449, %v409, 0
      %v475 = vsel %vm449, %v410, 0
      %v478 = vsel %vm449, %v411, 0
      %v481 = vsel %vm449, %v412, 0
      %v484 = vsel %vm449, %v413, 0
      %v487 = vsel %vm449, %v414, 0
      %v490 = vsel %vm449, %v415, 0
      %v493 = vsel %vm449, %v416, 0
      %v496 = vsel %vm449, %v417, 0
      %v499 = vsel %vm449, %v418, 0
      %v502 = vsel %vm449, %v419, 0
      %v505 = vsel %vm449, %v420, 0
      %v508 = vsel %vm449, %v421, 0
      %v511 = vsel %vm449, %v422, 0
      %v514 = vsel %vm449, %v423, 0
      %v517 = vsel %vm449, %v424, 0
      %v520 = vsel %vm449, %v425, 0
      %v523 = vsel %vm449, %v426, 0
      %v526 = vsel %vm449, %v427, 0
      %v529 = vsel %vm449, %v428, 0
      %v532 = vsel %vm449, %v429, 0
      %v535 = vsel %vm449, %v430, 0
      %v538 = vsel %vm449, %v431, 0
      %v541 = vsel %vm449, %v432, 0
      %v544 = vsel %vm449, %v433, 0
      %v547 = vsel %vm449, %v434, 0
      %v550 = vsel %vm449, %v435, 0
      %v553 = vsel %vm449, %v436, 0
      %v556 = vsel %vm449, %v437, 0
      %vm558 = vcmask 1043456
      %vm559 = vcmask 1044480
      %v560 = vsel %vm558, 4294967295, 65535
      %v561 = vsel %vm559, %v560, 0
      %v563 = vand.u32 %v447, %v561
      %565 = vmatprep.subr.bf16.mxu0 0
      %566 = vmatpush1.bf16.msra.mxu0 0
      %567 = vmatprep.subr.bf16.mxu0 0
      %568 = vmatpush1.bf16.msra.mxu0 0
      %569 = vmatprep.subr.bf16.mxu0 0
      %570 = vmatpush1.bf16.msra.mxu0 0
      %571 = vmatprep.subr.bf16.mxu0 0
      %572 = vmatpush1.bf16.msra.mxu0 0
      %573 = vmatprep.subr.bf16.mxu0 0
      %574 = vmatpush1.bf16.msra.mxu0 0
      %575 = vmatprep.subr.bf16.mxu0 0
      %576 = vmatpush1.bf16.msra.mxu0 0
      %577 = vmatprep.subr.bf16.mxu0 0
      %578 = vmatpush1.bf16.msra.mxu0 %v563
      %579 = vmatprep.subr.bf16.mxu0 0
      %580 = vmatpush1.bf16.msra.mxu0 %v446
      %581 = vmatprep.subr.bf16.mxu0 0
      %582 = vmatpush2.bf16.msra.mxu0 0
      %583 = vmatprep.subr.bf16.mxu0 0
      %584 = vmatpush2.bf16.msra.mxu0 0
      %585 = vmatprep.subr.bf16.mxu0 0
      %586 = vmatpush2.bf16.msra.mxu0 0
      %587 = vmatprep.subr.bf16.mxu0 0
      %588 = vmatpush2.bf16.msra.mxu0 0
      %589 = vmatprep.subr.bf16.mxu0 0
      %590 = vmatpush2.bf16.msra.mxu0 0
      %591 = vmatprep.subr.bf16.mxu0 0
      %592 = vmatpush2.bf16.msra.mxu0 0
      %593 = vmatprep.subr.bf16.mxu0 0
      %594 = vmatpush2.bf16.msra.mxu0 0
      %595 = vmatprep.subr.bf16.mxu0 0
      %596 = vmatpush2.bf16.msra.mxu0 0
      %597 = vmatprep.mubr.bf16.mxu0 0
      %598 = vmatmul.mubr.bf16.gmra.mxu0 %v451
      %v599 = vpop.f32.mrf.mxu0
      %v600 = vadd.f32 %v256, %v599
      %v601 = vpop.f32.mrf.mxu0
      %v602 = vpop.f32.mrf.mxu0
      %v603 = vadd.f32 %v256, %v602
      %v604 = vpop.f32.mrf.mxu0
      %605 = vmatprep.mubr.bf16.mxu0 0
      %606 = vmatmul.mubr.bf16.gmra.mxu0 %v454
      %v607 = vpop.f32.mrf.mxu0
      %v608 = vadd.f32 %v256, %v607
      %v609 = vpop.f32.mrf.mxu0
      %v610 = vpop.f32.mrf.mxu0
      %v611 = vadd.f32 %v256, %v610
      %v612 = vpop.f32.mrf.mxu0
      %613 = vmatprep.mubr.bf16.mxu0 0
      %614 = vmatmul.mubr.bf16.gmra.mxu0 %v457
      %v615 = vpop.f32.mrf.mxu0
      %v616 = vadd.f32 %v256, %v615
      %v617 = vpop.f32.mrf.mxu0
      %v618 = vpop.f32.mrf.mxu0
      %v619 = vadd.f32 %v256, %v618
      %v620 = vpop.f32.mrf.mxu0
      %621 = vmatprep.mubr.bf16.mxu0 0
      %622 = vmatmul.mubr.bf16.gmra.mxu0 %v460
      %v623 = vpop.f32.mrf.mxu0
      %v624 = vadd.f32 %v256, %v623
      %v625 = vpop.f32.mrf.mxu0
      %v626 = vpop.f32.mrf.mxu0
      %v627 = vadd.f32 %v256, %v626
      %v628 = vpop.f32.mrf.mxu0
      %629 = vmatprep.mubr.bf16.mxu0 0
      %630 = vmatmul.mubr.bf16.gmra.mxu0 %v463
      %v631 = vpop.f32.mrf.mxu0
      %v632 = vadd.f32 %v256, %v631
      %v633 = vpop.f32.mrf.mxu0
      %v634 = vpop.f32.mrf.mxu0
      %v635 = vadd.f32 %v256, %v634
      %v636 = vpop.f32.mrf.mxu0
      %637 = vmatprep.mubr.bf16.mxu0 0
      %638 = vmatmul.mubr.bf16.gmra.mxu0 %v466
      %v639 = vpop.f32.mrf.mxu0
      %v640 = vadd.f32 %v256, %v639
      %v641 = vpop.f32.mrf.mxu0
      %v642 = vpop.f32.mrf.mxu0
      %v643 = vadd.f32 %v256, %v642
      %v644 = vpop.f32.mrf.mxu0
      %645 = vmatprep.mubr.bf16.mxu0 0
      %646 = vmatmul.mubr.bf16.gmra.mxu0 %v469
      %v647 = vpop.f32.mrf.mxu0
      %v648 = vadd.f32 %v256, %v647
      %v649 = vpop.f32.mrf.mxu0
      %v650 = vpop.f32.mrf.mxu0
      %v651 = vadd.f32 %v256, %v650
      %v652 = vpop.f32.mrf.mxu0
      %653 = vmatprep.mubr.bf16.mxu0 0
      %654 = vmatmul.mubr.bf16.gmra.mxu0 %v472
      %v655 = vpop.f32.mrf.mxu0
      %v656 = vadd.f32 %v256, %v655
      %v657 = vpop.f32.mrf.mxu0
      %v658 = vpop.f32.mrf.mxu0
      %v659 = vadd.f32 %v256, %v658
      %v660 = vpop.f32.mrf.mxu0
      %661 = vmatprep.mubr.bf16.mxu0 0
      %662 = vmatmul.mubr.bf16.gmra.mxu0 %v475
      %v663 = vpop.f32.mrf.mxu0
      %v664 = vadd.f32 %v256, %v663
      %v665 = vpop.f32.mrf.mxu0
      %v666 = vpop.f32.mrf.mxu0
      %v667 = vadd.f32 %v256, %v666
      %v668 = vpop.f32.mrf.mxu0
      %669 = vmatprep.mubr.bf16.mxu0 0
      %670 = vmatmul.mubr.bf16.gmra.mxu0 %v478
      %v671 = vpop.f32.mrf.mxu0
      %v672 = vadd.f32 %v256, %v671
      %v673 = vpop.f32.mrf.mxu0
      %v674 = vpop.f32.mrf.mxu0
      %v675 = vadd.f32 %v256, %v674
      %v676 = vpop.f32.mrf.mxu0
      %677 = vmatprep.mubr.bf16.mxu0 0
      %678 = vmatmul.mubr.bf16.gmra.mxu0 %v481
      %v679 = vpop.f32.mrf.mxu0
      %v680 = vadd.f32 %v256, %v679
      %v681 = vpop.f32.mrf.mxu0
      %v682 = vpop.f32.mrf.mxu0
      %v683 = vadd.f32 %v256, %v682
      %v684 = vpop.f32.mrf.mxu0
      %685 = vmatprep.mubr.bf16.mxu0 0
      %686 = vmatmul.mubr.bf16.gmra.mxu0 %v484
      %v687 = vpop.f32.mrf.mxu0
      %v688 = vadd.f32 %v256, %v687
      %v689 = vpop.f32.mrf.mxu0
      %v690 = vpop.f32.mrf.mxu0
      %v691 = vadd.f32 %v256, %v690
      %v692 = vpop.f32.mrf.mxu0
      %693 = vmatprep.mubr.bf16.mxu0 0
      %694 = vmatmul.mubr.bf16.gmra.mxu0 %v487
      %v695 = vpop.f32.mrf.mxu0
      %v696 = vadd.f32 %v256, %v695
      %v697 = vpop.f32.mrf.mxu0
      %v698 = vpop.f32.mrf.mxu0
      %v699 = vadd.f32 %v256, %v698
      %v700 = vpop.f32.mrf.mxu0
      %701 = vmatprep.mubr.bf16.mxu0 0
      %702 = vmatmul.mubr.bf16.gmra.mxu0 %v490
      %v703 = vpop.f32.mrf.mxu0
      %v704 = vadd.f32 %v256, %v703
      %v705 = vpop.f32.mrf.mxu0
      %v706 = vpop.f32.mrf.mxu0
      %v707 = vadd.f32 %v256, %v706
      %v708 = vpop.f32.mrf.mxu0
      %709 = vmatprep.mubr.bf16.mxu0 0
      %710 = vmatmul.mubr.bf16.gmra.mxu0 %v493
      %v711 = vpop.f32.mrf.mxu0
      %v712 = vadd.f32 %v256, %v711
      %v713 = vpop.f32.mrf.mxu0
      %v714 = vpop.f32.mrf.mxu0
      %v715 = vadd.f32 %v256, %v714
      %v716 = vpop.f32.mrf.mxu0
      %717 = vmatprep.mubr.bf16.mxu0 0
      %718 = vmatmul.mubr.bf16.gmra.mxu0 %v496
      %v719 = vpop.f32.mrf.mxu0
      %v720 = vadd.f32 %v256, %v719
      %v721 = vpop.f32.mrf.mxu0
      %v722 = vpop.f32.mrf.mxu0
      %v723 = vadd.f32 %v256, %v722
      %v724 = vpop.f32.mrf.mxu0
      %725 = vmatprep.mubr.bf16.mxu0 0
      %726 = vmatmul.mubr.bf16.gmra.mxu0 %v499
      %v727 = vpop.f32.mrf.mxu0
      %v728 = vadd.f32 %v256, %v727
      %v729 = vpop.f32.mrf.mxu0
      %v730 = vpop.f32.mrf.mxu0
      %v731 = vadd.f32 %v256, %v730
      %v732 = vpop.f32.mrf.mxu0
      %733 = vmatprep.mubr.bf16.mxu0 0
      %734 = vmatmul.mubr.bf16.gmra.mxu0 %v502
      %v735 = vpop.f32.mrf.mxu0
      %v736 = vadd.f32 %v256, %v735
      %v737 = vpop.f32.mrf.mxu0
      %v738 = vpop.f32.mrf.mxu0
      %v739 = vadd.f32 %v256, %v738
      %v740 = vpop.f32.mrf.mxu0
      %741 = vmatprep.mubr.bf16.mxu0 0
      %742 = vmatmul.mubr.bf16.gmra.mxu0 %v505
      %v743 = vpop.f32.mrf.mxu0
      %v744 = vadd.f32 %v256, %v743
      %v745 = vpop.f32.mrf.mxu0
      %v746 = vpop.f32.mrf.mxu0
      %v747 = vadd.f32 %v256, %v746
      %v748 = vpop.f32.mrf.mxu0
      %749 = vmatprep.mubr.bf16.mxu0 0
      %750 = vmatmul.mubr.bf16.gmra.mxu0 %v508
      %v751 = vpop.f32.mrf.mxu0
      %v752 = vadd.f32 %v256, %v751
      %v753 = vpop.f32.mrf.mxu0
      %v754 = vpop.f32.mrf.mxu0
      %v755 = vadd.f32 %v256, %v754
      %v756 = vpop.f32.mrf.mxu0
      %757 = vmatprep.mubr.bf16.mxu0 0
      %758 = vmatmul.mubr.bf16.gmra.mxu0 %v511
      %v759 = vpop.f32.mrf.mxu0
      %v760 = vadd.f32 %v256, %v759
      %v761 = vpop.f32.mrf.mxu0
      %v762 = vpop.f32.mrf.mxu0
      %v763 = vadd.f32 %v256, %v762
      %v764 = vpop.f32.mrf.mxu0
      %765 = vmatprep.mubr.bf16.mxu0 0
      %766 = vmatmul.mubr.bf16.gmra.mxu0 %v514
      %v767 = vpop.f32.mrf.mxu0
      %v768 = vadd.f32 %v256, %v767
      %v769 = vpop.f32.mrf.mxu0
      %v770 = vpop.f32.mrf.mxu0
      %v771 = vadd.f32 %v256, %v770
      %v772 = vpop.f32.mrf.mxu0
      %773 = vmatprep.mubr.bf16.mxu0 0
      %774 = vmatmul.mubr.bf16.gmra.mxu0 %v517
      %v775 = vpop.f32.mrf.mxu0
      %v776 = vadd.f32 %v256, %v775
      %v777 = vpop.f32.mrf.mxu0
      %v778 = vpop.f32.mrf.mxu0
      %v779 = vadd.f32 %v256, %v778
      %v780 = vpop.f32.mrf.mxu0
      %781 = vmatprep.mubr.bf16.mxu0 0
      %782 = vmatmul.mubr.bf16.gmra.mxu0 %v520
      %v783 = vpop.f32.mrf.mxu0
      %v784 = vadd.f32 %v256, %v783
      %v785 = vpop.f32.mrf.mxu0
      %v786 = vpop.f32.mrf.mxu0
      %v787 = vadd.f32 %v256, %v786
      %v788 = vpop.f32.mrf.mxu0
      %789 = vmatprep.mubr.bf16.mxu0 0
      %790 = vmatmul.mubr.bf16.gmra.mxu0 %v523
      %v791 = vpop.f32.mrf.mxu0
      %v792 = vadd.f32 %v256, %v791
      %v793 = vpop.f32.mrf.mxu0
      %v794 = vpop.f32.mrf.mxu0
      %v795 = vadd.f32 %v256, %v794
      %v796 = vpop.f32.mrf.mxu0
      %797 = vmatprep.mubr.bf16.mxu0 0
      %798 = vmatmul.mubr.bf16.gmra.mxu0 %v526
      %v799 = vpop.f32.mrf.mxu0
      %v800 = vadd.f32 %v256, %v799
      %v801 = vpop.f32.mrf.mxu0
      %v802 = vpop.f32.mrf.mxu0
      %v803 = vadd.f32 %v256, %v802
      %v804 = vpop.f32.mrf.mxu0
      %805 = vmatprep.mubr.bf16.mxu0 0
      %806 = vmatmul.mubr.bf16.gmra.mxu0 %v529
      %v807 = vpop.f32.mrf.mxu0
      %v808 = vadd.f32 %v256, %v807
      %v809 = vpop.f32.mrf.mxu0
      %v810 = vpop.f32.mrf.mxu0
      %v811 = vadd.f32 %v256, %v810
      %v812 = vpop.f32.mrf.mxu0
      %813 = vmatprep.mubr.bf16.mxu0 0
      %814 = vmatmul.mubr.bf16.gmra.mxu0 %v532
      %v815 = vpop.f32.mrf.mxu0
      %v816 = vadd.f32 %v256, %v815
      %v817 = vpop.f32.mrf.mxu0
      %v818 = vpop.f32.mrf.mxu0
      %v819 = vadd.f32 %v256, %v818
      %v820 = vpop.f32.mrf.mxu0
      %821 = vmatprep.mubr.bf16.mxu0 0
      %822 = vmatmul.mubr.bf16.gmra.mxu0 %v535
      %v823 = vpop.f32.mrf.mxu0
      %v824 = vadd.f32 %v256, %v823
      %v825 = vpop.f32.mrf.mxu0
      %v826 = vpop.f32.mrf.mxu0
      %v827 = vadd.f32 %v256, %v826
      %v828 = vpop.f32.mrf.mxu0
      %829 = vmatprep.mubr.bf16.mxu0 0
      %830 = vmatmul.mubr.bf16.gmra.mxu0 %v538
      %v831 = vpop.f32.mrf.mxu0
      %v832 = vadd.f32 %v256, %v831
      %v833 = vpop.f32.mrf.mxu0
      %v834 = vpop.f32.mrf.mxu0
      %v835 = vadd.f32 %v256, %v834
      %v836 = vpop.f32.mrf.mxu0
      %837 = vmatprep.mubr.bf16.mxu0 0
      %838 = vmatmul.mubr.bf16.gmra.mxu0 %v541
      %v839 = vpop.f32.mrf.mxu0
      %v840 = vadd.f32 %v256, %v839
      %v841 = vpop.f32.mrf.mxu0
      %v842 = vpop.f32.mrf.mxu0
      %v843 = vadd.f32 %v256, %v842
      %v844 = vpop.f32.mrf.mxu0
      %845 = vmatprep.mubr.bf16.mxu0 0
      %846 = vmatmul.mubr.bf16.gmra.mxu0 %v544
      %v847 = vpop.f32.mrf.mxu0
      %v848 = vadd.f32 %v256, %v847
      %v849 = vpop.f32.mrf.mxu0
      %v850 = vpop.f32.mrf.mxu0
      %v851 = vadd.f32 %v256, %v850
      %v852 = vpop.f32.mrf.mxu0
      %853 = vmatprep.mubr.bf16.mxu0 0
      %854 = vmatmul.mubr.bf16.gmra.mxu0 %v547
      %v855 = vpop.f32.mrf.mxu0
      %v856 = vadd.f32 %v256, %v855
      %v857 = vpop.f32.mrf.mxu0
      %v858 = vpop.f32.mrf.mxu0
      %v859 = vadd.f32 %v256, %v858
      %v860 = vpop.f32.mrf.mxu0
      %861 = vmatprep.mubr.bf16.mxu0 0
      %862 = vmatmul.mubr.bf16.gmra.mxu0 %v550
      %v863 = vpop.f32.mrf.mxu0
      %v864 = vadd.f32 %v256, %v863
      %v865 = vpop.f32.mrf.mxu0
      %v866 = vpop.f32.mrf.mxu0
      %v867 = vadd.f32 %v256, %v866
      %v868 = vpop.f32.mrf.mxu0
      %869 = vmatprep.mubr.bf16.mxu0 0
      %870 = vmatmul.mubr.bf16.gmra.mxu0 %v553
      %v871 = vpop.f32.mrf.mxu0
      %v872 = vadd.f32 %v256, %v871
      %v873 = vpop.f32.mrf.mxu0
      %v874 = vpop.f32.mrf.mxu0
      %v875 = vadd.f32 %v256, %v874
      %v876 = vpop.f32.mrf.mxu0
      %877 = vmatprep.mubr.bf16.mxu0 0
      %878 = vmatmul.mubr.bf16.gmra.mxu0 %v556
      %v879 = vpop.f32.mrf.mxu0
      %v880 = vadd.f32 %v256, %v879
      %v881 = vpop.f32.mrf.mxu0
      %v882 = vpop.f32.mrf.mxu0
      %v883 = vadd.f32 %v256, %v882
      %v884 = vpop.f32.mrf.mxu0
      %885 = vdwg.mxu0
      %v886 = vmax.f32 %v600, 0.0
      %v887 = vmax.f32 %v603, 0.0
      %v888 = vmax.f32 %v608, 0.0
      %v889 = vmax.f32 %v611, 0.0
      %v890 = vmax.f32 %v616, 0.0
      %v891 = vmax.f32 %v619, 0.0
      %v892 = vmax.f32 %v624, 0.0
      %v893 = vmax.f32 %v627, 0.0
      %v894 = vmax.f32 %v632, 0.0
      %v895 = vmax.f32 %v635, 0.0
      %v896 = vmax.f32 %v640, 0.0
      %v897 = vmax.f32 %v643, 0.0
      %v898 = vmax.f32 %v648, 0.0
      %v899 = vmax.f32 %v651, 0.0
      %v900 = vmax.f32 %v656, 0.0
      %v901 = vmax.f32 %v659, 0.0
      %v902 = vmax.f32 %v664, 0.0
      %v903 = vmax.f32 %v667, 0.0
      %v904 = vmax.f32 %v672, 0.0
      %v905 = vmax.f32 %v675, 0.0
      %v906 = vmax.f32 %v680, 0.0
      %v907 = vmax.f32 %v683, 0.0
      %v908 = vmax.f32 %v688, 0.0
      %v909 = vmax.f32 %v691, 0.0
      %v910 = vmax.f32 %v696, 0.0
      %v911 = vmax.f32 %v699, 0.0
      %v912 = vmax.f32 %v704, 0.0
      %v913 = vmax.f32 %v707, 0.0
      %v914 = vmax.f32 %v712, 0.0
      %v915 = vmax.f32 %v715, 0.0
      %v916 = vmax.f32 %v720, 0.0
      %v917 = vmax.f32 %v723, 0.0
      %v918 = vmax.f32 %v728, 0.0
      %v919 = vmax.f32 %v731, 0.0
      %v920 = vmax.f32 %v736, 0.0
      %v921 = vmax.f32 %v739, 0.0
      %v922 = vmax.f32 %v744, 0.0
      %v923 = vmax.f32 %v747, 0.0
      %v924 = vmax.f32 %v752, 0.0
      %v925 = vmax.f32 %v755, 0.0
      %v926 = vmax.f32 %v760, 0.0
      %v927 = vmax.f32 %v763, 0.0
      %v928 = vmax.f32 %v768, 0.0
      %v929 = vmax.f32 %v771, 0.0
      %v930 = vmax.f32 %v776, 0.0
      %v931 = vmax.f32 %v779, 0.0
      %v932 = vmax.f32 %v784, 0.0
      %v933 = vmax.f32 %v787, 0.0
      %v934 = vmax.f32 %v792, 0.0
      %v935 = vmax.f32 %v795, 0.0
      %v936 = vmax.f32 %v800, 0.0
      %v937 = vmax.f32 %v803, 0.0
      %v938 = vmax.f32 %v808, 0.0
      %v939 = vmax.f32 %v811, 0.0
      %v940 = vmax.f32 %v816, 0.0
      %v941 = vmax.f32 %v819, 0.0
      %v942 = vmax.f32 %v824, 0.0
      %v943 = vmax.f32 %v827, 0.0
      %v944 = vmax.f32 %v832, 0.0
      %v945 = vmax.f32 %v835, 0.0
      %v946 = vmax.f32 %v840, 0.0
      %v947 = vmax.f32 %v843, 0.0
      %v948 = vmax.f32 %v848, 0.0
      %v949 = vmax.f32 %v851, 0.0
      %v950 = vmax.f32 %v856, 0.0
      %v951 = vmax.f32 %v859, 0.0
      %v952 = vmax.f32 %v864, 0.0
      %v953 = vmax.f32 %v867, 0.0
      %v954 = vmax.f32 %v872, 0.0
      %v955 = vmax.f32 %v875, 0.0
      %v956 = vmax.f32 %v880, 0.0
      %v957 = vmax.f32 %v883, 0.0
      %v958 = vpack.c.bf16 %v887, %v886
      %v959 = vpack.c.bf16 %v889, %v888
      %v960 = vpack.c.bf16 %v891, %v890
      %v961 = vpack.c.bf16 %v893, %v892
      %v962 = vpack.c.bf16 %v895, %v894
      %v963 = vpack.c.bf16 %v897, %v896
      %v964 = vpack.c.bf16 %v899, %v898
      %v965 = vpack.c.bf16 %v901, %v900
      %v966 = vpack.c.bf16 %v903, %v902
      %v967 = vpack.c.bf16 %v905, %v904
      %v968 = vpack.c.bf16 %v907, %v906
      %v969 = vpack.c.bf16 %v909, %v908
      %v970 = vpack.c.bf16 %v911, %v910
      %v971 = vpack.c.bf16 %v913, %v912
      %v972 = vpack.c.bf16 %v915, %v914
      %v973 = vpack.c.bf16 %v917, %v916
      %v974 = vpack.c.bf16 %v919, %v918
      %v975 = vpack.c.bf16 %v921, %v920
      %v976 = vpack.c.bf16 %v923, %v922
      %v977 = vpack.c.bf16 %v925, %v924
      %v978 = vpack.c.bf16 %v927, %v926
      %v979 = vpack.c.bf16 %v929, %v928
      %v980 = vpack.c.bf16 %v931, %v930
      %v981 = vpack.c.bf16 %v933, %v932
      %v982 = vpack.c.bf16 %v935, %v934
      %v983 = vpack.c.bf16 %v937, %v936
      %v984 = vpack.c.bf16 %v939, %v938
      %v985 = vpack.c.bf16 %v941, %v940
      %v986 = vpack.c.bf16 %v943, %v942
      %v987 = vpack.c.bf16 %v945, %v944
      %v988 = vpack.c.bf16 %v947, %v946
      %v989 = vpack.c.bf16 %v949, %v948
      %v990 = vpack.c.bf16 %v951, %v950
      %v991 = vpack.c.bf16 %v953, %v952
      %v992 = vpack.c.bf16 %v955, %v954
      %v993 = vpack.c.bf16 %v957, %v956
      %v1030 = vunpack.c.l.b16 %v958
      %v1031 = vunpack.c.h.b16 %v958
      %v1032 = vunpack.c.l.b16 %v959
      %v1033 = vunpack.c.h.b16 %v959
      %v1034 = vunpack.c.l.b16 %v960
      %v1035 = vunpack.c.h.b16 %v960
      %v1036 = vunpack.c.l.b16 %v961
      %v1037 = vunpack.c.h.b16 %v961
      %v1038 = vunpack.c.l.b16 %v962
      %v1039 = vunpack.c.h.b16 %v962
      %v1040 = vunpack.c.l.b16 %v963
      %v1041 = vunpack.c.h.b16 %v963
      %v1042 = vunpack.c.l.b16 %v964
      %v1043 = vunpack.c.h.b16 %v964
      %v1044 = vunpack.c.l.b16 %v965
      %v1045 = vunpack.c.h.b16 %v965
      %v1046 = vunpack.c.l.b16 %v966
      %v1047 = vunpack.c.h.b16 %v966
      %v1048 = vunpack.c.l.b16 %v967
      %v1049 = vunpack.c.h.b16 %v967
      %v1050 = vunpack.c.l.b16 %v968
      %v1051 = vunpack.c.h.b16 %v968
      %v1052 = vunpack.c.l.b16 %v969
      %v1053 = vunpack.c.h.b16 %v969
      %v1054 = vunpack.c.l.b16 %v970
      %v1055 = vunpack.c.h.b16 %v970
      %v1056 = vunpack.c.l.b16 %v971
      %v1057 = vunpack.c.h.b16 %v971
      %v1058 = vunpack.c.l.b16 %v972
      %v1059 = vunpack.c.h.b16 %v972
      %v1060 = vunpack.c.l.b16 %v973
      %v1061 = vunpack.c.h.b16 %v973
      %v1062 = vunpack.c.l.b16 %v974
      %v1063 = vunpack.c.h.b16 %v974
      %v1064 = vunpack.c.l.b16 %v975
      %v1065 = vunpack.c.h.b16 %v975
      %v1066 = vunpack.c.l.b16 %v976
      %v1067 = vunpack.c.h.b16 %v976
      %v1068 = vunpack.c.l.b16 %v977
      %v1069 = vunpack.c.h.b16 %v977
      %v1070 = vunpack.c.l.b16 %v978
      %v1071 = vunpack.c.h.b16 %v978
      %v1072 = vunpack.c.l.b16 %v979
      %v1073 = vunpack.c.h.b16 %v979
      %v1074 = vunpack.c.l.b16 %v980
      %v1075 = vunpack.c.h.b16 %v980
      %v1076 = vunpack.c.l.b16 %v981
      %v1077 = vunpack.c.h.b16 %v981
      %v1078 = vunpack.c.l.b16 %v982
      %v1079 = vunpack.c.h.b16 %v982
      %v1080 = vunpack.c.l.b16 %v983
      %v1081 = vunpack.c.h.b16 %v983
      %v1082 = vunpack.c.l.b16 %v984
      %v1083 = vunpack.c.h.b16 %v984
      %v1084 = vunpack.c.l.b16 %v985
      %v1085 = vunpack.c.h.b16 %v985
      %v1086 = vunpack.c.l.b16 %v986
      %v1087 = vunpack.c.h.b16 %v986
      %v1088 = vunpack.c.l.b16 %v987
      %v1089 = vunpack.c.h.b16 %v987
      %v1090 = vunpack.c.l.b16 %v988
      %v1091 = vunpack.c.h.b16 %v988
      %v1092 = vunpack.c.l.b16 %v989
      %v1093 = vunpack.c.h.b16 %v989
      %v1094 = vunpack.c.l.b16 %v990
      %v1095 = vunpack.c.h.b16 %v990
      %v1096 = vunpack.c.l.b16 %v991
      %v1097 = vunpack.c.h.b16 %v991
      %v1098 = vunpack.c.l.b16 %v992
      %v1099 = vunpack.c.h.b16 %v992
      %v1100 = vunpack.c.l.b16 %v993
      %v1101 = vunpack.c.h.b16 %v993
      %v1102 = vpack.c.b16 %v1030, %v1030
      %v1103 = vpack.c.b16 %v1031, %v1031
      %v1104 = vpack.c.b16 %v1032, %v1032
      %v1105 = vpack.c.b16 %v1033, %v1033
      %v1106 = vpack.c.b16 %v1034, %v1034
      %v1107 = vpack.c.b16 %v1035, %v1035
      %v1108 = vpack.c.b16 %v1036, %v1036
      %v1109 = vpack.c.b16 %v1037, %v1037
      %v1110 = vpack.c.b16 %v1038, %v1038
      %v1111 = vpack.c.b16 %v1039, %v1039
      %v1112 = vpack.c.b16 %v1040, %v1040
      %v1113 = vpack.c.b16 %v1041, %v1041
      %v1114 = vpack.c.b16 %v1042, %v1042
      %v1115 = vpack.c.b16 %v1043, %v1043
      %v1116 = vpack.c.b16 %v1044, %v1044
      %v1117 = vpack.c.b16 %v1045, %v1045
      %v1118 = vpack.c.b16 %v1046, %v1046
      %v1119 = vpack.c.b16 %v1047, %v1047
      %v1120 = vpack.c.b16 %v1048, %v1048
      %v1121 = vpack.c.b16 %v1049, %v1049
      %v1122 = vpack.c.b16 %v1050, %v1050
      %v1123 = vpack.c.b16 %v1051, %v1051
      %v1124 = vpack.c.b16 %v1052, %v1052
      %v1125 = vpack.c.b16 %v1053, %v1053
      %v1126 = vpack.c.b16 %v1054, %v1054
      %v1127 = vpack.c.b16 %v1055, %v1055
      %v1128 = vpack.c.b16 %v1056, %v1056
      %v1129 = vpack.c.b16 %v1057, %v1057
      %v1130 = vpack.c.b16 %v1058, %v1058
      %v1131 = vpack.c.b16 %v1059, %v1059
      %v1132 = vpack.c.b16 %v1060, %v1060
      %v1133 = vpack.c.b16 %v1061, %v1061
      %v1134 = vpack.c.b16 %v1062, %v1062
      %v1135 = vpack.c.b16 %v1063, %v1063
      %v1136 = vpack.c.b16 %v1064, %v1064
      %v1137 = vpack.c.b16 %v1065, %v1065
      %v1138 = vpack.c.b16 %v1066, %v1066
      %v1139 = vpack.c.b16 %v1067, %v1067
      %v1140 = vpack.c.b16 %v1068, %v1068
      %v1141 = vpack.c.b16 %v1069, %v1069
      %v1142 = vpack.c.b16 %v1070, %v1070
      %v1143 = vpack.c.b16 %v1071, %v1071
      %v1144 = vpack.c.b16 %v1072, %v1072
      %v1145 = vpack.c.b16 %v1073, %v1073
      %v1146 = vpack.c.b16 %v1074, %v1074
      %v1147 = vpack.c.b16 %v1075, %v1075
      %v1148 = vpack.c.b16 %v1076, %v1076
      %v1149 = vpack.c.b16 %v1077, %v1077
      %v1150 = vpack.c.b16 %v1078, %v1078
      %v1151 = vpack.c.b16 %v1079, %v1079
      %v1152 = vpack.c.b16 %v1080, %v1080
      %v1153 = vpack.c.b16 %v1081, %v1081
      %v1154 = vpack.c.b16 %v1082, %v1082
      %v1155 = vpack.c.b16 %v1083, %v1083
      %v1156 = vpack.c.b16 %v1084, %v1084
      %v1157 = vpack.c.b16 %v1085, %v1085
      %v1158 = vpack.c.b16 %v1086, %v1086
      %v1159 = vpack.c.b16 %v1087, %v1087
      %v1160 = vpack.c.b16 %v1088, %v1088
      %v1161 = vpack.c.b16 %v1089, %v1089
      %v1162 = vpack.c.b16 %v1090, %v1090
      %v1163 = vpack.c.b16 %v1091, %v1091
      %v1164 = vpack.c.b16 %v1092, %v1092
      %v1165 = vpack.c.b16 %v1093, %v1093
      %v1166 = vpack.c.b16 %v1094, %v1094
      %v1167 = vpack.c.b16 %v1095, %v1095
      %v1168 = vpack.c.b16 %v1096, %v1096
      %v1169 = vpack.c.b16 %v1097, %v1097
      %v1170 = vpack.c.b16 %v1098, %v1098
      %v1171 = vpack.c.b16 %v1099, %v1099
      %v1172 = vpack.c.b16 %v1100, %v1100
      %v1173 = vpack.c.b16 %v1101, %v1101
      %vm1246 = vcmask 76800
      %1247 = vst.msk [vmem:[%s172] sm:$0xf] %vm1246, %v1102
      %1248 = vst.msk [vmem:[%s172 + $0x4] sm:$0xf] %vm1246, %v1103
      %1249 = vst.msk [vmem:[%s172 + $0x8] sm:$0xf] %vm1246, %v1104
      %1250 = vst.msk [vmem:[%s172 + $0xc] sm:$0xf] %vm1246, %v1105
      %1251 = vst.msk [vmem:[%s172 + $0x10] sm:$0xf] %vm1246, %v1106
      %1252 = vst.msk [vmem:[%s172 + $0x14] sm:$0xf] %vm1246, %v1107
      %1253 = vst.msk [vmem:[%s172 + $0x18] sm:$0xf] %vm1246, %v1108
      %1254 = vst.msk [vmem:[%s172 + $0x1c] sm:$0xf] %vm1246, %v1109
      %1255 = vst.msk [vmem:[%s172 + $0x20] sm:$0xf] %vm1246, %v1110
      %1256 = vst.msk [vmem:[%s172 + $0x24] sm:$0xf] %vm1246, %v1111
      %1257 = vst.msk [vmem:[%s172 + $0x28] sm:$0xf] %vm1246, %v1112
      %1258 = vst.msk [vmem:[%s172 + $0x2c] sm:$0xf] %vm1246, %v1113
      %1259 = vst.msk [vmem:[%s172 + $0x30] sm:$0xf] %vm1246, %v1114
      %1260 = vst.msk [vmem:[%s172 + $0x34] sm:$0xf] %vm1246, %v1115
      %1261 = vst.msk [vmem:[%s172 + $0x38] sm:$0xf] %vm1246, %v1116
      %1262 = vst.msk [vmem:[%s172 + $0x3c] sm:$0xf] %vm1246, %v1117
      %1263 = vst.msk [vmem:[%s172 + $0x40] sm:$0xf] %vm1246, %v1118
      %1264 = vst.msk [vmem:[%s172 + $0x44] sm:$0xf] %vm1246, %v1119
      %1265 = vst.msk [vmem:[%s172 + $0x48] sm:$0xf] %vm1246, %v1120
      %1266 = vst.msk [vmem:[%s172 + $0x4c] sm:$0xf] %vm1246, %v1121
      %1267 = vst.msk [vmem:[%s172 + $0x50] sm:$0xf] %vm1246, %v1122
      %1268 = vst.msk [vmem:[%s172 + $0x54] sm:$0xf] %vm1246, %v1123
      %1269 = vst.msk [vmem:[%s172 + $0x58] sm:$0xf] %vm1246, %v1124
      %1270 = vst.msk [vmem:[%s172 + $0x5c] sm:$0xf] %vm1246, %v1125
      %1271 = vst.msk [vmem:[%s172 + $0x60] sm:$0xf] %vm1246, %v1126
      %1272 = vst.msk [vmem:[%s172 + $0x64] sm:$0xf] %vm1246, %v1127
      %1273 = vst.msk [vmem:[%s172 + $0x68] sm:$0xf] %vm1246, %v1128
      %1274 = vst.msk [vmem:[%s172 + $0x6c] sm:$0xf] %vm1246, %v1129
      %1275 = vst.msk [vmem:[%s172 + $0x70] sm:$0xf] %vm1246, %v1130
      %1276 = vst.msk [vmem:[%s172 + $0x74] sm:$0xf] %vm1246, %v1131
      %1277 = vst.msk [vmem:[%s172 + $0x78] sm:$0xf] %vm1246, %v1132
      %1278 = vst.msk [vmem:[%s172 + $0x7c] sm:$0xf] %vm1246, %v1133
      %1279 = vst.msk [vmem:[%s172 + $0x80] sm:$0xf] %vm1246, %v1134
      %1280 = vst.msk [vmem:[%s172 + $0x84] sm:$0xf] %vm1246, %v1135
      %1281 = vst.msk [vmem:[%s172 + $0x88] sm:$0xf] %vm1246, %v1136
      %1282 = vst.msk [vmem:[%s172 + $0x8c] sm:$0xf] %vm1246, %v1137
      %1283 = vst.msk [vmem:[%s172 + $0x90] sm:$0xf] %vm1246, %v1138
      %1284 = vst.msk [vmem:[%s172 + $0x94] sm:$0xf] %vm1246, %v1139
      %1285 = vst.msk [vmem:[%s172 + $0x98] sm:$0xf] %vm1246, %v1140
      %1286 = vst.msk [vmem:[%s172 + $0x9c] sm:$0xf] %vm1246, %v1141
      %1287 = vst.msk [vmem:[%s172 + $0xa0] sm:$0xf] %vm1246, %v1142
      %1288 = vst.msk [vmem:[%s172 + $0xa4] sm:$0xf] %vm1246, %v1143
      %1289 = vst.msk [vmem:[%s172 + $0xa8] sm:$0xf] %vm1246, %v1144
      %1290 = vst.msk [vmem:[%s172 + $0xac] sm:$0xf] %vm1246, %v1145
      %1291 = vst.msk [vmem:[%s172 + $0xb0] sm:$0xf] %vm1246, %v1146
      %1292 = vst.msk [vmem:[%s172 + $0xb4] sm:$0xf] %vm1246, %v1147
      %1293 = vst.msk [vmem:[%s172 + $0xb8] sm:$0xf] %vm1246, %v1148
      %1294 = vst.msk [vmem:[%s172 + $0xbc] sm:$0xf] %vm1246, %v1149
      %1295 = vst.msk [vmem:[%s172 + $0xc0] sm:$0xf] %vm1246, %v1150
      %1296 = vst.msk [vmem:[%s172 + $0xc4] sm:$0xf] %vm1246, %v1151
      %1297 = vst.msk [vmem:[%s172 + $0xc8] sm:$0xf] %vm1246, %v1152
      %1298 = vst.msk [vmem:[%s172 + $0xcc] sm:$0xf] %vm1246, %v1153
      %1299 = vst.msk [vmem:[%s172 + $0xd0] sm:$0xf] %vm1246, %v1154
      %1300 = vst.msk [vmem:[%s172 + $0xd4] sm:$0xf] %vm1246, %v1155
      %1301 = vst.msk [vmem:[%s172 + $0xd8] sm:$0xf] %vm1246, %v1156
      %1302 = vst.msk [vmem:[%s172 + $0xdc] sm:$0xf] %vm1246, %v1157
      %1303 = vst.msk [vmem:[%s172 + $0xe0] sm:$0xf] %vm1246, %v1158
      %1304 = vst.msk [vmem:[%s172 + $0xe4] sm:$0xf] %vm1246, %v1159
      %1305 = vst.msk [vmem:[%s172 + $0xe8] sm:$0xf] %vm1246, %v1160
      %1306 = vst.msk [vmem:[%s172 + $0xec] sm:$0xf] %vm1246, %v1161
      %1307 = vst.msk [vmem:[%s172 + $0xf0] sm:$0xf] %vm1246, %v1162
      %1308 = vst.msk [vmem:[%s172 + $0xf4] sm:$0xf] %vm1246, %v1163
      %1309 = vst.msk [vmem:[%s172 + $0xf8] sm:$0xf] %vm1246, %v1164
      %1310 = vst.msk [vmem:[%s172 + $0xfc] sm:$0xf] %vm1246, %v1165
      %1311 = vst.msk [vmem:[%s172 + $0x100] sm:$0xf] %vm1246, %v1166
      %1312 = vst.msk [vmem:[%s172 + $0x104] sm:$0xf] %vm1246, %v1167
      %1313 = vst.msk [vmem:[%s172 + $0x108] sm:$0xf] %vm1246, %v1168
      %1314 = vst.msk [vmem:[%s172 + $0x10c] sm:$0xf] %vm1246, %v1169
      %1315 = vst.msk [vmem:[%s172 + $0x110] sm:$0xf] %vm1246, %v1170
      %1316 = vst.msk [vmem:[%s172 + $0x114] sm:$0xf] %vm1246, %v1171
      %1317 = vst.msk [vmem:[%s172 + $0x118] sm:$0xf] %vm1246, %v1172
      %1318 = vst.msk [vmem:[%s172 + $0x11c] sm:$0xf] %vm1246, %v1173
      %s1319 = smul.u32 72, %s14
      %p1320 = scmp.lt.s32.totalorder %s1319, 143
      %s1321 = scalar_select %p1320, %s1319, 143
      %s1322 = smul.addr %s1321, 4
      %s1323 = scalar_lea.vmem %s3, %s1322
      // Predicated region
      $region33: #{net_forward.7} parent=31 // pred_check
        %p1324 = pneg %p100
      $region34: #{net_forward.7} parent=31 // pred_check_branch
        %1326 = sbr.rel (%p1324) target = $region36
      $region35: #{net_forward.7} parent=31 // pred_region
        %s1327 = smul.u32 72, %s14
      $region36: #{net_forward.7} parent=31 // pred_fallthru
        _
    $region32: #{net_forward.7} parent=5 // pred_fallthru
      _
    %p1328 = scmp.le.s32.totalorder 2, %s9
    // Predicated region
    $region37: #{net_forward.7} parent=5 // pred_check
      %p1329 = pneg %p1328
    $region38: #{net_forward.7} parent=5 // pred_check_branch
      %1331 = sbr.rel (%p1329) target = $region40
    $region39: #{net_forward.7} parent=5 // pred_region
      %s1332 = ssub.s32 %s9, 2
      // Predicated region
      $region41: #{net_forward.7} parent=39 // pred_check
        %p1333 = pneg %p106
      $region42: #{net_forward.7} parent=39 // pred_check_branch
        %1335 = sbr.rel (%p1333) target = $region44
      $region43: #{net_forward.7} parent=39 // pred_region
        %s1336 = smul.u32 72, %s15
        %p1337 = scmp.lt.s32.totalorder %s1336, 143
        %s1338 = scalar_select %p1337, %s1336, 143
        %s1339 = smul.addr %s1338, 4
        %s1340 = scalar_lea.vmem %s3, %s1339
      $region44: #{net_forward.7} parent=39 // pred_fallthru
        _
    $region40: #{net_forward.7} parent=5 // pred_fallthru
      _
  $region6: #{net_forward.7} parent=0 // loop_footer
    %s13 = sadd.s32 1, %s9
  $region7: #{net_forward.7} parent=0 // loop_footer_branch
    %8 = sbr.rel target = $region3
  $region8: #{net_forward.7} parent=0 // loop_exit
    _

// kernel: net_forward.8
$region0: #{net_forward.8}
  #allocation0 [shape = 'u32[]', space=smem, size = 0x4, offset = 0x4, fixed_abs, tag = 'smem constant byte address 0x4 - core index']
  #allocation1 [shape = 'u32[144,128]{1,0:T(1,128)}', space=vmem, size = 0x12000, scoped, tag = 'internal scratch']
  %s0 = inlined_call_operand.vmem [shape: bf16[288,250], index: 0, kind: input, shape index: {}]
  %s1 = inlined_call_operand.vmem [shape: bf16[250,88], index: 1, kind: input, shape index: {}]
  %s2 = inlined_call_operand.vmem [shape: f32[144,88], index: 2, kind: input, shape index: {}]
  %s3 = inlined_call_operand.vmem [shape: f32[288,88], index: 3, kind: output, shape index: {}]
  %s4 = sld [smem:[#allocation0]]
  $region45: #{net_forward.8} parent=0
    _
  %s6 = ssub.s32 1, %s4
  %s7 = scalar_select 0, %s6, %s4
  loop: start=0, step=1, limit=4
  $region2: #{net_forward.8} parent=0 // loop_pre_header
    _
  $region3: #{net_forward.8} parent=0 // loop_header
    %s9 = sphi 0, %s13
    %p10 = scmp.ge.s32.totalorder %s9, 4
    %s19 = sphi 0, %s21
    %s22 = sphi 0, %s19
    %s23 = sphi 0, %s22
    %s39 = sphi 0, %s23
    %s43 = sphi 0, %s43
    %s45 = sphi 0, %s43
    %s46 = sphi 0, %s45
    %s60 = sphi 0, %s46
    %s64 = sphi 0, %s64
    %s66 = sphi 0, %s64
    %s67 = sphi 0, %s66
    %s81 = sphi 0, %s67
    %s87 = sphi 0, %s89
    %s90 = sphi 0, %s87
    %s91 = sphi 0, %s90
    %s107 = sphi 0, %s91
  $region4: #{net_forward.8} parent=0 // loop_header_branch
    %12 = sbr.rel (%p10) target = $region8
  $region5: #{net_forward.8} parent=0 // loop_body
    %s14 = ssub.s32 %s9, 1
    %s15 = ssub.s32 %s9, 2
    %s16 = sadd.s32 %s9, 1
    %s17 = ssub.s32 %s9, %s16
    %p18 = scmp.eq.s32.totalorder %s17, 0
    %s20 = sadd.s32 %s19, 1
    %s21 = scalar_select %p18, %s19, %s20
    %p24 = pneg %p18
    %p25 = scmp.eq.s32.totalorder %s9, 1
    %p26 = por %p24, %p25
    %p27 = scmp.ne.s32.totalorder %s19, %s22
    %p28 = scmp.eq.s32.totalorder %s9, 0
    %p29 = por %p27, %p28
    %p30 = scmp.ne.s32.totalorder %s19, %s22
    %p31 = scmp.eq.s32.totalorder %s14, 1
    %p32 = por %p30, %p31
    %p33 = scmp.ne.s32.totalorder %s22, %s23
    %p34 = scmp.eq.s32.totalorder %s14, 0
    %p35 = por %p33, %p34
    %p36 = scmp.ne.s32.totalorder %s22, %s23
    %p37 = scmp.eq.s32.totalorder %s15, 1
    %p38 = por %p36, %p37
    %p40 = scmp.ne.s32.totalorder %s23, %s39
    %p41 = scmp.eq.s32.totalorder %s15, 0
    %p42 = por %p40, %p41
    %s44 = sadd.s32 %s43, 1
    %p47 = scmp.eq.s32.totalorder %s9, 1
    %p48 = scmp.ne.s32.totalorder %s43, %s45
    %p49 = scmp.eq.s32.totalorder %s9, 0
    %p50 = por %p48, %p49
    %p51 = scmp.ne.s32.totalorder %s43, %s45
    %p52 = scmp.eq.s32.totalorder %s14, 1
    %p53 = por %p51, %p52
    %p54 = scmp.ne.s32.totalorder %s45, %s46
    %p55 = scmp.eq.s32.totalorder %s14, 0
    %p56 = por %p54, %p55
    %p57 = scmp.ne.s32.totalorder %s45, %s46
    %p58 = scmp.eq.s32.totalorder %s15, 1
    %p59 = por %p57, %p58
    %p61 = scmp.ne.s32.totalorder %s46, %s60
    %p62 = scmp.eq.s32.totalorder %s15, 0
    %p63 = por %p61, %p62
    %s65 = sadd.s32 %s64, 1
    %p68 = scmp.eq.s32.totalorder %s9, 1
    %p69 = scmp.ne.s32.totalorder %s64, %s66
    %p70 = scmp.eq.s32.totalorder %s9, 0
    %p71 = por %p69, %p70
    %p72 = scmp.ne.s32.totalorder %s64, %s66
    %p73 = scmp.eq.s32.totalorder %s14, 1
    %p74 = por %p72, %p73
    %p75 = scmp.ne.s32.totalorder %s66, %s67
    %p76 = scmp.eq.s32.totalorder %s14, 0
    %p77 = por %p75, %p76
    %p78 = scmp.ne.s32.totalorder %s66, %s67
    %p79 = scmp.eq.s32.totalorder %s15, 1
    %p80 = por %p78, %p79
    %p82 = scmp.ne.s32.totalorder %s67, %s81
    %p83 = scmp.eq.s32.totalorder %s15, 0
    %p84 = por %p82, %p83
    %s85 = ssub.s32 %s9, %s16
    %p86 = scmp.eq.s32.totalorder %s85, 0
    %s88 = sadd.s32 %s87, 1
    %s89 = scalar_select %p86, %s87, %s88
    %p92 = pneg %p86
    %p93 = scmp.eq.s32.totalorder %s9, 1
    %p94 = por %p92, %p93
    %p95 = scmp.ne.s32.totalorder %s87, %s90
    %p96 = scmp.eq.s32.totalorder %s9, 0
    %p97 = por %p95, %p96
    %p98 = scmp.ne.s32.totalorder %s87, %s90
    %p99 = scmp.eq.s32.totalorder %s14, 1
    %p100 = por %p98, %p99
    %p101 = scmp.ne.s32.totalorder %s90, %s91
    %p102 = scmp.eq.s32.totalorder %s14, 0
    %p103 = por %p101, %p102
    %p104 = scmp.ne.s32.totalorder %s90, %s91
    %p105 = scmp.eq.s32.totalorder %s15, 1
    %p106 = por %p104, %p105
    %p108 = scmp.ne.s32.totalorder %s91, %s107
    %p109 = scmp.eq.s32.totalorder %s15, 0
    %p110 = por %p108, %p109
    %p111 = scmp.le.s32.totalorder 1, %s9
    %p112 = scmp.lt.s32.totalorder %s9, 3
    %p113 = pnand %p111, %p112
    %p114 = pneg %p113
    // Predicated region
    $region9: #{net_forward.8} parent=5 // pred_check
      _
    $region10: #{net_forward.8} parent=5 // pred_check_branch
      %116 = sbr.rel (%p113) target = $region12
    $region11: #{net_forward.8} parent=5 // pred_region
      %s117 = ssub.s32 %s9, 1
      // Predicated region
      $region13: #{net_forward.8} parent=11 // pred_check
        %p118 = pneg %p56
      $region14: #{net_forward.8} parent=11 // pred_check_branch
        %120 = sbr.rel (%p118) target = $region16
      $region15: #{net_forward.8} parent=11 // pred_region
        _
      $region16: #{net_forward.8} parent=11 // pred_fallthru
        _
      // Predicated region
      $region17: #{net_forward.8} parent=11 // pred_check
        %p121 = pneg %p77
      $region18: #{net_forward.8} parent=11 // pred_check_branch
        %123 = sbr.rel (%p121) target = $region20
      $region19: #{net_forward.8} parent=11 // pred_region
        _
      $region20: #{net_forward.8} parent=11 // pred_fallthru
        _
    $region12: #{net_forward.8} parent=5 // pred_fallthru
      _
    %p124 = scmp.lt.s32.totalorder %s9, 2
    // Predicated region
    $region21: #{net_forward.8} parent=5 // pred_check
      %p125 = pneg %p124
    $region22: #{net_forward.8} parent=5 // pred_check_branch
      %127 = sbr.rel (%p125) target = $region24
    $region23: #{net_forward.8} parent=5 // pred_region
      // Predicated region
      $region25: #{net_forward.8} parent=23 // pred_check
        %p128 = pneg %p29
      $region26: #{net_forward.8} parent=23 // pred_check_branch
        %130 = sbr.rel (%p128) target = $region28
      $region27: #{net_forward.8} parent=23 // pred_region
        %s131 = smul.u32 18, %s9
        %p132 = scmp.lt.s32.totalorder %s131, 35
        %s133 = scalar_select %p132, %s131, 35
        %s134 = smul.addr %s133, 2
        %s135 = smul.addr %s134, 4
        %s136 = scalar_lea.vmem %s0, %s135
        %s137 = smul.u32 18, %s9
      $region28: #{net_forward.8} parent=23 // pred_fallthru
        _
    $region24: #{net_forward.8} parent=5 // pred_fallthru
      _
    %p138 = scmp.le.s32.totalorder 1, %s9
    %p139 = scmp.lt.s32.totalorder %s9, 3
    %p140 = pnand %p138, %p139
    %p141 = pneg %p140
    // Predicated region
    $region29: #{net_forward.8} parent=5 // pred_check
      _
    $region30: #{net_forward.8} parent=5 // pred_check_branch
      %143 = sbr.rel (%p140) target = $region32
    $region31: #{net_forward.8} parent=5 // pred_region
      %s144 = ssub.s32 %s9, 1
      %s145 = smul.u32 18, %s14
      %p146 = scmp.lt.s32.totalorder %s145, 35
      %s147 = scalar_select %p146, %s145, 35
      %s148 = smul.addr %s147, 2
      %s149 = smul.addr %s148, 4
      %s150 = scalar_lea.vmem %s0, %s149
      %p151 = pneg %p35
      %p152 = pneg %p32
      %p153 = pneg %p56
      %p154 = pneg %p53
      %p155 = pneg %p77
      %p156 = pneg %p74
      %p157 = pneg %p103
      %p158 = pneg %p100
      %s159 = smul.u32 18, %s14
      %p160 = scmp.lt.s32.totalorder %s159, 35
      %s161 = scalar_select %p160, %s159, 35
      %s162 = smul.addr %s161, 8
      %s163 = scalar_lea.vmem %s3, %s162
      %s164 = smul.u32 18, %s14
      %p165 = scmp.lt.s32.totalorder %s164, 35
      %s166 = scalar_select %p165, %s164, 35
      %s167 = smul.addr %s166, 2
      %s168 = smul.addr %s167, 4
      %s169 = scalar_lea.vmem %s0, %s168
      %s170 = smul.u32 18, %s14
      %s171 = smul.u32 18, %s14
      %p172 = scmp.lt.s32.totalorder %s171, 35
      %s173 = scalar_select %p172, %s171, 35
      %s174 = smul.addr %s173, 8
      %s175 = scalar_lea.vmem %s3, %s174
      %s176 = smul.u32 18, %s14
      %v178 = vld [vmem:[%s169] sm:$0xff]
      %v179 = vld [vmem:[%s169 + $0x8] sm:$0xff]
      %v180 = vld [vmem:[%s169 + $0x10] sm:$0xff]
      %v181 = vld [vmem:[%s169 + $0x18] sm:$0xff]
      %v182 = vld [vmem:[%s169 + $0x20] sm:$0xff]
      %v183 = vld [vmem:[%s169 + $0x28] sm:$0xff]
      %v184 = vld [vmem:[%s169 + $0x30] sm:$0xff]
      %v185 = vld [vmem:[%s169 + $0x38] sm:$0xff]
      %v186 = vld [vmem:[%s169 + $0x40] sm:$0xff]
      %v187 = vld [vmem:[%s169 + $0x48] sm:$0xff]
      %v188 = vld [vmem:[%s169 + $0x50] sm:$0xff]
      %v189 = vld [vmem:[%s169 + $0x58] sm:$0xff]
      %v190 = vld [vmem:[%s169 + $0x60] sm:$0xff]
      %v191 = vld [vmem:[%s169 + $0x68] sm:$0xff]
      %v192 = vld [vmem:[%s169 + $0x70] sm:$0xff]
      %v193 = vld [vmem:[%s169 + $0x78] sm:$0xff]
      %v194 = vld [vmem:[%s169 + $0x80] sm:$0xff]
      %v195 = vld [vmem:[%s169 + $0x88] sm:$0xff]
      %v196 = vld [vmem:[%s1] sm:$0xf]
      %v197 = vld [vmem:[%s1 + $0x4] sm:$0xf]
      %v198 = vld [vmem:[%s1 + $0x8] sm:$0xf]
      %v199 = vld [vmem:[%s1 + $0xc] sm:$0xf]
      %v200 = vld [vmem:[%s1 + $0x10] sm:$0xf]
      %v201 = vld [vmem:[%s1 + $0x14] sm:$0xf]
      %v202 = vld [vmem:[%s1 + $0x18] sm:$0xf]
      %v203 = vld [vmem:[%s1 + $0x1c] sm:$0xf]
      %v204 = vld [vmem:[%s1 + $0x20] sm:$0xf]
      %v205 = vld [vmem:[%s1 + $0x24] sm:$0xf]
      %v206 = vld [vmem:[%s1 + $0x28] sm:$0xf]
      %v207 = vld [vmem:[%s1 + $0x2c] sm:$0xf]
      %v208 = vld [vmem:[%s1 + $0x30] sm:$0xf]
      %v209 = vld [vmem:[%s1 + $0x34] sm:$0xf]
      %v210 = vld [vmem:[%s1 + $0x38] sm:$0xf]
      %v211 = vld [vmem:[%s1 + $0x3c] sm:$0xf]
      %v212 = vld [vmem:[%s1 + $0x40] sm:$0xf]
      %v213 = vld [vmem:[%s1 + $0x44] sm:$0xf]
      %v214 = vld [vmem:[%s1 + $0x48] sm:$0xf]
      %v215 = vld [vmem:[%s1 + $0x4c] sm:$0xf]
      %v216 = vld [vmem:[%s1 + $0x50] sm:$0xf]
      %v217 = vld [vmem:[%s1 + $0x54] sm:$0xf]
      %v218 = vld [vmem:[%s1 + $0x58] sm:$0xf]
      %v219 = vld [vmem:[%s1 + $0x5c] sm:$0xf]
      %v220 = vld [vmem:[%s1 + $0x60] sm:$0xf]
      %v221 = vld [vmem:[%s1 + $0x64] sm:$0xf]
      %v222 = vld [vmem:[%s1 + $0x68] sm:$0xf]
      %v223 = vld [vmem:[%s1 + $0x6c] sm:$0xf]
      %v224 = vld [vmem:[%s1 + $0x70] sm:$0xf]
      %v225 = vld [vmem:[%s1 + $0x74] sm:$0xf]
      %v226 = vld [vmem:[%s1 + $0x78] sm:$0xf]
      %v227 = vld [vmem:[%s1 + $0x7c] sm:$0x1]
      %v228 = vld [vmem:[%s2] sm:$0xff]
      %v229 = vld [vmem:[%s2 + $0x8] sm:$0xff]
      %v230 = vld [vmem:[%s2 + $0x10] sm:$0xff]
      %v231 = vld [vmem:[%s2 + $0x18] sm:$0xff]
      %v232 = vld [vmem:[%s2 + $0x20] sm:$0xff]
      %v233 = vld [vmem:[%s2 + $0x28] sm:$0xff]
      %v234 = vld [vmem:[%s2 + $0x30] sm:$0xff]
      %v235 = vld [vmem:[%s2 + $0x38] sm:$0xff]
      %v236 = vld [vmem:[%s2 + $0x40] sm:$0xff]
      %v237 = vld [vmem:[%s2 + $0x48] sm:$0xff]
      %v238 = vld [vmem:[%s2 + $0x50] sm:$0xff]
      %v239 = vld [vmem:[%s2 + $0x58] sm:$0xff]
      %v240 = vld [vmem:[%s2 + $0x60] sm:$0xff]
      %v241 = vld [vmem:[%s2 + $0x68] sm:$0xff]
      %v242 = vld [vmem:[%s2 + $0x70] sm:$0xff]
      %v243 = vld [vmem:[%s2 + $0x78] sm:$0xff]
      %v244 = vld [vmem:[%s2 + $0x80] sm:$0xff]
      %v245 = vld [vmem:[%s2 + $0x88] sm:$0xff]
      %v264 = vunpack.c.l.b16 %v178
      %v265 = vunpack.c.h.b16 %v178
      %v266 = vunpack.c.l.b16 %v179
      %v267 = vunpack.c.h.b16 %v179
      %v268 = vunpack.c.l.b16 %v180
      %v269 = vunpack.c.h.b16 %v180
      %v270 = vunpack.c.l.b16 %v181
      %v271 = vunpack.c.h.b16 %v181
      %v272 = vunpack.c.l.b16 %v182
      %v273 = vunpack.c.h.b16 %v182
      %v274 = vunpack.c.l.b16 %v183
      %v275 = vunpack.c.h.b16 %v183
      %v276 = vunpack.c.l.b16 %v184
      %v277 = vunpack.c.h.b16 %v184
      %v278 = vunpack.c.l.b16 %v185
      %v279 = vunpack.c.h.b16 %v185
      %v280 = vunpack.c.l.b16 %v186
      %v281 = vunpack.c.h.b16 %v186
      %v282 = vunpack.c.l.b16 %v187
      %v283 = vunpack.c.h.b16 %v187
      %v284 = vunpack.c.l.b16 %v188
      %v285 = vunpack.c.h.b16 %v188
      %v286 = vunpack.c.l.b16 %v189
      %v287 = vunpack.c.h.b16 %v189
      %v288 = vunpack.c.l.b16 %v190
      %v289 = vunpack.c.h.b16 %v190
      %v290 = vunpack.c.l.b16 %v191
      %v291 = vunpack.c.h.b16 %v191
      %v292 = vunpack.c.l.b16 %v192
      %v293 = vunpack.c.h.b16 %v192
      %v294 = vunpack.c.l.b16 %v193
      %v295 = vunpack.c.h.b16 %v193
      %v296 = vunpack.c.l.b16 %v194
      %v297 = vunpack.c.h.b16 %v194
      %v298 = vunpack.c.l.b16 %v195
      %v299 = vunpack.c.h.b16 %v195
      %v300 = vpack.c.b16 %v266, %v264
      %v301 = vpack.c.b16 %v267, %v265
      %v302 = vpack.c.b16 %v270, %v268
      %v303 = vpack.c.b16 %v271, %v269
      %v304 = vpack.c.b16 %v274, %v272
      %v305 = vpack.c.b16 %v275, %v273
      %v306 = vpack.c.b16 %v278, %v276
      %v307 = vpack.c.b16 %v279, %v277
      %v308 = vpack.c.b16 %v282, %v280
      %v309 = vpack.c.b16 %v283, %v281
      %v310 = vpack.c.b16 %v286, %v284
      %v311 = vpack.c.b16 %v287, %v285
      %v312 = vpack.c.b16 %v290, %v288
      %v313 = vpack.c.b16 %v291, %v289
      %v314 = vpack.c.b16 %v294, %v292
      %v315 = vpack.c.b16 %v295, %v293
      %v316 = vpack.c.b16 %v298, %v296
      %v317 = vpack.c.b16 %v299, %v297
      %v359 = vunpack.c.l.b16 %v196
      %v360 = vunpack.c.l.b16 %v197
      %v361 = vunpack.c.l.b16 %v198
      %v362 = vunpack.c.l.b16 %v199
      %v363 = vunpack.c.l.b16 %v200
      %v364 = vunpack.c.l.b16 %v201
      %v365 = vunpack.c.l.b16 %v202
      %v366 = vunpack.c.l.b16 %v203
      %v367 = vunpack.c.l.b16 %v204
      %v368 = vunpack.c.l.b16 %v205
      %v369 = vunpack.c.l.b16 %v206
      %v370 = vunpack.c.l.b16 %v207
      %v371 = vunpack.c.l.b16 %v208
      %v372 = vunpack.c.l.b16 %v209
      %v373 = vunpack.c.l.b16 %v210
      %v374 = vunpack.c.l.b16 %v211
      %v375 = vunpack.c.l.b16 %v212
      %v376 = vunpack.c.l.b16 %v213
      %v377 = vunpack.c.l.b16 %v214
      %v378 = vunpack.c.l.b16 %v215
      %v379 = vunpack.c.l.b16 %v216
      %v380 = vunpack.c.l.b16 %v217
      %v381 = vunpack.c.l.b16 %v218
      %v382 = vunpack.c.l.b16 %v219
      %v383 = vunpack.c.l.b16 %v220
      %v384 = vunpack.c.l.b16 %v221
      %v385 = vunpack.c.l.b16 %v222
      %v386 = vunpack.c.l.b16 %v223
      %v387 = vunpack.c.l.b16 %v224
      %v388 = vunpack.c.l.b16 %v225
      %v389 = vunpack.c.l.b16 %v226
      %v390 = vunpack.c.l.b16 %v227
      %v391 = vpack.c.b16 %v360, %v359
      %v392 = vpack.c.b16 %v362, %v361
      %v393 = vpack.c.b16 %v364, %v363
      %v394 = vpack.c.b16 %v366, %v365
      %v395 = vpack.c.b16 %v368, %v367
      %v396 = vpack.c.b16 %v370, %v369
      %v397 = vpack.c.b16 %v372, %v371
      %v398 = vpack.c.b16 %v374, %v373
      %v399 = vpack.c.b16 %v376, %v375
      %v400 = vpack.c.b16 %v378, %v377
      %v401 = vpack.c.b16 %v380, %v379
      %v402 = vpack.c.b16 %v382, %v381
      %v403 = vpack.c.b16 %v384, %v383
      %v404 = vpack.c.b16 %v386, %v385
      %v405 = vpack.c.b16 %v388, %v387
      %v406 = vpack.c.b16 %v390, %v389
      %vm422 = vcmask 998400
      %v424 = vsel %vm422, %v301, 0
      %v427 = vsel %vm422, %v303, 0
      %v430 = vsel %vm422, %v305, 0
      %v433 = vsel %vm422, %v307, 0
      %v436 = vsel %vm422, %v309, 0
      %v439 = vsel %vm422, %v311, 0
      %v442 = vsel %vm422, %v313, 0
      %v445 = vsel %vm422, %v315, 0
      %v448 = vsel %vm422, %v317, 0
      %vm450 = vcmask 1044480
      %v452 = vsel %vm450, %v406, 0
      %454 = vmatprep.subr.bf16.mxu0 0
      %455 = vmatpush1.bf16.msra.mxu0 %v398
      %456 = vmatprep.subr.bf16.mxu0 0
      %457 = vmatpush1.bf16.msra.mxu0 %v397
      %458 = vmatprep.subr.bf16.mxu0 0
      %459 = vmatpush1.bf16.msra.mxu0 %v396
      %460 = vmatprep.subr.bf16.mxu0 0
      %461 = vmatpush1.bf16.msra.mxu0 %v395
      %462 = vmatprep.subr.bf16.mxu0 0
      %463 = vmatpush1.bf16.msra.mxu0 %v394
      %464 = vmatprep.subr.bf16.mxu0 0
      %465 = vmatpush1.bf16.msra.mxu0 %v393
      %466 = vmatprep.subr.bf16.mxu0 0
      %467 = vmatpush1.bf16.msra.mxu0 %v392
      %468 = vmatprep.subr.bf16.mxu0 0
      %469 = vmatpush1.bf16.msra.mxu0 %v391
      %470 = vmatprep.subr.bf16.mxu0 0
      %471 = vmatpush2.bf16.msra.mxu0 %v452
      %472 = vmatprep.subr.bf16.mxu0 0
      %473 = vmatpush2.bf16.msra.mxu0 %v405
      %474 = vmatprep.subr.bf16.mxu0 0
      %475 = vmatpush2.bf16.msra.mxu0 %v404
      %476 = vmatprep.subr.bf16.mxu0 0
      %477 = vmatpush2.bf16.msra.mxu0 %v403
      %478 = vmatprep.subr.bf16.mxu0 0
      %479 = vmatpush2.bf16.msra.mxu0 %v402
      %480 = vmatprep.subr.bf16.mxu0 0
      %481 = vmatpush2.bf16.msra.mxu0 %v401
      %482 = vmatprep.subr.bf16.mxu0 0
      %483 = vmatpush2.bf16.msra.mxu0 %v400
      %484 = vmatprep.subr.bf16.mxu0 0
      %485 = vmatpush2.bf16.msra.mxu0 %v399
      %486 = vmatprep.mubr.bf16.mxu0 %v424
      %487 = vmatmul.mubr.bf16.gmra.mxu0 %v300
      %v488 = vpop.f32.mrf.mxu0
      %v489 = vadd.f32 %v228, %v488
      %v490 = vpop.f32.mrf.mxu0
      %v491 = vpop.f32.mrf.mxu0
      %v492 = vadd.f32 %v229, %v491
      %v493 = vpop.f32.mrf.mxu0
      %494 = vmatprep.mubr.bf16.mxu0 %v427
      %495 = vmatmul.mubr.bf16.gmra.mxu0 %v302
      %v496 = vpop.f32.mrf.mxu0
      %v497 = vadd.f32 %v230, %v496
      %v498 = vpop.f32.mrf.mxu0
      %v499 = vpop.f32.mrf.mxu0
      %v500 = vadd.f32 %v231, %v499
      %v501 = vpop.f32.mrf.mxu0
      %502 = vmatprep.mubr.bf16.mxu0 %v430
      %503 = vmatmul.mubr.bf16.gmra.mxu0 %v304
      %v504 = vpop.f32.mrf.mxu0
      %v505 = vadd.f32 %v232, %v504
      %v506 = vpop.f32.mrf.mxu0
      %v507 = vpop.f32.mrf.mxu0
      %v508 = vadd.f32 %v233, %v507
      %v509 = vpop.f32.mrf.mxu0
      %510 = vmatprep.mubr.bf16.mxu0 %v433
      %511 = vmatmul.mubr.bf16.gmra.mxu0 %v306
      %v512 = vpop.f32.mrf.mxu0
      %v513 = vadd.f32 %v234, %v512
      %v514 = vpop.f32.mrf.mxu0
      %v515 = vpop.f32.mrf.mxu0
      %v516 = vadd.f32 %v235, %v515
      %v517 = vpop.f32.mrf.mxu0
      %518 = vmatprep.mubr.bf16.mxu0 %v436
      %519 = vmatmul.mubr.bf16.gmra.mxu0 %v308
      %v520 = vpop.f32.mrf.mxu0
      %v521 = vadd.f32 %v236, %v520
      %v522 = vpop.f32.mrf.mxu0
      %v523 = vpop.f32.mrf.mxu0
      %v524 = vadd.f32 %v237, %v523
      %v525 = vpop.f32.mrf.mxu0
      %526 = vmatprep.mubr.bf16.mxu0 %v439
      %527 = vmatmul.mubr.bf16.gmra.mxu0 %v310
      %v528 = vpop.f32.mrf.mxu0
      %v529 = vadd.f32 %v238, %v528
      %v530 = vpop.f32.mrf.mxu0
      %v531 = vpop.f32.mrf.mxu0
      %v532 = vadd.f32 %v239, %v531
      %v533 = vpop.f32.mrf.mxu0
      %534 = vmatprep.mubr.bf16.mxu0 %v442
      %535 = vmatmul.mubr.bf16.gmra.mxu0 %v312
      %v536 = vpop.f32.mrf.mxu0
      %v537 = vadd.f32 %v240, %v536
      %v538 = vpop.f32.mrf.mxu0
      %v539 = vpop.f32.mrf.mxu0
      %v540 = vadd.f32 %v241, %v539
      %v541 = vpop.f32.mrf.mxu0
      %542 = vmatprep.mubr.bf16.mxu0 %v445
      %543 = vmatmul.mubr.bf16.gmra.mxu0 %v314
      %v544 = vpop.f32.mrf.mxu0
      %v545 = vadd.f32 %v242, %v544
      %v546 = vpop.f32.mrf.mxu0
      %v547 = vpop.f32.mrf.mxu0
      %v548 = vadd.f32 %v243, %v547
      %v549 = vpop.f32.mrf.mxu0
      %550 = vmatprep.mubr.bf16.mxu0 %v448
      %551 = vmatmul.mubr.bf16.gmra.mxu0 %v316
      %v552 = vpop.f32.mrf.mxu0
      %v553 = vadd.f32 %v244, %v552
      %v554 = vpop.f32.mrf.mxu0
      %v555 = vpop.f32.mrf.mxu0
      %v556 = vadd.f32 %v245, %v555
      %v557 = vpop.f32.mrf.mxu0
      %558 = vdwg.mxu0
      %vm559 = vcmask 719872
      %560 = vst.msk [vmem:[%s175] sm:$0xff] %vm559, %v489
      %561 = vst.msk [vmem:[%s175 + $0x8] sm:$0xff] %vm559, %v492
      %562 = vst.msk [vmem:[%s175 + $0x10] sm:$0xff] %vm559, %v497
      %563 = vst.msk [vmem:[%s175 + $0x18] sm:$0xff] %vm559, %v500
      %564 = vst.msk [vmem:[%s175 + $0x20] sm:$0xff] %vm559, %v505
      %565 = vst.msk [vmem:[%s175 + $0x28] sm:$0xff] %vm559, %v508
      %566 = vst.msk [vmem:[%s175 + $0x30] sm:$0xff] %vm559, %v513
      %567 = vst.msk [vmem:[%s175 + $0x38] sm:$0xff] %vm559, %v516
      %568 = vst.msk [vmem:[%s175 + $0x40] sm:$0xff] %vm559, %v521
      %569 = vst.msk [vmem:[%s175 + $0x48] sm:$0xff] %vm559, %v524
      %570 = vst.msk [vmem:[%s175 + $0x50] sm:$0xff] %vm559, %v529
      %571 = vst.msk [vmem:[%s175 + $0x58] sm:$0xff] %vm559, %v532
      %572 = vst.msk [vmem:[%s175 + $0x60] sm:$0xff] %vm559, %v537
      %573 = vst.msk [vmem:[%s175 + $0x68] sm:$0xff] %vm559, %v540
      %574 = vst.msk [vmem:[%s175 + $0x70] sm:$0xff] %vm559, %v545
      %575 = vst.msk [vmem:[%s175 + $0x78] sm:$0xff] %vm559, %v548
      %576 = vst.msk [vmem:[%s175 + $0x80] sm:$0xff] %vm559, %v553
      %577 = vst.msk [vmem:[%s175 + $0x88] sm:$0xff] %vm559, %v556
      %s578 = smul.u32 18, %s14
      %p579 = scmp.lt.s32.totalorder %s578, 35
      %s580 = scalar_select %p579, %s578, 35
      %s581 = smul.addr %s580, 8
      %s582 = scalar_lea.vmem %s3, %s581
      // Predicated region
      $region33: #{net_forward.8} parent=31 // pred_check
        %p583 = pneg %p100
      $region34: #{net_forward.8} parent=31 // pred_check_branch
        %585 = sbr.rel (%p583) target = $region36
      $region35: #{net_forward.8} parent=31 // pred_region
        %s586 = smul.u32 18, %s14
      $region36: #{net_forward.8} parent=31 // pred_fallthru
        _
    $region32: #{net_forward.8} parent=5 // pred_fallthru
      _
    %p587 = scmp.le.s32.totalorder 2, %s9
    // Predicated region
    $region37: #{net_forward.8} parent=5 // pred_check
      %p588 = pneg %p587
    $region38: #{net_forward.8} parent=5 // pred_check_branch
      %590 = sbr.rel (%p588) target = $region40
    $region39: #{net_forward.8} parent=5 // pred_region
      %s591 = ssub.s32 %s9, 2
      // Predicated region
      $region41: #{net_forward.8} parent=39 // pred_check
        %p592 = pneg %p106
      $region42: #{net_forward.8} parent=39 // pred_check_branch
        %594 = sbr.rel (%p592) target = $region44
      $region43: #{net_forward.8} parent=39 // pred_region
        %s595 = smul.u32 18, %s15
        %p596 = scmp.lt.s32.totalorder %s595, 35
        %s597 = scalar_select %p596, %s595, 35
        %s598 = smul.addr %s597, 8
        %s599 = scalar_lea.vmem %s3, %s598
      $region44: #{net_forward.8} parent=39 // pred_fallthru
        _
    $region40: #{net_forward.8} parent=5 // pred_fallthru
      _
  $region6: #{net_forward.8} parent=0 // loop_footer
    %s13 = sadd.s32 1, %s9
  $region7: #{net_forward.8} parent=0 // loop_footer_branch
    %8 = sbr.rel target = $region3
  $region8: #{net_forward.8} parent=0 // loop_exit
    _

// kernel: net_forward.9
$region0: #{net_forward.9}
  #allocation0 [shape = 'u32[]', space=smem, size = 0x4, offset = 0x4, fixed_abs, tag = 'smem constant byte address 0x4 - core index']
  #allocation1 [shape = 'u32[144,128]{1,0:T(1,128)}', space=vmem, size = 0x12000, scoped, tag = 'internal scratch']
  %s0 = inlined_call_operand.vmem [shape: bf16[288,216], index: 0, kind: input, shape index: {}]
  %s1 = inlined_call_operand.vmem [shape: bf16[216,24], index: 1, kind: input, shape index: {}]
  %s2 = inlined_call_operand.vmem [shape: f32[1,24], index: 2, kind: input, shape index: {}]
  %s3 = inlined_call_operand.vmem [shape: f32[288,24], index: 3, kind: output, shape index: {}]
  %s4 = sld [smem:[#allocation0]]
  $region45: #{net_forward.9} parent=0
    _
  %s6 = ssub.s32 1, %s4
  %s7 = scalar_select 0, %s6, %s4
  loop: start=0, step=1, limit=4
  $region2: #{net_forward.9} parent=0 // loop_pre_header
    _
  $region3: #{net_forward.9} parent=0 // loop_header
    %s9 = sphi 0, %s13
    %p10 = scmp.ge.s32.totalorder %s9, 4
    %s19 = sphi 0, %s21
    %s22 = sphi 0, %s19
    %s23 = sphi 0, %s22
    %s39 = sphi 0, %s23
    %s43 = sphi 0, %s43
    %s45 = sphi 0, %s43
    %s46 = sphi 0, %s45
    %s60 = sphi 0, %s46
    %s64 = sphi 0, %s64
    %s66 = sphi 0, %s64
    %s67 = sphi 0, %s66
    %s81 = sphi 0, %s67
    %s87 = sphi 0, %s89
    %s90 = sphi 0, %s87
    %s91 = sphi 0, %s90
    %s107 = sphi 0, %s91
  $region4: #{net_forward.9} parent=0 // loop_header_branch
    %12 = sbr.rel (%p10) target = $region8
  $region5: #{net_forward.9} parent=0 // loop_body
    %s14 = ssub.s32 %s9, 1
    %s15 = ssub.s32 %s9, 2
    %s16 = sadd.s32 %s9, 1
    %s17 = ssub.s32 %s9, %s16
    %p18 = scmp.eq.s32.totalorder %s17, 0
    %s20 = sadd.s32 %s19, 1
    %s21 = scalar_select %p18, %s19, %s20
    %p24 = pneg %p18
    %p25 = scmp.eq.s32.totalorder %s9, 1
    %p26 = por %p24, %p25
    %p27 = scmp.ne.s32.totalorder %s19, %s22
    %p28 = scmp.eq.s32.totalorder %s9, 0
    %p29 = por %p27, %p28
    %p30 = scmp.ne.s32.totalorder %s19, %s22
    %p31 = scmp.eq.s32.totalorder %s14, 1
    %p32 = por %p30, %p31
    %p33 = scmp.ne.s32.totalorder %s22, %s23
    %p34 = scmp.eq.s32.totalorder %s14, 0
    %p35 = por %p33, %p34
    %p36 = scmp.ne.s32.totalorder %s22, %s23
    %p37 = scmp.eq.s32.totalorder %s15, 1
    %p38 = por %p36, %p37
    %p40 = scmp.ne.s32.totalorder %s23, %s39
    %p41 = scmp.eq.s32.totalorder %s15, 0
    %p42 = por %p40, %p41
    %s44 = sadd.s32 %s43, 1
    %p47 = scmp.eq.s32.totalorder %s9, 1
    %p48 = scmp.ne.s32.totalorder %s43, %s45
    %p49 = scmp.eq.s32.totalorder %s9, 0
    %p50 = por %p48, %p49
    %p51 = scmp.ne.s32.totalorder %s43, %s45
    %p52 = scmp.eq.s32.totalorder %s14, 1
    %p53 = por %p51, %p52
    %p54 = scmp.ne.s32.totalorder %s45, %s46
    %p55 = scmp.eq.s32.totalorder %s14, 0
    %p56 = por %p54, %p55
    %p57 = scmp.ne.s32.totalorder %s45, %s46
    %p58 = scmp.eq.s32.totalorder %s15, 1
    %p59 = por %p57, %p58
    %p61 = scmp.ne.s32.totalorder %s46, %s60
    %p62 = scmp.eq.s32.totalorder %s15, 0
    %p63 = por %p61, %p62
    %s65 = sadd.s32 %s64, 1
    %p68 = scmp.eq.s32.totalorder %s9, 1
    %p69 = scmp.ne.s32.totalorder %s64, %s66
    %p70 = scmp.eq.s32.totalorder %s9, 0
    %p71 = por %p69, %p70
    %p72 = scmp.ne.s32.totalorder %s64, %s66
    %p73 = scmp.eq.s32.totalorder %s14, 1
    %p74 = por %p72, %p73
    %p75 = scmp.ne.s32.totalorder %s66, %s67
    %p76 = scmp.eq.s32.totalorder %s14, 0
    %p77 = por %p75, %p76
    %p78 = scmp.ne.s32.totalorder %s66, %s67
    %p79 = scmp.eq.s32.totalorder %s15, 1
    %p80 = por %p78, %p79
    %p82 = scmp.ne.s32.totalorder %s67, %s81
    %p83 = scmp.eq.s32.totalorder %s15, 0
    %p84 = por %p82, %p83
    %s85 = ssub.s32 %s9, %s16
    %p86 = scmp.eq.s32.totalorder %s85, 0
    %s88 = sadd.s32 %s87, 1
    %s89 = scalar_select %p86, %s87, %s88
    %p92 = pneg %p86
    %p93 = scmp.eq.s32.totalorder %s9, 1
    %p94 = por %p92, %p93
    %p95 = scmp.ne.s32.totalorder %s87, %s90
    %p96 = scmp.eq.s32.totalorder %s9, 0
    %p97 = por %p95, %p96
    %p98 = scmp.ne.s32.totalorder %s87, %s90
    %p99 = scmp.eq.s32.totalorder %s14, 1
    %p100 = por %p98, %p99
    %p101 = scmp.ne.s32.totalorder %s90, %s91
    %p102 = scmp.eq.s32.totalorder %s14, 0
    %p103 = por %p101, %p102
    %p104 = scmp.ne.s32.totalorder %s90, %s91
    %p105 = scmp.eq.s32.totalorder %s15, 1
    %p106 = por %p104, %p105
    %p108 = scmp.ne.s32.totalorder %s91, %s107
    %p109 = scmp.eq.s32.totalorder %s15, 0
    %p110 = por %p108, %p109
    %p111 = scmp.le.s32.totalorder 1, %s9
    %p112 = scmp.lt.s32.totalorder %s9, 3
    %p113 = pnand %p111, %p112
    %p114 = pneg %p113
    // Predicated region
    $region9: #{net_forward.9} parent=5 // pred_check
      _
    $region10: #{net_forward.9} parent=5 // pred_check_branch
      %116 = sbr.rel (%p113) target = $region12
    $region11: #{net_forward.9} parent=5 // pred_region
      %s117 = ssub.s32 %s9, 1
      // Predicated region
      $region13: #{net_forward.9} parent=11 // pred_check
        %p118 = pneg %p56
      $region14: #{net_forward.9} parent=11 // pred_check_branch
        %120 = sbr.rel (%p118) target = $region16
      $region15: #{net_forward.9} parent=11 // pred_region
        _
      $region16: #{net_forward.9} parent=11 // pred_fallthru
        _
      // Predicated region
      $region17: #{net_forward.9} parent=11 // pred_check
        %p121 = pneg %p77
      $region18: #{net_forward.9} parent=11 // pred_check_branch
        %123 = sbr.rel (%p121) target = $region20
      $region19: #{net_forward.9} parent=11 // pred_region
        _
      $region20: #{net_forward.9} parent=11 // pred_fallthru
        _
    $region12: #{net_forward.9} parent=5 // pred_fallthru
      _
    %p124 = scmp.lt.s32.totalorder %s9, 2
    // Predicated region
    $region21: #{net_forward.9} parent=5 // pred_check
      %p125 = pneg %p124
    $region22: #{net_forward.9} parent=5 // pred_check_branch
      %127 = sbr.rel (%p125) target = $region24
    $region23: #{net_forward.9} parent=5 // pred_region
      // Predicated region
      $region25: #{net_forward.9} parent=23 // pred_check
        %p128 = pneg %p29
      $region26: #{net_forward.9} parent=23 // pred_check_branch
        %130 = sbr.rel (%p128) target = $region28
      $region27: #{net_forward.9} parent=23 // pred_region
        %s131 = smul.u32 18, %s9
        %p132 = scmp.lt.s32.totalorder %s131, 35
        %s133 = scalar_select %p132, %s131, 35
        %s134 = smul.addr %s133, 2
        %s135 = smul.addr %s134, 4
        %s136 = scalar_lea.vmem %s0, %s135
        %s137 = smul.u32 18, %s9
      $region28: #{net_forward.9} parent=23 // pred_fallthru
        _
    $region24: #{net_forward.9} parent=5 // pred_fallthru
      _
    %p138 = scmp.le.s32.totalorder 1, %s9
    %p139 = scmp.lt.s32.totalorder %s9, 3
    %p140 = pnand %p138, %p139
    %p141 = pneg %p140
    // Predicated region
    $region29: #{net_forward.9} parent=5 // pred_check
      _
    $region30: #{net_forward.9} parent=5 // pred_check_branch
      %143 = sbr.rel (%p140) target = $region32
    $region31: #{net_forward.9} parent=5 // pred_region
      %s144 = ssub.s32 %s9, 1
      %s145 = smul.u32 18, %s14
      %p146 = scmp.lt.s32.totalorder %s145, 35
      %s147 = scalar_select %p146, %s145, 35
      %s148 = smul.addr %s147, 2
      %s149 = smul.addr %s148, 4
      %s150 = scalar_lea.vmem %s0, %s149
      %p151 = pneg %p35
      %p152 = pneg %p32
      %p153 = pneg %p56
      %p154 = pneg %p53
      %p155 = pneg %p77
      %p156 = pneg %p74
      %p157 = pneg %p103
      %p158 = pneg %p100
      %s159 = smul.u32 18, %s14
      %p160 = scmp.lt.s32.totalorder %s159, 35
      %s161 = scalar_select %p160, %s159, 35
      %s162 = smul.addr %s161, 8
      %s163 = scalar_lea.vmem %s3, %s162
      %s164 = smul.u32 18, %s14
      %p165 = scmp.lt.s32.totalorder %s164, 35
      %s166 = scalar_select %p165, %s164, 35
      %s167 = smul.addr %s166, 2
      %s168 = smul.addr %s167, 4
      %s169 = scalar_lea.vmem %s0, %s168
      %s170 = smul.u32 18, %s14
      %s171 = smul.u32 18, %s14
      %p172 = scmp.lt.s32.totalorder %s171, 35
      %s173 = scalar_select %p172, %s171, 35
      %s174 = smul.addr %s173, 8
      %s175 = scalar_lea.vmem %s3, %s174
      %s176 = smul.u32 18, %s14
      %v178 = vld [vmem:[%s169] sm:$0xff]
      %v179 = vld [vmem:[%s169 + $0x8] sm:$0xff]
      %v180 = vld [vmem:[%s169 + $0x10] sm:$0xff]
      %v181 = vld [vmem:[%s169 + $0x18] sm:$0xff]
      %v182 = vld [vmem:[%s169 + $0x20] sm:$0xff]
      %v183 = vld [vmem:[%s169 + $0x28] sm:$0xff]
      %v184 = vld [vmem:[%s169 + $0x30] sm:$0xff]
      %v185 = vld [vmem:[%s169 + $0x38] sm:$0xff]
      %v186 = vld [vmem:[%s169 + $0x40] sm:$0xff]
      %v187 = vld [vmem:[%s169 + $0x48] sm:$0xff]
      %v188 = vld [vmem:[%s169 + $0x50] sm:$0xff]
      %v189 = vld [vmem:[%s169 + $0x58] sm:$0xff]
      %v190 = vld [vmem:[%s169 + $0x60] sm:$0xff]
      %v191 = vld [vmem:[%s169 + $0x68] sm:$0xff]
      %v192 = vld [vmem:[%s169 + $0x70] sm:$0xff]
      %v193 = vld [vmem:[%s169 + $0x78] sm:$0xff]
      %v194 = vld [vmem:[%s169 + $0x80] sm:$0xff]
      %v195 = vld [vmem:[%s169 + $0x88] sm:$0xff]
      %v196 = vld [vmem:[%s1] sm:$0xf]
      %v197 = vld [vmem:[%s1 + $0x4] sm:$0xf]
      %v198 = vld [vmem:[%s1 + $0x8] sm:$0xf]
      %v199 = vld [vmem:[%s1 + $0xc] sm:$0xf]
      %v200 = vld [vmem:[%s1 + $0x10] sm:$0xf]
      %v201 = vld [vmem:[%s1 + $0x14] sm:$0xf]
      %v202 = vld [vmem:[%s1 + $0x18] sm:$0xf]
      %v203 = vld [vmem:[%s1 + $0x1c] sm:$0xf]
      %v204 = vld [vmem:[%s1 + $0x20] sm:$0xf]
      %v205 = vld [vmem:[%s1 + $0x24] sm:$0xf]
      %v206 = vld [vmem:[%s1 + $0x28] sm:$0xf]
      %v207 = vld [vmem:[%s1 + $0x2c] sm:$0xf]
      %v208 = vld [vmem:[%s1 + $0x30] sm:$0xf]
      %v209 = vld [vmem:[%s1 + $0x34] sm:$0xf]
      %v210 = vld [vmem:[%s1 + $0x38] sm:$0xf]
      %v211 = vld [vmem:[%s1 + $0x3c] sm:$0xf]
      %v212 = vld [vmem:[%s1 + $0x40] sm:$0xf]
      %v213 = vld [vmem:[%s1 + $0x44] sm:$0xf]
      %v214 = vld [vmem:[%s1 + $0x48] sm:$0xf]
      %v215 = vld [vmem:[%s1 + $0x4c] sm:$0xf]
      %v216 = vld [vmem:[%s1 + $0x50] sm:$0xf]
      %v217 = vld [vmem:[%s1 + $0x54] sm:$0xf]
      %v218 = vld [vmem:[%s1 + $0x58] sm:$0xf]
      %v219 = vld [vmem:[%s1 + $0x5c] sm:$0xf]
      %v220 = vld [vmem:[%s1 + $0x60] sm:$0xf]
      %v221 = vld [vmem:[%s1 + $0x64] sm:$0xf]
      %v222 = vld [vmem:[%s1 + $0x68] sm:$0xf]
      %v223 = vld [vmem:[%s2] sm:$0x1]
      %v225 = vlaneseq
      %v226 = vshrl.u32 %v225, 7
      %v227 = vsub.s32 0, %v226
      %v228 = vrot.slane %v223, %v227
      %v248 = vunpack.c.l.b16 %v178
      %v249 = vunpack.c.h.b16 %v178
      %v250 = vunpack.c.l.b16 %v179
      %v251 = vunpack.c.h.b16 %v179
      %v252 = vunpack.c.l.b16 %v180
      %v253 = vunpack.c.h.b16 %v180
      %v254 = vunpack.c.l.b16 %v181
      %v255 = vunpack.c.h.b16 %v181
      %v256 = vunpack.c.l.b16 %v182
      %v257 = vunpack.c.h.b16 %v182
      %v258 = vunpack.c.l.b16 %v183
      %v259 = vunpack.c.h.b16 %v183
      %v260 = vunpack.c.l.b16 %v184
      %v261 = vunpack.c.h.b16 %v184
      %v262 = vunpack.c.l.b16 %v185
      %v263 = vunpack.c.h.b16 %v185
      %v264 = vunpack.c.l.b16 %v186
      %v265 = vunpack.c.h.b16 %v186
      %v266 = vunpack.c.l.b16 %v187
      %v267 = vunpack.c.h.b16 %v187
      %v268 = vunpack.c.l.b16 %v188
      %v269 = vunpack.c.h.b16 %v188
      %v270 = vunpack.c.l.b16 %v189
      %v271 = vunpack.c.h.b16 %v189
      %v272 = vunpack.c.l.b16 %v190
      %v273 = vunpack.c.h.b16 %v190
      %v274 = vunpack.c.l.b16 %v191
      %v275 = vunpack.c.h.b16 %v191
      %v276 = vunpack.c.l.b16 %v192
      %v277 = vunpack.c.h.b16 %v192
      %v278 = vunpack.c.l.b16 %v193
      %v279 = vunpack.c.h.b16 %v193
      %v280 = vunpack.c.l.b16 %v194
      %v281 = vunpack.c.h.b16 %v194
      %v282 = vunpack.c.l.b16 %v195
      %v283 = vunpack.c.h.b16 %v195
      %v284 = vpack.c.b16 %v250, %v248
      %v285 = vpack.c.b16 %v251, %v249
      %v286 = vpack.c.b16 %v254, %v252
      %v287 = vpack.c.b16 %v255, %v253
      %v288 = vpack.c.b16 %v258, %v256
      %v289 = vpack.c.b16 %v259, %v257
      %v290 = vpack.c.b16 %v262, %v260
      %v291 = vpack.c.b16 %v263, %v261
      %v292 = vpack.c.b16 %v266, %v264
      %v293 = vpack.c.b16 %v267, %v265
      %v294 = vpack.c.b16 %v270, %v268
      %v295 = vpack.c.b16 %v271, %v269
      %v296 = vpack.c.b16 %v274, %v272
      %v297 = vpack.c.b16 %v275, %v273
      %v298 = vpack.c.b16 %v278, %v276
      %v299 = vpack.c.b16 %v279, %v277
      %v300 = vpack.c.b16 %v282, %v280
      %v301 = vpack.c.b16 %v283, %v281
      %v338 = vunpack.c.l.b16 %v196
      %v339 = vunpack.c.l.b16 %v197
      %v340 = vunpack.c.l.b16 %v198
      %v341 = vunpack.c.l.b16 %v199
      %v342 = vunpack.c.l.b16 %v200
      %v343 = vunpack.c.l.b16 %v201
      %v344 = vunpack.c.l.b16 %v202
      %v345 = vunpack.c.l.b16 %v203
      %v346 = vunpack.c.l.b16 %v204
      %v347 = vunpack.c.l.b16 %v205
      %v348 = vunpack.c.l.b16 %v206
      %v349 = vunpack.c.l.b16 %v207
      %v350 = vunpack.c.l.b16 %v208
      %v351 = vunpack.c.l.b16 %v209
      %v352 = vunpack.c.l.b16 %v210
      %v353 = vunpack.c.l.b16 %v211
      %v354 = vunpack.c.l.b16 %v212
      %v355 = vunpack.c.l.b16 %v213
      %v356 = vunpack.c.l.b16 %v214
      %v357 = vunpack.c.l.b16 %v215
      %v358 = vunpack.c.l.b16 %v216
      %v359 = vunpack.c.l.b16 %v217
      %v360 = vunpack.c.l.b16 %v218
      %v361 = vunpack.c.l.b16 %v219
      %v362 = vunpack.c.l.b16 %v220
      %v363 = vunpack.c.l.b16 %v221
      %v364 = vunpack.c.l.b16 %v222
      %v365 = vpack.c.b16 %v339, %v338
      %v366 = vpack.c.b16 %v341, %v340
      %v367 = vpack.c.b16 %v343, %v342
      %v368 = vpack.c.b16 %v345, %v344
      %v369 = vpack.c.b16 %v347, %v346
      %v370 = vpack.c.b16 %v349, %v348
      %v371 = vpack.c.b16 %v351, %v350
      %v372 = vpack.c.b16 %v353, %v352
      %v373 = vpack.c.b16 %v355, %v354
      %v374 = vpack.c.b16 %v357, %v356
      %v375 = vpack.c.b16 %v359, %v358
      %v376 = vpack.c.b16 %v361, %v360
      %v377 = vpack.c.b16 %v363, %v362
      %v378 = vpack.c.b16 %v364, %v364
      %vm392 = vcmask 719872
      %v394 = vsel %vm392, %v285, 0
      %v397 = vsel %vm392, %v287, 0
      %v400 = vsel %vm392, %v289, 0
      %v403 = vsel %vm392, %v291, 0
      %v406 = vsel %vm392, %v293, 0
      %v409 = vsel %vm392, %v295, 0
      %v412 = vsel %vm392, %v297, 0
      %v415 = vsel %vm392, %v299, 0
      %v418 = vsel %vm392, %v301, 0
      %vm420 = vcmask 1043456
      %v422 = vsel %vm420, %v378, 0
      %424 = vmatprep.subr.bf16.mxu0 0
      %425 = vmatpush1.bf16.msra.mxu0 %v372
      %426 = vmatprep.subr.bf16.mxu0 0
      %427 = vmatpush1.bf16.msra.mxu0 %v371
      %428 = vmatprep.subr.bf16.mxu0 0
      %429 = vmatpush1.bf16.msra.mxu0 %v370
      %430 = vmatprep.subr.bf16.mxu0 0
      %431 = vmatpush1.bf16.msra.mxu0 %v369
      %432 = vmatprep.subr.bf16.mxu0 0
      %433 = vmatpush1.bf16.msra.mxu0 %v368
      %434 = vmatprep.subr.bf16.mxu0 0
      %435 = vmatpush1.bf16.msra.mxu0 %v367
      %436 = vmatprep.subr.bf16.mxu0 0
      %437 = vmatpush1.bf16.msra.mxu0 %v366
      %438 = vmatprep.subr.bf16.mxu0 0
      %439 = vmatpush1.bf16.msra.mxu0 %v365
      %440 = vmatprep.subr.bf16.mxu0 0
      %441 = vmatpush2.bf16.msra.mxu0 0
      %442 = vmatprep.subr.bf16.mxu0 0
      %443 = vmatpush2.bf16.msra.mxu0 0
      %444 = vmatprep.subr.bf16.mxu0 0
      %445 = vmatpush2.bf16.msra.mxu0 %v422
      %446 = vmatprep.subr.bf16.mxu0 0
      %447 = vmatpush2.bf16.msra.mxu0 %v377
      %448 = vmatprep.subr.bf16.mxu0 0
      %449 = vmatpush2.bf16.msra.mxu0 %v376
      %450 = vmatprep.subr.bf16.mxu0 0
      %451 = vmatpush2.bf16.msra.mxu0 %v375
      %452 = vmatprep.subr.bf16.mxu0 0
      %453 = vmatpush2.bf16.msra.mxu0 %v374
      %454 = vmatprep.subr.bf16.mxu0 0
      %455 = vmatpush2.bf16.msra.mxu0 %v373
      %456 = vmatprep.mubr.bf16.mxu0 %v394
      %457 = vmatmul.mubr.bf16.gmra.mxu0 %v284
      %v458 = vpop.f32.mrf.mxu0
      %v459 = vadd.f32 %v228, %v458
      %v460 = vpop.f32.mrf.mxu0
      %v461 = vpop.f32.mrf.mxu0
      %v462 = vadd.f32 %v228, %v461
      %v463 = vpop.f32.mrf.mxu0
      %464 = vmatprep.mubr.bf16.mxu0 %v397
      %465 = vmatmul.mubr.bf16.gmra.mxu0 %v286
      %v466 = vpop.f32.mrf.mxu0
      %v467 = vadd.f32 %v228, %v466
      %v468 = vpop.f32.mrf.mxu0
      %v469 = vpop.f32.mrf.mxu0
      %v470 = vadd.f32 %v228, %v469
      %v471 = vpop.f32.mrf.mxu0
      %472 = vmatprep.mubr.bf16.mxu0 %v400
      %473 = vmatmul.mubr.bf16.gmra.mxu0 %v288
      %v474 = vpop.f32.mrf.mxu0
      %v475 = vadd.f32 %v228, %v474
      %v476 = vpop.f32.mrf.mxu0
      %v477 = vpop.f32.mrf.mxu0
      %v478 = vadd.f32 %v228, %v477
      %v479 = vpop.f32.mrf.mxu0
      %480 = vmatprep.mubr.bf16.mxu0 %v403
      %481 = vmatmul.mubr.bf16.gmra.mxu0 %v290
      %v482 = vpop.f32.mrf.mxu0
      %v483 = vadd.f32 %v228, %v482
      %v484 = vpop.f32.mrf.mxu0
      %v485 = vpop.f32.mrf.mxu0
      %v486 = vadd.f32 %v228, %v485
      %v487 = vpop.f32.mrf.mxu0
      %488 = vmatprep.mubr.bf16.mxu0 %v406
      %489 = vmatmul.mubr.bf16.gmra.mxu0 %v292
      %v490 = vpop.f32.mrf.mxu0
      %v491 = vadd.f32 %v228, %v490
      %v492 = vpop.f32.mrf.mxu0
      %v493 = vpop.f32.mrf.mxu0
      %v494 = vadd.f32 %v228, %v493
      %v495 = vpop.f32.mrf.mxu0
      %496 = vmatprep.mubr.bf16.mxu0 %v409
      %497 = vmatmul.mubr.bf16.gmra.mxu0 %v294
      %v498 = vpop.f32.mrf.mxu0
      %v499 = vadd.f32 %v228, %v498
      %v500 = vpop.f32.mrf.mxu0
      %v501 = vpop.f32.mrf.mxu0
      %v502 = vadd.f32 %v228, %v501
      %v503 = vpop.f32.mrf.mxu0
      %504 = vmatprep.mubr.bf16.mxu0 %v412
      %505 = vmatmul.mubr.bf16.gmra.mxu0 %v296
      %v506 = vpop.f32.mrf.mxu0
      %v507 = vadd.f32 %v228, %v506
      %v508 = vpop.f32.mrf.mxu0
      %v509 = vpop.f32.mrf.mxu0
      %v510 = vadd.f32 %v228, %v509
      %v511 = vpop.f32.mrf.mxu0
      %512 = vmatprep.mubr.bf16.mxu0 %v415
      %513 = vmatmul.mubr.bf16.gmra.mxu0 %v298
      %v514 = vpop.f32.mrf.mxu0
      %v515 = vadd.f32 %v228, %v514
      %v516 = vpop.f32.mrf.mxu0
      %v517 = vpop.f32.mrf.mxu0
      %v518 = vadd.f32 %v228, %v517
      %v519 = vpop.f32.mrf.mxu0
      %520 = vmatprep.mubr.bf16.mxu0 %v418
      %521 = vmatmul.mubr.bf16.gmra.mxu0 %v300
      %v522 = vpop.f32.mrf.mxu0
      %v523 = vadd.f32 %v228, %v522
      %v524 = vpop.f32.mrf.mxu0
      %v525 = vpop.f32.mrf.mxu0
      %v526 = vadd.f32 %v228, %v525
      %v527 = vpop.f32.mrf.mxu0
      %528 = vdwg.mxu0
      %vm529 = vcmask 195584
      %530 = vst.msk [vmem:[%s175] sm:$0xff] %vm529, %v459
      %531 = vst.msk [vmem:[%s175 + $0x8] sm:$0xff] %vm529, %v462
      %532 = vst.msk [vmem:[%s175 + $0x10] sm:$0xff] %vm529, %v467
      %533 = vst.msk [vmem:[%s175 + $0x18] sm:$0xff] %vm529, %v470
      %534 = vst.msk [vmem:[%s175 + $0x20] sm:$0xff] %vm529, %v475
      %535 = vst.msk [vmem:[%s175 + $0x28] sm:$0xff] %vm529, %v478
      %536 = vst.msk [vmem:[%s175 + $0x30] sm:$0xff] %vm529, %v483
      %537 = vst.msk [vmem:[%s175 + $0x38] sm:$0xff] %vm529, %v486
      %538 = vst.msk [vmem:[%s175 + $0x40] sm:$0xff] %vm529, %v491
      %539 = vst.msk [vmem:[%s175 + $0x48] sm:$0xff] %vm529, %v494
      %540 = vst.msk [vmem:[%s175 + $0x50] sm:$0xff] %vm529, %v499
      %541 = vst.msk [vmem:[%s175 + $0x58] sm:$0xff] %vm529, %v502
      %542 = vst.msk [vmem:[%s175 + $0x60] sm:$0xff] %vm529, %v507
      %543 = vst.msk [vmem:[%s175 + $0x68] sm:$0xff] %vm529, %v510
      %544 = vst.msk [vmem:[%s175 + $0x70] sm:$0xff] %vm529, %v515
      %545 = vst.msk [vmem:[%s175 + $0x78] sm:$0xff] %vm529, %v518
      %546 = vst.msk [vmem:[%s175 + $0x80] sm:$0xff] %vm529, %v523
      %547 = vst.msk [vmem:[%s175 + $0x88] sm:$0xff] %vm529, %v526
      %s548 = smul.u32 18, %s14
      %p549 = scmp.lt.s32.totalorder %s548, 35
      %s550 = scalar_select %p549, %s548, 35
      %s551 = smul.addr %s550, 8
      %s552 = scalar_lea.vmem %s3, %s551
      // Predicated region
      $region33: #{net_forward.9} parent=31 // pred_check
        %p553 = pneg %p100
      $region34: #{net_forward.9} parent=31 // pred_check_branch
        %555 = sbr.rel (%p553) target = $region36
      $region35: #{net_forward.9} parent=31 // pred_region
        %s556 = smul.u32 18, %s14
      $region36: #{net_forward.9} parent=31 // pred_fallthru
        _
    $region32: #{net_forward.9} parent=5 // pred_fallthru
      _
    %p557 = scmp.le.s32.totalorder 2, %s9
    // Predicated region
    $region37: #{net_forward.9} parent=5 // pred_check
      %p558 = pneg %p557
    $region38: #{net_forward.9} parent=5 // pred_check_branch
      %560 = sbr.rel (%p558) target = $region40
    $region39: #{net_forward.9} parent=5 // pred_region
      %s561 = ssub.s32 %s9, 2
      // Predicated region
      $region41: #{net_forward.9} parent=39 // pred_check
        %p562 = pneg %p106
      $region42: #{net_forward.9} parent=39 // pred_check_branch
        %564 = sbr.rel (%p562) target = $region44
      $region43: #{net_forward.9} parent=39 // pred_region
        %s565 = smul.u32 18, %s15
        %p566 = scmp.lt.s32.totalorder %s565, 35
        %s567 = scalar_select %p566, %s565, 35
        %s568 = smul.addr %s567, 8
        %s569 = scalar_lea.vmem %s3, %s568
      $region44: #{net_forward.9} parent=39 // pred_fallthru
        _
    $region40: #{net_forward.9} parent=5 // pred_fallthru
      _
  $region6: #{net_forward.9} parent=0 // loop_footer
    %s13 = sadd.s32 1, %s9
  $region7: #{net_forward.9} parent=0 // loop_footer_branch
    %8 = sbr.rel target = $region3
  $region8: #{net_forward.9} parent=0 // loop_exit
    _

// kernel: net_forward.10
$region0: #{net_forward.10}
  #allocation0 [shape = 'u32[]', space=smem, size = 0x4, offset = 0x4, fixed_abs, tag = 'smem constant byte address 0x4 - core index']
  #allocation1 [shape = 'u32[144,128]{1,0:T(1,128)}', space=vmem, size = 0x12000, scoped, tag = 'internal scratch']
  %s0 = inlined_call_operand.vmem [shape: bf16[128,2200], index: 0, kind: input, shape index: {}]
  %s1 = inlined_call_operand.vmem [shape: bf16[2200,20], index: 1, kind: input, shape index: {}]
  %s2 = inlined_call_operand.vmem [shape: f32[1,20], index: 2, kind: input, shape index: {}]
  %s3 = inlined_call_operand.vmem [shape: bf16[128,20], index: 3, kind: output, shape index: {}]
  %s4 = sld [smem:[#allocation0]]
  $region45: #{net_forward.10} parent=0
    _
  %s6 = ssub.s32 1, %s4
  %s7 = scalar_select 0, %s6, %s4
  loop: start=0, step=1, limit=4
  $region2: #{net_forward.10} parent=0 // loop_pre_header
    _
  $region3: #{net_forward.10} parent=0 // loop_header
    %s9 = sphi 0, %s13
    %p10 = scmp.ge.s32.totalorder %s9, 4
    %s19 = sphi 0, %s21
    %s22 = sphi 0, %s19
    %s23 = sphi 0, %s22
    %s39 = sphi 0, %s23
    %s43 = sphi 0, %s43
    %s45 = sphi 0, %s43
    %s46 = sphi 0, %s45
    %s60 = sphi 0, %s46
    %s64 = sphi 0, %s64
    %s66 = sphi 0, %s64
    %s67 = sphi 0, %s66
    %s81 = sphi 0, %s67
    %s87 = sphi 0, %s89
    %s90 = sphi 0, %s87
    %s91 = sphi 0, %s90
    %s107 = sphi 0, %s91
  $region4: #{net_forward.10} parent=0 // loop_header_branch
    %12 = sbr.rel (%p10) target = $region8
  $region5: #{net_forward.10} parent=0 // loop_body
    %s14 = ssub.s32 %s9, 1
    %s15 = ssub.s32 %s9, 2
    %s16 = sadd.s32 %s9, 1
    %s17 = ssub.s32 %s9, %s16
    %p18 = scmp.eq.s32.totalorder %s17, 0
    %s20 = sadd.s32 %s19, 1
    %s21 = scalar_select %p18, %s19, %s20
    %p24 = pneg %p18
    %p25 = scmp.eq.s32.totalorder %s9, 1
    %p26 = por %p24, %p25
    %p27 = scmp.ne.s32.totalorder %s19, %s22
    %p28 = scmp.eq.s32.totalorder %s9, 0
    %p29 = por %p27, %p28
    %p30 = scmp.ne.s32.totalorder %s19, %s22
    %p31 = scmp.eq.s32.totalorder %s14, 1
    %p32 = por %p30, %p31
    %p33 = scmp.ne.s32.totalorder %s22, %s23
    %p34 = scmp.eq.s32.totalorder %s14, 0
    %p35 = por %p33, %p34
    %p36 = scmp.ne.s32.totalorder %s22, %s23
    %p37 = scmp.eq.s32.totalorder %s15, 1
    %p38 = por %p36, %p37
    %p40 = scmp.ne.s32.totalorder %s23, %s39
    %p41 = scmp.eq.s32.totalorder %s15, 0
    %p42 = por %p40, %p41
    %s44 = sadd.s32 %s43, 1
    %p47 = scmp.eq.s32.totalorder %s9, 1
    %p48 = scmp.ne.s32.totalorder %s43, %s45
    %p49 = scmp.eq.s32.totalorder %s9, 0
    %p50 = por %p48, %p49
    %p51 = scmp.ne.s32.totalorder %s43, %s45
    %p52 = scmp.eq.s32.totalorder %s14, 1
    %p53 = por %p51, %p52
    %p54 = scmp.ne.s32.totalorder %s45, %s46
    %p55 = scmp.eq.s32.totalorder %s14, 0
    %p56 = por %p54, %p55
    %p57 = scmp.ne.s32.totalorder %s45, %s46
    %p58 = scmp.eq.s32.totalorder %s15, 1
    %p59 = por %p57, %p58
    %p61 = scmp.ne.s32.totalorder %s46, %s60
    %p62 = scmp.eq.s32.totalorder %s15, 0
    %p63 = por %p61, %p62
    %s65 = sadd.s32 %s64, 1
    %p68 = scmp.eq.s32.totalorder %s9, 1
    %p69 = scmp.ne.s32.totalorder %s64, %s66
    %p70 = scmp.eq.s32.totalorder %s9, 0
    %p71 = por %p69, %p70
    %p72 = scmp.ne.s32.totalorder %s64, %s66
    %p73 = scmp.eq.s32.totalorder %s14, 1
    %p74 = por %p72, %p73
    %p75 = scmp.ne.s32.totalorder %s66, %s67
    %p76 = scmp.eq.s32.totalorder %s14, 0
    %p77 = por %p75, %p76
    %p78 = scmp.ne.s32.totalorder %s66, %s67
    %p79 = scmp.eq.s32.totalorder %s15, 1
    %p80 = por %p78, %p79
    %p82 = scmp.ne.s32.totalorder %s67, %s81
    %p83 = scmp.eq.s32.totalorder %s15, 0
    %p84 = por %p82, %p83
    %s85 = ssub.s32 %s9, %s16
    %p86 = scmp.eq.s32.totalorder %s85, 0
    %s88 = sadd.s32 %s87, 1
    %s89 = scalar_select %p86, %s87, %s88
    %p92 = pneg %p86
    %p93 = scmp.eq.s32.totalorder %s9, 1
    %p94 = por %p92, %p93
    %p95 = scmp.ne.s32.totalorder %s87, %s90
    %p96 = scmp.eq.s32.totalorder %s9, 0
    %p97 = por %p95, %p96
    %p98 = scmp.ne.s32.totalorder %s87, %s90
    %p99 = scmp.eq.s32.totalorder %s14, 1
    %p100 = por %p98, %p99
    %p101 = scmp.ne.s32.totalorder %s90, %s91
    %p102 = scmp.eq.s32.totalorder %s14, 0
    %p103 = por %p101, %p102
    %p104 = scmp.ne.s32.totalorder %s90, %s91
    %p105 = scmp.eq.s32.totalorder %s15, 1
    %p106 = por %p104, %p105
    %p108 = scmp.ne.s32.totalorder %s91, %s107
    %p109 = scmp.eq.s32.totalorder %s15, 0
    %p110 = por %p108, %p109
    %p111 = scmp.le.s32.totalorder 1, %s9
    %p112 = scmp.lt.s32.totalorder %s9, 3
    %p113 = pnand %p111, %p112
    %p114 = pneg %p113
    // Predicated region
    $region9: #{net_forward.10} parent=5 // pred_check
      _
    $region10: #{net_forward.10} parent=5 // pred_check_branch
      %116 = sbr.rel (%p113) target = $region12
    $region11: #{net_forward.10} parent=5 // pred_region
      %s117 = ssub.s32 %s9, 1
      // Predicated region
      $region13: #{net_forward.10} parent=11 // pred_check
        %p118 = pneg %p56
      $region14: #{net_forward.10} parent=11 // pred_check_branch
        %120 = sbr.rel (%p118) target = $region16
      $region15: #{net_forward.10} parent=11 // pred_region
        _
      $region16: #{net_forward.10} parent=11 // pred_fallthru
        _
      // Predicated region
      $region17: #{net_forward.10} parent=11 // pred_check
        %p121 = pneg %p77
      $region18: #{net_forward.10} parent=11 // pred_check_branch
        %123 = sbr.rel (%p121) target = $region20
      $region19: #{net_forward.10} parent=11 // pred_region
        _
      $region20: #{net_forward.10} parent=11 // pred_fallthru
        _
    $region12: #{net_forward.10} parent=5 // pred_fallthru
      _
    %p124 = scmp.lt.s32.totalorder %s9, 2
    // Predicated region
    $region21: #{net_forward.10} parent=5 // pred_check
      %p125 = pneg %p124
    $region22: #{net_forward.10} parent=5 // pred_check_branch
      %127 = sbr.rel (%p125) target = $region24
    $region23: #{net_forward.10} parent=5 // pred_region
      // Predicated region
      $region25: #{net_forward.10} parent=23 // pred_check
        %p128 = pneg %p29
      $region26: #{net_forward.10} parent=23 // pred_check_branch
        %130 = sbr.rel (%p128) target = $region28
      $region27: #{net_forward.10} parent=23 // pred_region
        %s131 = smul.u32 8, %s9
        %p132 = scmp.lt.s32.totalorder %s131, 15
        %s133 = scalar_select %p132, %s131, 15
        %s134 = smul.addr %s133, 18
        %s135 = smul.addr %s134, 4
        %s136 = scalar_lea.vmem %s0, %s135
        %s137 = smul.u32 8, %s9
      $region28: #{net_forward.10} parent=23 // pred_fallthru
        _
    $region24: #{net_forward.10} parent=5 // pred_fallthru
      _
    %p138 = scmp.le.s32.totalorder 1, %s9
    %p139 = scmp.lt.s32.totalorder %s9, 3
    %p140 = pnand %p138, %p139
    %p141 = pneg %p140
    // Predicated region
    $region29: #{net_forward.10} parent=5 // pred_check
      _
    $region30: #{net_forward.10} parent=5 // pred_check_branch
      %143 = sbr.rel (%p140) target = $region32
    $region31: #{net_forward.10} parent=5 // pred_region
      %s144 = ssub.s32 %s9, 1
      %s145 = smul.u32 8, %s14
      %p146 = scmp.lt.s32.totalorder %s145, 15
      %s147 = scalar_select %p146, %s145, 15
      %s148 = smul.addr %s147, 18
      %s149 = smul.addr %s148, 4
      %s150 = scalar_lea.vmem %s0, %s149
      %p151 = pneg %p35
      %p152 = pneg %p32
      %p153 = pneg %p56
      %p154 = pneg %p53
      %p155 = pneg %p77
      %p156 = pneg %p74
      %p157 = pneg %p103
      %p158 = pneg %p100
      %s159 = smul.u32 8, %s14
      %p160 = scmp.lt.s32.totalorder %s159, 15
      %s161 = scalar_select %p160, %s159, 15
      %s162 = smul.addr %s161, 4
      %s163 = scalar_lea.vmem %s3, %s162
      %s164 = smul.u32 8, %s14
      %p165 = scmp.lt.s32.totalorder %s164, 15
      %s166 = scalar_select %p165, %s164, 15
      %s167 = smul.addr %s166, 18
      %s168 = smul.addr %s167, 4
      %s169 = scalar_lea.vmem %s0, %s168
      %s170 = smul.u32 8, %s14
      %s171 = smul.u32 8, %s14
      %p172 = scmp.lt.s32.totalorder %s171, 15
      %s173 = scalar_select %p172, %s171, 15
      %s174 = smul.addr %s173, 4
      %s175 = scalar_lea.vmem %s3, %s174
      %s176 = smul.u32 8, %s14
      %v178 = vld [vmem:[%s169] sm:$0xff]
      %v179 = vld [vmem:[%s169 + $0x8] sm:$0xff]
      %v180 = vld [vmem:[%s169 + $0x10] sm:$0xff]
      %v181 = vld [vmem:[%s169 + $0x18] sm:$0xff]
      %v182 = vld [vmem:[%s169 + $0x20] sm:$0xff]
      %v183 = vld [vmem:[%s169 + $0x28] sm:$0xff]
      %v184 = vld [vmem:[%s169 + $0x30] sm:$0xff]
      %v185 = vld [vmem:[%s169 + $0x38] sm:$0xff]
      %v186 = vld [vmem:[%s169 + $0x40] sm:$0xff]
      %v187 = vld [vmem:[%s169 + $0x48] sm:$0xff]
      %v188 = vld [vmem:[%s169 + $0x50] sm:$0xff]
      %v189 = vld [vmem:[%s169 + $0x58] sm:$0xff]
      %v190 = vld [vmem:[%s169 + $0x60] sm:$0xff]
      %v191 = vld [vmem:[%s169 + $0x68] sm:$0xff]
      %v192 = vld [vmem:[%s169 + $0x70] sm:$0xff]
      %v193 = vld [vmem:[%s169 + $0x78] sm:$0xff]
      %v194 = vld [vmem:[%s169 + $0x80] sm:$0xff]
      %v195 = vld [vmem:[%s169 + $0x88] sm:$0xff]
      %v196 = vld [vmem:[%s169 + $0x90] sm:$0xff]
      %v197 = vld [vmem:[%s169 + $0x98] sm:$0xff]
      %v198 = vld [vmem:[%s169 + $0xa0] sm:$0xff]
      %v199 = vld [vmem:[%s169 + $0xa8] sm:$0xff]
      %v200 = vld [vmem:[%s169 + $0xb0] sm:$0xff]
      %v201 = vld [vmem:[%s169 + $0xb8] sm:$0xff]
      %v202 = vld [vmem:[%s169 + $0xc0] sm:$0xff]
      %v203 = vld [vmem:[%s169 + $0xc8] sm:$0xff]
      %v204 = vld [vmem:[%s169 + $0xd0] sm:$0xff]
      %v205 = vld [vmem:[%s169 + $0xd8] sm:$0xff]
      %v206 = vld [vmem:[%s169 + $0xe0] sm:$0xff]
      %v207 = vld [vmem:[%s169 + $0xe8] sm:$0xff]
      %v208 = vld [vmem:[%s169 + $0xf0] sm:$0xff]
      %v209 = vld [vmem:[%s169 + $0xf8] sm:$0xff]
      %v210 = vld [vmem:[%s169 + $0x100] sm:$0xff]
      %v211 = vld [vmem:[%s169 + $0x108] sm:$0xff]
      %v212 = vld [vmem:[%s169 + $0x110] sm:$0xff]
      %v213 = vld [vmem:[%s169 + $0x118] sm:$0xff]
      %v214 = vld [vmem:[%s169 + $0x120] sm:$0xff]
      %v215 = vld [vmem:[%s169 + $0x128] sm:$0xff]
      %v216 = vld [vmem:[%s169 + $0x130] sm:$0xff]
      %v217 = vld [vmem:[%s169 + $0x138] sm:$0xff]
      %v218 = vld [vmem:[%s169 + $0x140] sm:$0xff]
      %v219 = vld [vmem:[%s169 + $0x148] sm:$0xff]
      %v220 = vld [vmem:[%s169 + $0x150] sm:$0xff]
      %v221 = vld [vmem:[%s169 + $0x158] sm:$0xff]
      %v222 = vld [vmem:[%s169 + $0x160] sm:$0xff]
      %v223 = vld [vmem:[%s169 + $0x168] sm:$0xff]
      %v224 = vld [vmem:[%s169 + $0x170] sm:$0xff]
      %v225 = vld [vmem:[%s169 + $0x178] sm:$0xff]
      %v226 = vld [vmem:[%s169 + $0x180] sm:$0xff]
      %v227 = vld [vmem:[%s169 + $0x188] sm:$0xff]
      %v228 = vld [vmem:[%s169 + $0x190] sm:$0xff]
      %v229 = vld [vmem:[%s169 + $0x198] sm:$0xff]
      %v230 = vld [vmem:[%s169 + $0x1a0] sm:$0xff]
      %v231 = vld [vmem:[%s169 + $0x1a8] sm:$0xff]
      %v232 = vld [vmem:[%s169 + $0x1b0] sm:$0xff]
      %v233 = vld [vmem:[%s169 + $0x1b8] sm:$0xff]
      %v234 = vld [vmem:[%s169 + $0x1c0] sm:$0xff]
      %v235 = vld [vmem:[%s169 + $0x1c8] sm:$0xff]
      %v236 = vld [vmem:[%s169 + $0x1d0] sm:$0xff]
      %v237 = vld [vmem:[%s169 + $0x1d8] sm:$0xff]
      %v238 = vld [vmem:[%s169 + $0x1e0] sm:$0xff]
      %v239 = vld [vmem:[%s169 + $0x1e8] sm:$0xff]
      %v240 = vld [vmem:[%s169 + $0x1f0] sm:$0xff]
      %v241 = vld [vmem:[%s169 + $0x1f8] sm:$0xff]
      %v242 = vld [vmem:[%s169 + $0x200] sm:$0xff]
      %v243 = vld [vmem:[%s169 + $0x208] sm:$0xff]
      %v244 = vld [vmem:[%s169 + $0x210] sm:$0xff]
      %v245 = vld [vmem:[%s169 + $0x218] sm:$0xff]
      %v246 = vld [vmem:[%s169 + $0x220] sm:$0xff]
      %v247 = vld [vmem:[%s169 + $0x228] sm:$0xff]
      %v248 = vld [vmem:[%s169 + $0x230] sm:$0xff]
      %v249 = vld [vmem:[%s169 + $0x238] sm:$0xff]
      %v250 = vld [vmem:[%s1] sm:$0xf]
      %v251 = vld [vmem:[%s1 + $0x4] sm:$0xf]
      %v252 = vld [vmem:[%s1 + $0x8] sm:$0xf]
      %v253 = vld [vmem:[%s1 + $0xc] sm:$0xf]
      %v254 = vld [vmem:[%s1 + $0x10] sm:$0xf]
      %v255 = vld [vmem:[%s1 + $0x14] sm:$0xf]
      %v256 = vld [vmem:[%s1 + $0x18] sm:$0xf]
      %v257 = vld [vmem:[%s1 + $0x1c] sm:$0xf]
      %v258 = vld [vmem:[%s1 + $0x20] sm:$0xf]
      %v259 = vld [vmem:[%s1 + $0x24] sm:$0xf]
      %v260 = vld [vmem:[%s1 + $0x28] sm:$0xf]
      %v261 = vld [vmem:[%s1 + $0x2c] sm:$0xf]
      %v262 = vld [vmem:[%s1 + $0x30] sm:$0xf]
      %v263 = vld [vmem:[%s1 + $0x34] sm:$0xf]
      %v264 = vld [vmem:[%s1 + $0x38] sm:$0xf]
      %v265 = vld [vmem:[%s1 + $0x3c] sm:$0xf]
      %v266 = vld [vmem:[%s1 + $0x40] sm:$0xf]
      %v267 = vld [vmem:[%s1 + $0x44] sm:$0xf]
      %v268 = vld [vmem:[%s1 + $0x48] sm:$0xf]
      %v269 = vld [vmem:[%s1 + $0x4c] sm:$0xf]
      %v270 = vld [vmem:[%s1 + $0x50] sm:$0xf]
      %v271 = vld [vmem:[%s1 + $0x54] sm:$0xf]
      %v272 = vld [vmem:[%s1 + $0x58] sm:$0xf]
      %v273 = vld [vmem:[%s1 + $0x5c] sm:$0xf]
      %v274 = vld [vmem:[%s1 + $0x60] sm:$0xf]
      %v275 = vld [vmem:[%s1 + $0x64] sm:$0xf]
      %v276 = vld [vmem:[%s1 + $0x68] sm:$0xf]
      %v277 = vld [vmem:[%s1 + $0x6c] sm:$0xf]
      %v278 = vld [vmem:[%s1 + $0x70] sm:$0xf]
      %v279 = vld [vmem:[%s1 + $0x74] sm:$0xf]
      %v280 = vld [vmem:[%s1 + $0x78] sm:$0xf]
      %v281 = vld [vmem:[%s1 + $0x7c] sm:$0xf]
      %v282 = vld [vmem:[%s1 + $0x80] sm:$0xf]
      %v283 = vld [vmem:[%s1 + $0x84] sm:$0xf]
      %v284 = vld [vmem:[%s1 + $0x88] sm:$0xf]
      %v285 = vld [vmem:[%s1 + $0x8c] sm:$0xf]
      %v286 = vld [vmem:[%s1 + $0x90] sm:$0xf]
      %v287 = vld [vmem:[%s1 + $0x94] sm:$0xf]
      %v288 = vld [vmem:[%s1 + $0x98] sm:$0xf]
      %v289 = vld [vmem:[%s1 + $0x9c] sm:$0xf]
      %v290 = vld [vmem:[%s1 + $0xa0] sm:$0xf]
      %v291 = vld [vmem:[%s1 + $0xa4] sm:$0xf]
      %v292 = vld [vmem:[%s1 + $0xa8] sm:$0xf]
      %v293 = vld [vmem:[%s1 + $0xac] sm:$0xf]
      %v294 = vld [vmem:[%s1 + $0xb0] sm:$0xf]
      %v295 = vld [vmem:[%s1 + $0xb4] sm:$0xf]
      %v296 = vld [vmem:[%s1 + $0xb8] sm:$0xf]
      %v297 = vld [vmem:[%s1 + $0xbc] sm:$0xf]
      %v298 = vld [vmem:[%s1 + $0xc0] sm:$0xf]
      %v299 = vld [vmem:[%s1 + $0xc4] sm:$0xf]
      %v300 = vld [vmem:[%s1 + $0xc8] sm:$0xf]
      %v301 = vld [vmem:[%s1 + $0xcc] sm:$0xf]
      %v302 = vld [vmem:[%s1 + $0xd0] sm:$0xf]
      %v303 = vld [vmem:[%s1 + $0xd4] sm:$0xf]
      %v304 = vld [vmem:[%s1 + $0xd8] sm:$0xf]
      %v305 = vld [vmem:[%s1 + $0xdc] sm:$0xf]
      %v306 = vld [vmem:[%s1 + $0xe0] sm:$0xf]
      %v307 = vld [vmem:[%s1 + $0xe4] sm:$0xf]
      %v308 = vld [vmem:[%s1 + $0xe8] sm:$0xf]
      %v309 = vld [vmem:[%s1 + $0xec] sm:$0xf]
      %v310 = vld [vmem:[%s1 + $0xf0] sm:$0xf]
      %v311 = vld [vmem:[%s1 + $0xf4] sm:$0xf]
      %v312 = vld [vmem:[%s1 + $0xf8] sm:$0xf]
      %v313 = vld [vmem:[%s1 + $0xfc] sm:$0xf]
      %v314 = vld [vmem:[%s1 + $0x100] sm:$0xf]
      %v315 = vld [vmem:[%s1 + $0x104] sm:$0xf]
      %v316 = vld [vmem:[%s1 + $0x108] sm:$0xf]
      %v317 = vld [vmem:[%s1 + $0x10c] sm:$0xf]
      %v318 = vld [vmem:[%s1 + $0x110] sm:$0xf]
      %v319 = vld [vmem:[%s1 + $0x114] sm:$0xf]
      %v320 = vld [vmem:[%s1 + $0x118] sm:$0xf]
      %v321 = vld [vmem:[%s1 + $0x11c] sm:$0xf]
      %v322 = vld [vmem:[%s1 + $0x120] sm:$0xf]
      %v323 = vld [vmem:[%s1 + $0x124] sm:$0xf]
      %v324 = vld [vmem:[%s1 + $0x128] sm:$0xf]
      %v325 = vld [vmem:[%s1 + $0x12c] sm:$0xf]
      %v326 = vld [vmem:[%s1 + $0x130] sm:$0xf]
      %v327 = vld [vmem:[%s1 + $0x134] sm:$0xf]
      %v328 = vld [vmem:[%s1 + $0x138] sm:$0xf]
      %v329 = vld [vmem:[%s1 + $0x13c] sm:$0xf]
      %v330 = vld [vmem:[%s1 + $0x140] sm:$0xf]
      %v331 = vld [vmem:[%s1 + $0x144] sm:$0xf]
      %v332 = vld [vmem:[%s1 + $0x148] sm:$0xf]
      %v333 = vld [vmem:[%s1 + $0x14c] sm:$0xf]
      %v334 = vld [vmem:[%s1 + $0x150] sm:$0xf]
      %v335 = vld [vmem:[%s1 + $0x154] sm:$0xf]
      %v336 = vld [vmem:[%s1 + $0x158] sm:$0xf]
      %v337 = vld [vmem:[%s1 + $0x15c] sm:$0xf]
      %v338 = vld [vmem:[%s1 + $0x160] sm:$0xf]
      %v339 = vld [vmem:[%s1 + $0x164] sm:$0xf]
      %v340 = vld [vmem:[%s1 + $0x168] sm:$0xf]
      %v341 = vld [vmem:[%s1 + $0x16c] sm:$0xf]
      %v342 = vld [vmem:[%s1 + $0x170] sm:$0xf]
      %v343 = vld [vmem:[%s1 + $0x174] sm:$0xf]
      %v344 = vld [vmem:[%s1 + $0x178] sm:$0xf]
      %v345 = vld [vmem:[%s1 + $0x17c] sm:$0xf]
      %v346 = vld [vmem:[%s1 + $0x180] sm:$0xf]
      %v347 = vld [vmem:[%s1 + $0x184] sm:$0xf]
      %v348 = vld [vmem:[%s1 + $0x188] sm:$0xf]
      %v349 = vld [vmem:[%s1 + $0x18c] sm:$0xf]
      %v350 = vld [vmem:[%s1 + $0x190] sm:$0xf]
      %v351 = vld [vmem:[%s1 + $0x194] sm:$0xf]
      %v352 = vld [vmem:[%s1 + $0x198] sm:$0xf]
      %v353 = vld [vmem:[%s1 + $0x19c] sm:$0xf]
      %v354 = vld [vmem:[%s1 + $0x1a0] sm:$0xf]
      %v355 = vld [vmem:[%s1 + $0x1a4] sm:$0xf]
      %v356 = vld [vmem:[%s1 + $0x1a8] sm:$0xf]
      %v357 = vld [vmem:[%s1 + $0x1ac] sm:$0xf]
      %v358 = vld [vmem:[%s1 + $0x1b0] sm:$0xf]
      %v359 = vld [vmem:[%s1 + $0x1b4] sm:$0xf]
      %v360 = vld [vmem:[%s1 + $0x1b8] sm:$0xf]
      %v361 = vld [vmem:[%s1 + $0x1bc] sm:$0xf]
      %v362 = vld [vmem:[%s1 + $0x1c0] sm:$0xf]
      %v363 = vld [vmem:[%s1 + $0x1c4] sm:$0xf]
      %v364 = vld [vmem:[%s1 + $0x1c8] sm:$0xf]
      %v365 = vld [vmem:[%s1 + $0x1cc] sm:$0xf]
      %v366 = vld [vmem:[%s1 + $0x1d0] sm:$0xf]
      %v367 = vld [vmem:[%s1 + $0x1d4] sm:$0xf]
      %v368 = vld [vmem:[%s1 + $0x1d8] sm:$0xf]
      %v369 = vld [vmem:[%s1 + $0x1dc] sm:$0xf]
      %v370 = vld [vmem:[%s1 + $0x1e0] sm:$0xf]
      %v371 = vld [vmem:[%s1 + $0x1e4] sm:$0xf]
      %v372 = vld [vmem:[%s1 + $0x1e8] sm:$0xf]
      %v373 = vld [vmem:[%s1 + $0x1ec] sm:$0xf]
      %v374 = vld [vmem:[%s1 + $0x1f0] sm:$0xf]
      %v375 = vld [vmem:[%s1 + $0x1f4] sm:$0xf]
      %v376 = vld [vmem:[%s1 + $0x1f8] sm:$0xf]
      %v377 = vld [vmem:[%s1 + $0x1fc] sm:$0xf]
      %v378 = vld [vmem:[%s1 + $0x200] sm:$0xf]
      %v379 = vld [vmem:[%s1 + $0x204] sm:$0xf]
      %v380 = vld [vmem:[%s1 + $0x208] sm:$0xf]
      %v381 = vld [vmem:[%s1 + $0x20c] sm:$0xf]
      %v382 = vld [vmem:[%s1 + $0x210] sm:$0xf]
      %v383 = vld [vmem:[%s1 + $0x214] sm:$0xf]
      %v384 = vld [vmem:[%s1 + $0x218] sm:$0xf]
      %v385 = vld [vmem:[%s1 + $0x21c] sm:$0xf]
      %v386 = vld [vmem:[%s1 + $0x220] sm:$0xf]
      %v387 = vld [vmem:[%s1 + $0x224] sm:$0xf]
      %v388 = vld [vmem:[%s1 + $0x228] sm:$0xf]
      %v389 = vld [vmem:[%s1 + $0x22c] sm:$0xf]
      %v390 = vld [vmem:[%s1 + $0x230] sm:$0xf]
      %v391 = vld [vmem:[%s1 + $0x234] sm:$0xf]
      %v392 = vld [vmem:[%s1 + $0x238] sm:$0xf]
      %v393 = vld [vmem:[%s1 + $0x23c] sm:$0xf]
      %v394 = vld [vmem:[%s1 + $0x240] sm:$0xf]
      %v395 = vld [vmem:[%s1 + $0x244] sm:$0xf]
      %v396 = vld [vmem:[%s1 + $0x248] sm:$0xf]
      %v397 = vld [vmem:[%s1 + $0x24c] sm:$0xf]
      %v398 = vld [vmem:[%s1 + $0x250] sm:$0xf]
      %v399 = vld [vmem:[%s1 + $0x254] sm:$0xf]
      %v400 = vld [vmem:[%s1 + $0x258] sm:$0xf]
      %v401 = vld [vmem:[%s1 + $0x25c] sm:$0xf]
      %v402 = vld [vmem:[%s1 + $0x260] sm:$0xf]
      %v403 = vld [vmem:[%s1 + $0x264] sm:$0xf]
      %v404 = vld [vmem:[%s1 + $0x268] sm:$0xf]
      %v405 = vld [vmem:[%s1 + $0x26c] sm:$0xf]
      %v406 = vld [vmem:[%s1 + $0x270] sm:$0xf]
      %v407 = vld [vmem:[%s1 + $0x274] sm:$0xf]
      %v408 = vld [vmem:[%s1 + $0x278] sm:$0xf]
      %v409 = vld [vmem:[%s1 + $0x27c] sm:$0xf]
      %v410 = vld [vmem:[%s1 + $0x280] sm:$0xf]
      %v411 = vld [vmem:[%s1 + $0x284] sm:$0xf]
      %v412 = vld [vmem:[%s1 + $0x288] sm:$0xf]
      %v413 = vld [vmem:[%s1 + $0x28c] sm:$0xf]
      %v414 = vld [vmem:[%s1 + $0x290] sm:$0xf]
      %v415 = vld [vmem:[%s1 + $0x294] sm:$0xf]
      %v416 = vld [vmem:[%s1 + $0x298] sm:$0xf]
      %v417 = vld [vmem:[%s1 + $0x29c] sm:$0xf]
      %v418 = vld [vmem:[%s1 + $0x2a0] sm:$0xf]
      %v419 = vld [vmem:[%s1 + $0x2a4] sm:$0xf]
      %v420 = vld [vmem:[%s1 + $0x2a8] sm:$0xf]
      %v421 = vld [vmem:[%s1 + $0x2ac] sm:$0xf]
      %v422 = vld [vmem:[%s1 + $0x2b0] sm:$0xf]
      %v423 = vld [vmem:[%s1 + $0x2b4] sm:$0xf]
      %v424 = vld [vmem:[%s1 + $0x2b8] sm:$0xf]
      %v425 = vld [vmem:[%s1 + $0x2bc] sm:$0xf]
      %v426 = vld [vmem:[%s1 + $0x2c0] sm:$0xf]
      %v427 = vld [vmem:[%s1 + $0x2c4] sm:$0xf]
      %v428 = vld [vmem:[%s1 + $0x2c8] sm:$0xf]
      %v429 = vld [vmem:[%s1 + $0x2cc] sm:$0xf]
      %v430 = vld [vmem:[%s1 + $0x2d0] sm:$0xf]
      %v431 = vld [vmem:[%s1 + $0x2d4] sm:$0xf]
      %v432 = vld [vmem:[%s1 + $0x2d8] sm:$0xf]
      %v433 = vld [vmem:[%s1 + $0x2dc] sm:$0xf]
      %v434 = vld [vmem:[%s1 + $0x2e0] sm:$0xf]
      %v435 = vld [vmem:[%s1 + $0x2e4] sm:$0xf]
      %v436 = vld [vmem:[%s1 + $0x2e8] sm:$0xf]
      %v437 = vld [vmem:[%s1 + $0x2ec] sm:$0xf]
      %v438 = vld [vmem:[%s1 + $0x2f0] sm:$0xf]
      %v439 = vld [vmem:[%s1 + $0x2f4] sm:$0xf]
      %v440 = vld [vmem:[%s1 + $0x2f8] sm:$0xf]
      %v441 = vld [vmem:[%s1 + $0x2fc] sm:$0xf]
      %v442 = vld [vmem:[%s1 + $0x300] sm:$0xf]
      %v443 = vld [vmem:[%s1 + $0x304] sm:$0xf]
      %v444 = vld [vmem:[%s1 + $0x308] sm:$0xf]
      %v445 = vld [vmem:[%s1 + $0x30c] sm:$0xf]
      %v446 = vld [vmem:[%s1 + $0x310] sm:$0xf]
      %v447 = vld [vmem:[%s1 + $0x314] sm:$0xf]
      %v448 = vld [vmem:[%s1 + $0x318] sm:$0xf]
      %v449 = vld [vmem:[%s1 + $0x31c] sm:$0xf]
      %v450 = vld [vmem:[%s1 + $0x320] sm:$0xf]
      %v451 = vld [vmem:[%s1 + $0x324] sm:$0xf]
      %v452 = vld [vmem:[%s1 + $0x328] sm:$0xf]
      %v453 = vld [vmem:[%s1 + $0x32c] sm:$0xf]
      %v454 = vld [vmem:[%s1 + $0x330] sm:$0xf]
      %v455 = vld [vmem:[%s1 + $0x334] sm:$0xf]
      %v456 = vld [vmem:[%s1 + $0x338] sm:$0xf]
      %v457 = vld [vmem:[%s1 + $0x33c] sm:$0xf]
      %v458 = vld [vmem:[%s1 + $0x340] sm:$0xf]
      %v459 = vld [vmem:[%s1 + $0x344] sm:$0xf]
      %v460 = vld [vmem:[%s1 + $0x348] sm:$0xf]
      %v461 = vld [vmem:[%s1 + $0x34c] sm:$0xf]
      %v462 = vld [vmem:[%s1 + $0x350] sm:$0xf]
      %v463 = vld [vmem:[%s1 + $0x354] sm:$0xf]
      %v464 = vld [vmem:[%s1 + $0x358] sm:$0xf]
      %v465 = vld [vmem:[%s1 + $0x35c] sm:$0xf]
      %v466 = vld [vmem:[%s1 + $0x360] sm:$0xf]
      %v467 = vld [vmem:[%s1 + $0x364] sm:$0xf]
      %v468 = vld [vmem:[%s1 + $0x368] sm:$0xf]
      %v469 = vld [vmem:[%s1 + $0x36c] sm:$0xf]
      %v470 = vld [vmem:[%s1 + $0x370] sm:$0xf]
      %v471 = vld [vmem:[%s1 + $0x374] sm:$0xf]
      %v472 = vld [vmem:[%s1 + $0x378] sm:$0xf]
      %v473 = vld [vmem:[%s1 + $0x37c] sm:$0xf]
      %v474 = vld [vmem:[%s1 + $0x380] sm:$0xf]
      %v475 = vld [vmem:[%s1 + $0x384] sm:$0xf]
      %v476 = vld [vmem:[%s1 + $0x388] sm:$0xf]
      %v477 = vld [vmem:[%s1 + $0x38c] sm:$0xf]
      %v478 = vld [vmem:[%s1 + $0x390] sm:$0xf]
      %v479 = vld [vmem:[%s1 + $0x394] sm:$0xf]
      %v480 = vld [vmem:[%s1 + $0x398] sm:$0xf]
      %v481 = vld [vmem:[%s1 + $0x39c] sm:$0xf]
      %v482 = vld [vmem:[%s1 + $0x3a0] sm:$0xf]
      %v483 = vld [vmem:[%s1 + $0x3a4] sm:$0xf]
      %v484 = vld [vmem:[%s1 + $0x3a8] sm:$0xf]
      %v485 = vld [vmem:[%s1 + $0x3ac] sm:$0xf]
      %v486 = vld [vmem:[%s1 + $0x3b0] sm:$0xf]
      %v487 = vld [vmem:[%s1 + $0x3b4] sm:$0xf]
      %v488 = vld [vmem:[%s1 + $0x3b8] sm:$0xf]
      %v489 = vld [vmem:[%s1 + $0x3bc] sm:$0xf]
      %v490 = vld [vmem:[%s1 + $0x3c0] sm:$0xf]
      %v491 = vld [vmem:[%s1 + $0x3c4] sm:$0xf]
      %v492 = vld [vmem:[%s1 + $0x3c8] sm:$0xf]
      %v493 = vld [vmem:[%s1 + $0x3cc] sm:$0xf]
      %v494 = vld [vmem:[%s1 + $0x3d0] sm:$0xf]
      %v495 = vld [vmem:[%s1 + $0x3d4] sm:$0xf]
      %v496 = vld [vmem:[%s1 + $0x3d8] sm:$0xf]
      %v497 = vld [vmem:[%s1 + $0x3dc] sm:$0xf]
      %v498 = vld [vmem:[%s1 + $0x3e0] sm:$0xf]
      %v499 = vld [vmem:[%s1 + $0x3e4] sm:$0xf]
      %v500 = vld [vmem:[%s1 + $0x3e8] sm:$0xf]
      %v501 = vld [vmem:[%s1 + $0x3ec] sm:$0xf]
      %v502 = vld [vmem:[%s1 + $0x3f0] sm:$0xf]
      %v503 = vld [vmem:[%s1 + $0x3f4] sm:$0xf]
      %v504 = vld [vmem:[%s1 + $0x3f8] sm:$0xf]
      %v505 = vld [vmem:[%s1 + $0x3fc] sm:$0xf]
      %v506 = vld [vmem:[%s1 + $0x400] sm:$0xf]
      %v507 = vld [vmem:[%s1 + $0x404] sm:$0xf]
      %v508 = vld [vmem:[%s1 + $0x408] sm:$0xf]
      %v509 = vld [vmem:[%s1 + $0x40c] sm:$0xf]
      %v510 = vld [vmem:[%s1 + $0x410] sm:$0xf]
      %v511 = vld [vmem:[%s1 + $0x414] sm:$0xf]
      %v512 = vld [vmem:[%s1 + $0x418] sm:$0xf]
      %v513 = vld [vmem:[%s1 + $0x41c] sm:$0xf]
      %v514 = vld [vmem:[%s1 + $0x420] sm:$0xf]
      %v515 = vld [vmem:[%s1 + $0x424] sm:$0xf]
      %v516 = vld [vmem:[%s1 + $0x428] sm:$0xf]
      %v517 = vld [vmem:[%s1 + $0x42c] sm:$0xf]
      %v518 = vld [vmem:[%s1 + $0x430] sm:$0xf]
      %v519 = vld [vmem:[%s1 + $0x434] sm:$0xf]
      %v520 = vld [vmem:[%s1 + $0x438] sm:$0xf]
      %v521 = vld [vmem:[%s1 + $0x43c] sm:$0xf]
      %v522 = vld [vmem:[%s1 + $0x440] sm:$0xf]
      %v523 = vld [vmem:[%s1 + $0x444] sm:$0xf]
      %v524 = vld [vmem:[%s1 + $0x448] sm:$0xf]
      %v525 = vld [vmem:[%s2] sm:$0x1]
      %v527 = vlaneseq
      %v528 = vshrl.u32 %v527, 7
      %v529 = vsub.s32 0, %v528
      %v530 = vrot.slane %v525, %v529
      %v604 = vunpack.c.l.b16 %v178
      %v605 = vunpack.c.h.b16 %v178
      %v606 = vunpack.c.l.b16 %v179
      %v607 = vunpack.c.h.b16 %v179
      %v608 = vunpack.c.l.b16 %v180
      %v609 = vunpack.c.h.b16 %v180
      %v610 = vunpack.c.l.b16 %v181
      %v611 = vunpack.c.h.b16 %v181
      %v612 = vunpack.c.l.b16 %v182
      %v613 = vunpack.c.h.b16 %v182
      %v614 = vunpack.c.l.b16 %v183
      %v615 = vunpack.c.h.b16 %v183
      %v616 = vunpack.c.l.b16 %v184
      %v617 = vunpack.c.h.b16 %v184
      %v618 = vunpack.c.l.b16 %v185
      %v619 = vunpack.c.h.b16 %v185
      %v620 = vunpack.c.l.b16 %v186
      %v621 = vunpack.c.h.b16 %v186
      %v622 = vunpack.c.l.b16 %v187
      %v623 = vunpack.c.h.b16 %v187
      %v624 = vunpack.c.l.b16 %v188
      %v625 = vunpack.c.h.b16 %v188
      %v626 = vunpack.c.l.b16 %v189
      %v627 = vunpack.c.h.b16 %v189
      %v628 = vunpack.c.l.b16 %v190
      %v629 = vunpack.c.h.b16 %v190
      %v630 = vunpack.c.l.b16 %v191
      %v631 = vunpack.c.h.b16 %v191
      %v632 = vunpack.c.l.b16 %v192
      %v633 = vunpack.c.h.b16 %v192
      %v634 = vunpack.c.l.b16 %v193
      %v635 = vunpack.c.h.b16 %v193
      %v636 = vunpack.c.l.b16 %v194
      %v637 = vunpack.c.h.b16 %v194
      %v638 = vunpack.c.l.b16 %v195
      %v639 = vunpack.c.h.b16 %v195
      %v640 = vunpack.c.l.b16 %v196
      %v641 = vunpack.c.h.b16 %v196
      %v642 = vunpack.c.l.b16 %v197
      %v643 = vunpack.c.h.b16 %v197
      %v644 = vunpack.c.l.b16 %v198
      %v645 = vunpack.c.h.b16 %v198
      %v646 = vunpack.c.l.b16 %v199
      %v647 = vunpack.c.h.b16 %v199
      %v648 = vunpack.c.l.b16 %v200
      %v649 = vunpack.c.h.b16 %v200
      %v650 = vunpack.c.l.b16 %v201
      %v651 = vunpack.c.h.b16 %v201
      %v652 = vunpack.c.l.b16 %v202
      %v653 = vunpack.c.h.b16 %v202
      %v654 = vunpack.c.l.b16 %v203
      %v655 = vunpack.c.h.b16 %v203
      %v656 = vunpack.c.l.b16 %v204
      %v657 = vunpack.c.h.b16 %v204
      %v658 = vunpack.c.l.b16 %v205
      %v659 = vunpack.c.h.b16 %v205
      %v660 = vunpack.c.l.b16 %v206
      %v661 = vunpack.c.h.b16 %v206
      %v662 = vunpack.c.l.b16 %v207
      %v663 = vunpack.c.h.b16 %v207
      %v664 = vunpack.c.l.b16 %v208
      %v665 = vunpack.c.h.b16 %v208
      %v666 = vunpack.c.l.b16 %v209
      %v667 = vunpack.c.h.b16 %v209
      %v668 = vunpack.c.l.b16 %v210
      %v669 = vunpack.c.h.b16 %v210
      %v670 = vunpack.c.l.b16 %v211
      %v671 = vunpack.c.h.b16 %v211
      %v672 = vunpack.c.l.b16 %v212
      %v673 = vunpack.c.h.b16 %v212
      %v674 = vunpack.c.l.b16 %v213
      %v675 = vunpack.c.h.b16 %v213
      %v676 = vunpack.c.l.b16 %v214
      %v677 = vunpack.c.h.b16 %v214
      %v678 = vunpack.c.l.b16 %v215
      %v679 = vunpack.c.h.b16 %v215
      %v680 = vunpack.c.l.b16 %v216
      %v681 = vunpack.c.h.b16 %v216
      %v682 = vunpack.c.l.b16 %v217
      %v683 = vunpack.c.h.b16 %v217
      %v684 = vunpack.c.l.b16 %v218
      %v685 = vunpack.c.h.b16 %v218
      %v686 = vunpack.c.l.b16 %v219
      %v687 = vunpack.c.h.b16 %v219
      %v688 = vunpack.c.l.b16 %v220
      %v689 = vunpack.c.h.b16 %v220
      %v690 = vunpack.c.l.b16 %v221
      %v691 = vunpack.c.h.b16 %v221
      %v692 = vunpack.c.l.b16 %v222
      %v693 = vunpack.c.h.b16 %v222
      %v694 = vunpack.c.l.b16 %v223
      %v695 = vunpack.c.h.b16 %v223
      %v696 = vunpack.c.l.b16 %v224
      %v697 = vunpack.c.h.b16 %v224
      %v698 = vunpack.c.l.b16 %v225
      %v699 = vunpack.c.h.b16 %v225
      %v700 = vunpack.c.l.b16 %v226
      %v701 = vunpack.c.h.b16 %v226
      %v702 = vunpack.c.l.b16 %v227
      %v703 = vunpack.c.h.b16 %v227
      %v704 = vunpack.c.l.b16 %v228
      %v705 = vunpack.c.h.b16 %v228
      %v706 = vunpack.c.l.b16 %v229
      %v707 = vunpack.c.h.b16 %v229
      %v708 = vunpack.c.l.b16 %v230
      %v709 = vunpack.c.h.b16 %v230
      %v710 = vunpack.c.l.b16 %v231
      %v711 = vunpack.c.h.b16 %v231
      %v712 = vunpack.c.l.b16 %v232
      %v713 = vunpack.c.h.b16 %v232
      %v714 = vunpack.c.l.b16 %v233
      %v715 = vunpack.c.h.b16 %v233
      %v716 = vunpack.c.l.b16 %v234
      %v717 = vunpack.c.h.b16 %v234
      %v718 = vunpack.c.l.b16 %v235
      %v719 = vunpack.c.h.b16 %v235
      %v720 = vunpack.c.l.b16 %v236
      %v721 = vunpack.c.h.b16 %v236
      %v722 = vunpack.c.l.b16 %v237
      %v723 = vunpack.c.h.b16 %v237
      %v724 = vunpack.c.l.b16 %v238
      %v725 = vunpack.c.h.b16 %v238
      %v726 = vunpack.c.l.b16 %v239
      %v727 = vunpack.c.h.b16 %v239
      %v728 = vunpack.c.l.b16 %v240
      %v729 = vunpack.c.h.b16 %v240
      %v730 = vunpack.c.l.b16 %v241
      %v731 = vunpack.c.h.b16 %v241
      %v732 = vunpack.c.l.b16 %v242
      %v733 = vunpack.c.h.b16 %v242
      %v734 = vunpack.c.l.b16 %v243
      %v735 = vunpack.c.h.b16 %v243
      %v736 = vunpack.c.l.b16 %v244
      %v737 = vunpack.c.h.b16 %v244
      %v738 = vunpack.c.l.b16 %v245
      %v739 = vunpack.c.h.b16 %v245
      %v740 = vunpack.c.l.b16 %v246
      %v741 = vunpack.c.h.b16 %v246
      %v742 = vunpack.c.l.b16 %v247
      %v743 = vunpack.c.h.b16 %v247
      %v744 = vunpack.c.l.b16 %v248
      %v745 = vunpack.c.h.b16 %v248
      %v746 = vunpack.c.l.b16 %v249
      %v747 = vunpack.c.h.b16 %v249
      %v748 = vpack.c.b16 %v622, %v604
      %v749 = vpack.c.b16 %v623, %v605
      %v750 = vpack.c.b16 %v624, %v606
      %v751 = vpack.c.b16 %v625, %v607
      %v752 = vpack.c.b16 %v626, %v608
      %v753 = vpack.c.b16 %v627, %v609
      %v754 = vpack.c.b16 %v628, %v610
      %v755 = vpack.c.b16 %v629, %v611
      %v756 = vpack.c.b16 %v630, %v612
      %v757 = vpack.c.b16 %v631, %v613
      %v758 = vpack.c.b16 %v632, %v614
      %v759 = vpack.c.b16 %v633, %v615
      %v760 = vpack.c.b16 %v634, %v616
      %v761 = vpack.c.b16 %v635, %v617
      %v762 = vpack.c.b16 %v636, %v618
      %v763 = vpack.c.b16 %v637, %v619
      %v764 = vpack.c.b16 %v638, %v620
      %v765 = vpack.c.b16 %v639, %v621
      %v766 = vpack.c.b16 %v658, %v640
      %v767 = vpack.c.b16 %v659, %v641
      %v768 = vpack.c.b16 %v660, %v642
      %v769 = vpack.c.b16 %v661, %v643
      %v770 = vpack.c.b16 %v662, %v644
      %v771 = vpack.c.b16 %v663, %v645
      %v772 = vpack.c.b16 %v664, %v646
      %v773 = vpack.c.b16 %v665, %v647
      %v774 = vpack.c.b16 %v666, %v648
      %v775 = vpack.c.b16 %v667, %v649
      %v776 = vpack.c.b16 %v668, %v650
      %v777 = vpack.c.b16 %v669, %v651
      %v778 = vpack.c.b16 %v670, %v652
      %v779 = vpack.c.b16 %v671, %v653
      %v780 = vpack.c.b16 %v672, %v654
      %v781 = vpack.c.b16 %v673, %v655
      %v782 = vpack.c.b16 %v674, %v656
      %v783 = vpack.c.b16 %v675, %v657
      %v784 = vpack.c.b16 %v694, %v676
      %v785 = vpack.c.b16 %v695, %v677
      %v786 = vpack.c.b16 %v696, %v678
      %v787 = vpack.c.b16 %v697, %v679
      %v788 = vpack.c.b16 %v698, %v680
      %v789 = vpack.c.b16 %v699, %v681
      %v790 = vpack.c.b16 %v700, %v682
      %v791 = vpack.c.b16 %v701, %v683
      %v792 = vpack.c.b16 %v702, %v684
      %v793 = vpack.c.b16 %v703, %v685
      %v794 = vpack.c.b16 %v704, %v686
      %v795 = vpack.c.b16 %v705, %v687
      %v796 = vpack.c.b16 %v706, %v688
      %v797 = vpack.c.b16 %v707, %v689
      %v798 = vpack.c.b16 %v708, %v690
      %v799 = vpack.c.b16 %v709, %v691
      %v800 = vpack.c.b16 %v710, %v692
      %v801 = vpack.c.b16 %v711, %v693
      %v802 = vpack.c.b16 %v730, %v712
      %v803 = vpack.c.b16 %v731, %v713
      %v804 = vpack.c.b16 %v732, %v714
      %v805 = vpack.c.b16 %v733, %v715
      %v806 = vpack.c.b16 %v734, %v716
      %v807 = vpack.c.b16 %v735, %v717
      %v808 = vpack.c.b16 %v736, %v718
      %v809 = vpack.c.b16 %v737, %v719
      %v810 = vpack.c.b16 %v738, %v720
      %v811 = vpack.c.b16 %v739, %v721
      %v812 = vpack.c.b16 %v740, %v722
      %v813 = vpack.c.b16 %v741, %v723
      %v814 = vpack.c.b16 %v742, %v724
      %v815 = vpack.c.b16 %v743, %v725
      %v816 = vpack.c.b16 %v744, %v726
      %v817 = vpack.c.b16 %v745, %v727
      %v818 = vpack.c.b16 %v746, %v728
      %v819 = vpack.c.b16 %v747, %v729
      %v1163 = vunpack.c.l.b16 %v250
      %v1164 = vunpack.c.l.b16 %v251
      %v1165 = vunpack.c.l.b16 %v252
      %v1166 = vunpack.c.l.b16 %v253
      %v1167 = vunpack.c.l.b16 %v254
      %v1168 = vunpack.c.l.b16 %v255
      %v1169 = vunpack.c.l.b16 %v256
      %v1170 = vunpack.c.l.b16 %v257
      %v1171 = vunpack.c.l.b16 %v258
      %v1172 = vunpack.c.l.b16 %v259
      %v1173 = vunpack.c.l.b16 %v260
      %v1174 = vunpack.c.l.b16 %v261
      %v1175 = vunpack.c.l.b16 %v262
      %v1176 = vunpack.c.l.b16 %v263
      %v1177 = vunpack.c.l.b16 %v264
      %v1178 = vunpack.c.l.b16 %v265
      %v1179 = vunpack.c.l.b16 %v266
      %v1180 = vunpack.c.l.b16 %v267
      %v1181 = vunpack.c.l.b16 %v268
      %v1182 = vunpack.c.l.b16 %v269
      %v1183 = vunpack.c.l.b16 %v270
      %v1184 = vunpack.c.l.b16 %v271
      %v1185 = vunpack.c.l.b16 %v272
      %v1186 = vunpack.c.l.b16 %v273
      %v1187 = vunpack.c.l.b16 %v274
      %v1188 = vunpack.c.l.b16 %v275
      %v1189 = vunpack.c.l.b16 %v276
      %v1190 = vunpack.c.l.b16 %v277
      %v1191 = vunpack.c.l.b16 %v278
      %v1192 = vunpack.c.l.b16 %v279
      %v1193 = vunpack.c.l.b16 %v280
      %v1194 = vunpack.c.l.b16 %v281
      %v1195 = vunpack.c.l.b16 %v282
      %v1196 = vunpack.c.l.b16 %v283
      %v1197 = vunpack.c.l.b16 %v284
      %v1198 = vunpack.c.l.b16 %v285
      %v1199 = vunpack.c.l.b16 %v286
      %v1200 = vunpack.c.l.b16 %v287
      %v1201 = vunpack.c.l.b16 %v288
      %v1202 = vunpack.c.l.b16 %v289
      %v1203 = vunpack.c.l.b16 %v290
      %v1204 = vunpack.c.l.b16 %v291
      %v1205 = vunpack.c.l.b16 %v292
      %v1206 = vunpack.c.l.b16 %v293
      %v1207 = vunpack.c.l.b16 %v294
      %v1208 = vunpack.c.l.b16 %v295
      %v1209 = vunpack.c.l.b16 %v296
      %v1210 = vunpack.c.l.b16 %v297
      %v1211 = vunpack.c.l.b16 %v298
      %v1212 = vunpack.c.l.b16 %v299
      %v1213 = vunpack.c.l.b16 %v300
      %v1214 = vunpack.c.l.b16 %v301
      %v1215 = vunpack.c.l.b16 %v302
      %v1216 = vunpack.c.l.b16 %v303
      %v1217 = vunpack.c.l.b16 %v304
      %v1218 = vunpack.c.l.b16 %v305
      %v1219 = vunpack.c.l.b16 %v306
      %v1220 = vunpack.c.l.b16 %v307
      %v1221 = vunpack.c.l.b16 %v308
      %v1222 = vunpack.c.l.b16 %v309
      %v1223 = vunpack.c.l.b16 %v310
      %v1224 = vunpack.c.l.b16 %v311
      %v1225 = vunpack.c.l.b16 %v312
      %v1226 = vunpack.c.l.b16 %v313
      %v1227 = vunpack.c.l.b16 %v314
      %v1228 = vunpack.c.l.b16 %v315
      %v1229 = vunpack.c.l.b16 %v316
      %v1230 = vunpack.c.l.b16 %v317
      %v1231 = vunpack.c.l.b16 %v318
      %v1232 = vunpack.c.l.b16 %v319
      %v1233 = vunpack.c.l.b16 %v320
      %v1234 = vunpack.c.l.b16 %v321
      %v1235 = vunpack.c.l.b16 %v322
      %v1236 = vunpack.c.l.b16 %v323
      %v1237 = vunpack.c.l.b16 %v324
      %v1238 = vunpack.c.l.b16 %v325
      %v1239 = vunpack.c.l.b16 %v326
      %v1240 = vunpack.c.l.b16 %v327
      %v1241 = vunpack.c.l.b16 %v328
      %v1242 = vunpack.c.l.b16 %v329
      %v1243 = vunpack.c.l.b16 %v330
      %v1244 = vunpack.c.l.b16 %v331
      %v1245 = vunpack.c.l.b16 %v332
      %v1246 = vunpack.c.l.b16 %v333
      %v1247 = vunpack.c.l.b16 %v334
      %v1248 = vunpack.c.l.b16 %v335
      %v1249 = vunpack.c.l.b16 %v336
      %v1250 = vunpack.c.l.b16 %v337
      %v1251 = vunpack.c.l.b16 %v338
      %v1252 = vunpack.c.l.b16 %v339
      %v1253 = vunpack.c.l.b16 %v340
      %v1254 = vunpack.c.l.b16 %v341
      %v1255 = vunpack.c.l.b16 %v342
      %v1256 = vunpack.c.l.b16 %v343
      %v1257 = vunpack.c.l.b16 %v344
      %v1258 = vunpack.c.l.b16 %v345
      %v1259 = vunpack.c.l.b16 %v346
      %v1260 = vunpack.c.l.b16 %v347
      %v1261 = vunpack.c.l.b16 %v348
      %v1262 = vunpack.c.l.b16 %v349
      %v1263 = vunpack.c.l.b16 %v350
      %v1264 = vunpack.c.l.b16 %v351
      %v1265 = vunpack.c.l.b16 %v352
      %v1266 = vunpack.c.l.b16 %v353
      %v1267 = vunpack.c.l.b16 %v354
      %v1268 = vunpack.c.l.b16 %v355
      %v1269 = vunpack.c.l.b16 %v356
      %v1270 = vunpack.c.l.b16 %v357
      %v1271 = vunpack.c.l.b16 %v358
      %v1272 = vunpack.c.l.b16 %v359
      %v1273 = vunpack.c.l.b16 %v360
      %v1274 = vunpack.c.l.b16 %v361
      %v1275 = vunpack.c.l.b16 %v362
      %v1276 = vunpack.c.l.b16 %v363
      %v1277 = vunpack.c.l.b16 %v364
      %v1278 = vunpack.c.l.b16 %v365
      %v1279 = vunpack.c.l.b16 %v366
      %v1280 = vunpack.c.l.b16 %v367
      %v1281 = vunpack.c.l.b16 %v368
      %v1282 = vunpack.c.l.b16 %v369
      %v1283 = vunpack.c.l.b16 %v370
      %v1284 = vunpack.c.l.b16 %v371
      %v1285 = vunpack.c.l.b16 %v372
      %v1286 = vunpack.c.l.b16 %v373
      %v1287 = vunpack.c.l.b16 %v374
      %v1288 = vunpack.c.l.b16 %v375
      %v1289 = vunpack.c.l.b16 %v376
      %v1290 = vunpack.c.l.b16 %v377
      %v1291 = vunpack.c.l.b16 %v378
      %v1292 = vunpack.c.l.b16 %v379
      %v1293 = vunpack.c.l.b16 %v380
      %v1294 = vunpack.c.l.b16 %v381
      %v1295 = vunpack.c.l.b16 %v382
      %v1296 = vunpack.c.l.b16 %v383
      %v1297 = vunpack.c.l.b16 %v384
      %v1298 = vunpack.c.l.b16 %v385
      %v1299 = vunpack.c.l.b16 %v386
      %v1300 = vunpack.c.l.b16 %v387
      %v1301 = vunpack.c.l.b16 %v388
      %v1302 = vunpack.c.l.b16 %v389
      %v1303 = vunpack.c.l.b16 %v390
      %v1304 = vunpack.c.l.b16 %v391
      %v1305 = vunpack.c.l.b16 %v392
      %v1306 = vunpack.c.l.b16 %v393
      %v1307 = vunpack.c.l.b16 %v394
      %v1308 = vunpack.c.l.b16 %v395
      %v1309 = vunpack.c.l.b16 %v396
      %v1310 = vunpack.c.l.b16 %v397
      %v1311 = vunpack.c.l.b16 %v398
      %v1312 = vunpack.c.l.b16 %v399
      %v1313 = vunpack.c.l.b16 %v400
      %v1314 = vunpack.c.l.b16 %v401
      %v1315 = vunpack.c.l.b16 %v402
      %v1316 = vunpack.c.l.b16 %v403
      %v1317 = vunpack.c.l.b16 %v404
      %v1318 = vunpack.c.l.b16 %v405
      %v1319 = vunpack.c.l.b16 %v406
      %v1320 = vunpack.c.l.b16 %v407
      %v1321 = vunpack.c.l.b16 %v408
      %v1322 = vunpack.c.l.b16 %v409
      %v1323 = vunpack.c.l.b16 %v410
      %v1324 = vunpack.c.l.b16 %v411
      %v1325 = vunpack.c.l.b16 %v412
      %v1326 = vunpack.c.l.b16 %v413
      %v1327 = vunpack.c.l.b16 %v414
      %v1328 = vunpack.c.l.b16 %v415
      %v1329 = vunpack.c.l.b16 %v416
      %v1330 = vunpack.c.l.b16 %v417
      %v1331 = vunpack.c.l.b16 %v418
      %v1332 = vunpack.c.l.b16 %v419
      %v1333 = vunpack.c.l.b16 %v420
      %v1334 = vunpack.c.l.b16 %v421
      %v1335 = vunpack.c.l.b16 %v422
      %v1336 = vunpack.c.l.b16 %v423
      %v1337 = vunpack.c.l.b16 %v424
      %v1338 = vunpack.c.l.b16 %v425
      %v1339 = vunpack.c.l.b16 %v426
      %v1340 = vunpack.c.l.b16 %v427
      %v1341 = vunpack.c.l.b16 %v428
      %v1342 = vunpack.c.l.b16 %v429
      %v1343 = vunpack.c.l.b16 %v430
      %v1344 = vunpack.c.l.b16 %v431
      %v1345 = vunpack.c.l.b16 %v432
      %v1346 = vunpack.c.l.b16 %v433
      %v1347 = vunpack.c.l.b16 %v434
      %v1348 = vunpack.c.l.b16 %v435
      %v1349 = vunpack.c.l.b16 %v436
      %v1350 = vunpack.c.l.b16 %v437
      %v1351 = vunpack.c.l.b16 %v438
      %v1352 = vunpack.c.l.b16 %v439
      %v1353 = vunpack.c.l.b16 %v440
      %v1354 = vunpack.c.l.b16 %v441
      %v1355 = vunpack.c.l.b16 %v442
      %v1356 = vunpack.c.l.b16 %v443
      %v1357 = vunpack.c.l.b16 %v444
      %v1358 = vunpack.c.l.b16 %v445
      %v1359 = vunpack.c.l.b16 %v446
      %v1360 = vunpack.c.l.b16 %v447
      %v1361 = vunpack.c.l.b16 %v448
      %v1362 = vunpack.c.l.b16 %v449
      %v1363 = vunpack.c.l.b16 %v450
      %v1364 = vunpack.c.l.b16 %v451
      %v1365 = vunpack.c.l.b16 %v452
      %v1366 = vunpack.c.l.b16 %v453
      %v1367 = vunpack.c.l.b16 %v454
      %v1368 = vunpack.c.l.b16 %v455
      %v1369 = vunpack.c.l.b16 %v456
      %v1370 = vunpack.c.l.b16 %v457
      %v1371 = vunpack.c.l.b16 %v458
      %v1372 = vunpack.c.l.b16 %v459
      %v1373 = vunpack.c.l.b16 %v460
      %v1374 = vunpack.c.l.b16 %v461
      %v1375 = vunpack.c.l.b16 %v462
      %v1376 = vunpack.c.l.b16 %v463
      %v1377 = vunpack.c.l.b16 %v464
      %v1378 = vunpack.c.l.b16 %v465
      %v1379 = vunpack.c.l.b16 %v466
      %v1380 = vunpack.c.l.b16 %v467
      %v1381 = vunpack.c.l.b16 %v468
      %v1382 = vunpack.c.l.b16 %v469
      %v1383 = vunpack.c.l.b16 %v470
      %v1384 = vunpack.c.l.b16 %v471
      %v1385 = vunpack.c.l.b16 %v472
      %v1386 = vunpack.c.l.b16 %v473
      %v1387 = vunpack.c.l.b16 %v474
      %v1388 = vunpack.c.l.b16 %v475
      %v1389 = vunpack.c.l.b16 %v476
      %v1390 = vunpack.c.l.b16 %v477
      %v1391 = vunpack.c.l.b16 %v478
      %v1392 = vunpack.c.l.b16 %v479
      %v1393 = vunpack.c.l.b16 %v480
      %v1394 = vunpack.c.l.b16 %v481
      %v1395 = vunpack.c.l.b16 %v482
      %v1396 = vunpack.c.l.b16 %v483
      %v1397 = vunpack.c.l.b16 %v484
      %v1398 = vunpack.c.l.b16 %v485
      %v1399 = vunpack.c.l.b16 %v486
      %v1400 = vunpack.c.l.b16 %v487
      %v1401 = vunpack.c.l.b16 %v488
      %v1402 = vunpack.c.l.b16 %v489
      %v1403 = vunpack.c.l.b16 %v490
      %v1404 = vunpack.c.l.b16 %v491
      %v1405 = vunpack.c.l.b16 %v492
      %v1406 = vunpack.c.l.b16 %v493
      %v1407 = vunpack.c.l.b16 %v494
      %v1408 = vunpack.c.l.b16 %v495
      %v1409 = vunpack.c.l.b16 %v496
      %v1410 = vunpack.c.l.b16 %v497
      %v1411 = vunpack.c.l.b16 %v498
      %v1412 = vunpack.c.l.b16 %v499
      %v1413 = vunpack.c.l.b16 %v500
      %v1414 = vunpack.c.l.b16 %v501
      %v1415 = vunpack.c.l.b16 %v502
      %v1416 = vunpack.c.l.b16 %v503
      %v1417 = vunpack.c.l.b16 %v504
      %v1418 = vunpack.c.l.b16 %v505
      %v1419 = vunpack.c.l.b16 %v506
      %v1420 = vunpack.c.l.b16 %v507
      %v1421 = vunpack.c.l.b16 %v508
      %v1422 = vunpack.c.l.b16 %v509
      %v1423 = vunpack.c.l.b16 %v510
      %v1424 = vunpack.c.l.b16 %v511
      %v1425 = vunpack.c.l.b16 %v512
      %v1426 = vunpack.c.l.b16 %v513
      %v1427 = vunpack.c.l.b16 %v514
      %v1428 = vunpack.c.l.b16 %v515
      %v1429 = vunpack.c.l.b16 %v516
      %v1430 = vunpack.c.l.b16 %v517
      %v1431 = vunpack.c.l.b16 %v518
      %v1432 = vunpack.c.l.b16 %v519
      %v1433 = vunpack.c.l.b16 %v520
      %v1434 = vunpack.c.l.b16 %v521
      %v1435 = vunpack.c.l.b16 %v522
      %v1436 = vunpack.c.l.b16 %v523
      %v1437 = vunpack.c.l.b16 %v524
      %v1438 = vpack.c.b16 %v1164, %v1163
      %v1439 = vpack.c.b16 %v1166, %v1165
      %v1440 = vpack.c.b16 %v1168, %v1167
      %v1441 = vpack.c.b16 %v1170, %v1169
      %v1442 = vpack.c.b16 %v1172, %v1171
      %v1443 = vpack.c.b16 %v1174, %v1173
      %v1444 = vpack.c.b16 %v1176, %v1175
      %v1445 = vpack.c.b16 %v1178, %v1177
      %v1446 = vpack.c.b16 %v1180, %v1179
      %v1447 = vpack.c.b16 %v1182, %v1181
      %v1448 = vpack.c.b16 %v1184, %v1183
      %v1449 = vpack.c.b16 %v1186, %v1185
      %v1450 = vpack.c.b16 %v1188, %v1187
      %v1451 = vpack.c.b16 %v1190, %v1189
      %v1452 = vpack.c.b16 %v1192, %v1191
      %v1453 = vpack.c.b16 %v1194, %v1193
      %v1454 = vpack.c.b16 %v1196, %v1195
      %v1455 = vpack.c.b16 %v1198, %v1197
      %v1456 = vpack.c.b16 %v1200, %v1199
      %v1457 = vpack.c.b16 %v1202, %v1201
      %v1458 = vpack.c.b16 %v1204, %v1203
      %v1459 = vpack.c.b16 %v1206, %v1205
      %v1460 = vpack.c.b16 %v1208, %v1207
      %v1461 = vpack.c.b16 %v1210, %v1209
      %v1462 = vpack.c.b16 %v1212, %v1211
      %v1463 = vpack.c.b16 %v1214, %v1213
      %v1464 = vpack.c.b16 %v1216, %v1215
      %v1465 = vpack.c.b16 %v1218, %v1217
      %v1466 = vpack.c.b16 %v1220, %v1219
      %v1467 = vpack.c.b16 %v1222, %v1221
      %v1468 = vpack.c.b16 %v1224, %v1223
      %v1469 = vpack.c.b16 %v1226, %v1225
      %v1470 = vpack.c.b16 %v1228, %v1227
      %v1471 = vpack.c.b16 %v1230, %v1229
      %v1472 = vpack.c.b16 %v1232, %v1231
      %v1473 = vpack.c.b16 %v1234, %v1233
      %v1474 = vpack.c.b16 %v1236, %v1235
      %v1475 = vpack.c.b16 %v1238, %v1237
      %v1476 = vpack.c.b16 %v1240, %v1239
      %v1477 = vpack.c.b16 %v1242, %v1241
      %v1478 = vpack.c.b16 %v1244, %v1243
      %v1479 = vpack.c.b16 %v1246, %v1245
      %v1480 = vpack.c.b16 %v1248, %v1247
      %v1481 = vpack.c.b16 %v1250, %v1249
      %v1482 = vpack.c.b16 %v1252, %v1251
      %v1483 = vpack.c.b16 %v1254, %v1253
      %v1484 = vpack.c.b16 %v1256, %v1255
      %v1485 = vpack.c.b16 %v1258, %v1257
      %v1486 = vpack.c.b16 %v1260, %v1259
      %v1487 = vpack.c.b16 %v1262, %v1261
      %v1488 = vpack.c.b16 %v1264, %v1263
      %v1489 = vpack.c.b16 %v1266, %v1265
      %v1490 = vpack.c.b16 %v1268, %v1267
      %v1491 = vpack.c.b16 %v1270, %v1269
      %v1492 = vpack.c.b16 %v1272, %v1271
      %v1493 = vpack.c.b16 %v1274, %v1273
      %v1494 = vpack.c.b16 %v1276, %v1275
      %v1495 = vpack.c.b16 %v1278, %v1277
      %v1496 = vpack.c.b16 %v1280, %v1279
      %v1497 = vpack.c.b16 %v1282, %v1281
      %v1498 = vpack.c.b16 %v1284, %v1283
      %v1499 = vpack.c.b16 %v1286, %v1285
      %v1500 = vpack.c.b16 %v1288, %v1287
      %v1501 = vpack.c.b16 %v1290, %v1289
      %v1502 = vpack.c.b16 %v1292, %v1291
      %v1503 = vpack.c.b16 %v1294, %v1293
      %v1504 = vpack.c.b16 %v1296, %v1295
      %v1505 = vpack.c.b16 %v1298, %v1297
      %v1506 = vpack.c.b16 %v1300, %v1299
      %v1507 = vpack.c.b16 %v1302, %v1301
      %v1508 = vpack.c.b16 %v1304, %v1303
      %v1509 = vpack.c.b16 %v1306, %v1305
      %v1510 = vpack.c.b16 %v1308, %v1307
      %v1511 = vpack.c.b16 %v1310, %v1309
      %v1512 = vpack.c.b16 %v1312, %v1311
      %v1513 = vpack.c.b16 %v1314, %v1313
      %v1514 = vpack.c.b16 %v1316, %v1315
      %v1515 = vpack.c.b16 %v1318, %v1317
      %v1516 = vpack.c.b16 %v1320, %v1319
      %v1517 = vpack.c.b16 %v1322, %v1321
      %v1518 = vpack.c.b16 %v1324, %v1323
      %v1519 = vpack.c.b16 %v1326, %v1325
      %v1520 = vpack.c.b16 %v1328, %v1327
      %v1521 = vpack.c.b16 %v1330, %v1329
      %v1522 = vpack.c.b16 %v1332, %v1331
      %v1523 = vpack.c.b16 %v1334, %v1333
      %v1524 = vpack.c.b16 %v1336, %v1335
      %v1525 = vpack.c.b16 %v1338, %v1337
      %v1526 = vpack.c.b16 %v1340, %v1339
      %v1527 = vpack.c.b16 %v1342, %v1341
      %v1528 = vpack.c.b16 %v1344, %v1343
      %v1529 = vpack.c.b16 %v1346, %v1345
      %v1530 = vpack.c.b16 %v1348, %v1347
      %v1531 = vpack.c.b16 %v1350, %v1349
      %v1532 = vpack.c.b16 %v1352, %v1351
      %v1533 = vpack.c.b16 %v1354, %v1353
      %v1534 = vpack.c.b16 %v1356, %v1355
      %v1535 = vpack.c.b16 %v1358, %v1357
      %v1536 = vpack.c.b16 %v1360, %v1359
      %v1537 = vpack.c.b16 %v1362, %v1361
      %v1538 = vpack.c.b16 %v1364, %v1363
      %v1539 = vpack.c.b16 %v1366, %v1365
      %v1540 = vpack.c.b16 %v1368, %v1367
      %v1541 = vpack.c.b16 %v1370, %v1369
      %v1542 = vpack.c.b16 %v1372, %v1371
      %v1543 = vpack.c.b16 %v1374, %v1373
      %v1544 = vpack.c.b16 %v1376, %v1375
      %v1545 = vpack.c.b16 %v1378, %v1377
      %v1546 = vpack.c.b16 %v1380, %v1379
      %v1547 = vpack.c.b16 %v1382, %v1381
      %v1548 = vpack.c.b16 %v1384, %v1383
      %v1549 = vpack.c.b16 %v1386, %v1385
      %v1550 = vpack.c.b16 %v1388, %v1387
      %v1551 = vpack.c.b16 %v1390, %v1389
      %v1552 = vpack.c.b16 %v1392, %v1391
      %v1553 = vpack.c.b16 %v1394, %v1393
      %v1554 = vpack.c.b16 %v1396, %v1395
      %v1555 = vpack.c.b16 %v1398, %v1397
      %v1556 = vpack.c.b16 %v1400, %v1399
      %v1557 = vpack.c.b16 %v1402, %v1401
      %v1558 = vpack.c.b16 %v1404, %v1403
      %v1559 = vpack.c.b16 %v1406, %v1405
      %v1560 = vpack.c.b16 %v1408, %v1407
      %v1561 = vpack.c.b16 %v1410, %v1409
      %v1562 = vpack.c.b16 %v1412, %v1411
      %v1563 = vpack.c.b16 %v1414, %v1413
      %v1564 = vpack.c.b16 %v1416, %v1415
      %v1565 = vpack.c.b16 %v1418, %v1417
      %v1566 = vpack.c.b16 %v1420, %v1419
      %v1567 = vpack.c.b16 %v1422, %v1421
      %v1568 = vpack.c.b16 %v1424, %v1423
      %v1569 = vpack.c.b16 %v1426, %v1425
      %v1570 = vpack.c.b16 %v1428, %v1427
      %v1571 = vpack.c.b16 %v1430, %v1429
      %v1572 = vpack.c.b16 %v1432, %v1431
      %v1573 = vpack.c.b16 %v1434, %v1433
      %v1574 = vpack.c.b16 %v1436, %v1435
      %v1575 = vpack.c.b16 %v1437, %v1437
      %vm1713 = vcmask 195584
      %v1715 = vsel %vm1713, %v765, 0
      %v1718 = vsel %vm1713, %v783, 0
      %v1721 = vsel %vm1713, %v801, 0
      %v1724 = vsel %vm1713, %v819, 0
      %vm1726 = vcmask 1043456
      %v1728 = vsel %vm1726, %v1575, 0
      %1730 = vmatprep.subr.bf16.mxu0 0
      %1731 = vmatpush1.bf16.msra.mxu0 %v1445
      %1732 = vmatprep.subr.bf16.mxu0 0
      %1733 = vmatpush1.bf16.msra.mxu0 %v1444
      %1734 = vmatprep.subr.bf16.mxu0 0
      %1735 = vmatpush1.bf16.msra.mxu0 %v1443
      %1736 = vmatprep.subr.bf16.mxu0 0
      %1737 = vmatpush1.bf16.msra.mxu0 %v1442
      %1738 = vmatprep.subr.bf16.mxu0 0
      %1739 = vmatpush1.bf16.msra.mxu0 %v1441
      %1740 = vmatprep.subr.bf16.mxu0 0
      %1741 = vmatpush1.bf16.msra.mxu0 %v1440
      %1742 = vmatprep.subr.bf16.mxu0 0
      %1743 = vmatpush1.bf16.msra.mxu0 %v1439
      %1744 = vmatprep.subr.bf16.mxu0 0
      %1745 = vmatpush1.bf16.msra.mxu0 %v1438
      %1746 = vmatprep.subr.bf16.mxu0 0
      %1747 = vmatpush2.bf16.msra.mxu0 %v1453
      %1748 = vmatprep.subr.bf16.mxu0 0
      %1749 = vmatpush2.bf16.msra.mxu0 %v1452
      %1750 = vmatprep.subr.bf16.mxu0 0
      %1751 = vmatpush2.bf16.msra.mxu0 %v1451
      %1752 = vmatprep.subr.bf16.mxu0 0
      %1753 = vmatpush2.bf16.msra.mxu0 %v1450
      %1754 = vmatprep.subr.bf16.mxu0 0
      %1755 = vmatpush2.bf16.msra.mxu0 %v1449
      %1756 = vmatprep.subr.bf16.mxu0 0
      %1757 = vmatpush2.bf16.msra.mxu0 %v1448
      %1758 = vmatprep.subr.bf16.mxu0 0
      %1759 = vmatpush2.bf16.msra.mxu0 %v1447
      %1760 = vmatprep.subr.bf16.mxu0 0
      %1761 = vmatpush2.bf16.msra.mxu0 %v1446
      %1762 = vmatprep.mubr.bf16.mxu0 %v749
      %1763 = vmatmul.mubr.bf16.gmra.mxu0 %v748
      %v1764 = vpop.f32.mrf.mxu0
      %v1765 = vadd.f32 %v530, %v1764
      %v1766 = vpop.f32.mrf.mxu0
      %v1767 = vpop.f32.mrf.mxu0
      %v1768 = vadd.f32 %v530, %v1767
      %v1769 = vpop.f32.mrf.mxu0
      %1770 = vmatprep.mubr.bf16.mxu0 %v767
      %1771 = vmatmul.mubr.bf16.gmra.mxu0 %v766
      %v1772 = vpop.f32.mrf.mxu0
      %v1773 = vadd.f32 %v530, %v1772
      %v1774 = vpop.f32.mrf.mxu0
      %v1775 = vpop.f32.mrf.mxu0
      %v1776 = vadd.f32 %v530, %v1775
      %v1777 = vpop.f32.mrf.mxu0
      %1778 = vmatprep.mubr.bf16.mxu0 %v785
      %1779 = vmatmul.mubr.bf16.gmra.mxu0 %v784
      %v1780 = vpop.f32.mrf.mxu0
      %v1781 = vadd.f32 %v530, %v1780
      %v1782 = vpop.f32.mrf.mxu0
      %v1783 = vpop.f32.mrf.mxu0
      %v1784 = vadd.f32 %v530, %v1783
      %v1785 = vpop.f32.mrf.mxu0
      %1786 = vmatprep.mubr.bf16.mxu0 %v803
      %1787 = vmatmul.mubr.bf16.gmra.mxu0 %v802
      %v1788 = vpop.f32.mrf.mxu0
      %v1789 = vadd.f32 %v530, %v1788
      %v1790 = vpop.f32.mrf.mxu0
      %v1791 = vpop.f32.mrf.mxu0
      %v1792 = vadd.f32 %v530, %v1791
      %v1793 = vpop.f32.mrf.mxu0
      %1794 = vdwg.mxu0
      %1795 = vmatprep.subr.bf16.mxu0 0
      %1796 = vmatpush1.bf16.msra.mxu0 %v1461
      %1797 = vmatprep.subr.bf16.mxu0 0
      %1798 = vmatpush1.bf16.msra.mxu0 %v1460
      %1799 = vmatprep.subr.bf16.mxu0 0
      %1800 = vmatpush1.bf16.msra.mxu0 %v1459
      %1801 = vmatprep.subr.bf16.mxu0 0
      %1802 = vmatpush1.bf16.msra.mxu0 %v1458
      %1803 = vmatprep.subr.bf16.mxu0 0
      %1804 = vmatpush1.bf16.msra.mxu0 %v1457
      %1805 = vmatprep.subr.bf16.mxu0 0
      %1806 = vmatpush1.bf16.msra.mxu0 %v1456
      %1807 = vmatprep.subr.bf16.mxu0 0
      %1808 = vmatpush1.bf16.msra.mxu0 %v1455
      %1809 = vmatprep.subr.bf16.mxu0 0
      %1810 = vmatpush1.bf16.msra.mxu0 %v1454
      %1811 = vmatprep.subr.bf16.mxu0 0
      %1812 = vmatpush2.bf16.msra.mxu0 %v1469
      %1813 = vmatprep.subr.bf16.mxu0 0
      %1814 = vmatpush2.bf16.msra.mxu0 %v1468
      %1815 = vmatprep.subr.bf16.mxu0 0
      %1816 = vmatpush2.bf16.msra.mxu0 %v1467
      %1817 = vmatprep.subr.bf16.mxu0 0
      %1818 = vmatpush2.bf16.msra.mxu0 %v1466
      %1819 = vmatprep.subr.bf16.mxu0 0
      %1820 = vmatpush2.bf16.msra.mxu0 %v1465
      %1821 = vmatprep.subr.bf16.mxu0 0
      %1822 = vmatpush2.bf16.msra.mxu0 %v1464
      %1823 = vmatprep.subr.bf16.mxu0 0
      %1824 = vmatpush2.bf16.msra.mxu0 %v1463
      %1825 = vmatprep.subr.bf16.mxu0 0
      %1826 = vmatpush2.bf16.msra.mxu0 %v1462
      %1827 = vmatprep.mubr.bf16.mxu0 %v751
      %1828 = vmatmul.mubr.bf16.gmra.mxu0 %v750
      %v1829 = vpop.f32.mrf.mxu0
      %v1830 = vadd.f32 %v1765, %v1829
      %v1831 = vpop.f32.mrf.mxu0
      %v1832 = vpop.f32.mrf.mxu0
      %v1833 = vadd.f32 %v1768, %v1832
      %v1834 = vpop.f32.mrf.mxu0
      %1835 = vmatprep.mubr.bf16.mxu0 %v769
      %1836 = vmatmul.mubr.bf16.gmra.mxu0 %v768
      %v1837 = vpop.f32.mrf.mxu0
      %v1838 = vadd.f32 %v1773, %v1837
      %v1839 = vpop.f32.mrf.mxu0
      %v1840 = vpop.f32.mrf.mxu0
      %v1841 = vadd.f32 %v1776, %v1840
      %v1842 = vpop.f32.mrf.mxu0
      %1843 = vmatprep.mubr.bf16.mxu0 %v787
      %1844 = vmatmul.mubr.bf16.gmra.mxu0 %v786
      %v1845 = vpop.f32.mrf.mxu0
      %v1846 = vadd.f32 %v1781, %v1845
      %v1847 = vpop.f32.mrf.mxu0
      %v1848 = vpop.f32.mrf.mxu0
      %v1849 = vadd.f32 %v1784, %v1848
      %v1850 = vpop.f32.mrf.mxu0
      %1851 = vmatprep.mubr.bf16.mxu0 %v805
      %1852 = vmatmul.mubr.bf16.gmra.mxu0 %v804
      %v1853 = vpop.f32.mrf.mxu0
      %v1854 = vadd.f32 %v1789, %v1853
      %v1855 = vpop.f32.mrf.mxu0
      %v1856 = vpop.f32.mrf.mxu0
      %v1857 = vadd.f32 %v1792, %v1856
      %v1858 = vpop.f32.mrf.mxu0
      %1859 = vdwg.mxu0
      %1860 = vmatprep.subr.bf16.mxu0 0
      %1861 = vmatpush1.bf16.msra.mxu0 %v1477
      %1862 = vmatprep.subr.bf16.mxu0 0
      %1863 = vmatpush1.bf16.msra.mxu0 %v1476
      %1864 = vmatprep.subr.bf16.mxu0 0
      %1865 = vmatpush1.bf16.msra.mxu0 %v1475
      %1866 = vmatprep.subr.bf16.mxu0 0
      %1867 = vmatpush1.bf16.msra.mxu0 %v1474
      %1868 = vmatprep.subr.bf16.mxu0 0
      %1869 = vmatpush1.bf16.msra.mxu0 %v1473
      %1870 = vmatprep.subr.bf16.mxu0 0
      %1871 = vmatpush1.bf16.msra.mxu0 %v1472
      %1872 = vmatprep.subr.bf16.mxu0 0
      %1873 = vmatpush1.bf16.msra.mxu0 %v1471
      %1874 = vmatprep.subr.bf16.mxu0 0
      %1875 = vmatpush1.bf16.msra.mxu0 %v1470
      %1876 = vmatprep.subr.bf16.mxu0 0
      %1877 = vmatpush2.bf16.msra.mxu0 %v1485
      %1878 = vmatprep.subr.bf16.mxu0 0
      %1879 = vmatpush2.bf16.msra.mxu0 %v1484
      %1880 = vmatprep.subr.bf16.mxu0 0
      %1881 = vmatpush2.bf16.msra.mxu0 %v1483
      %1882 = vmatprep.subr.bf16.mxu0 0
      %1883 = vmatpush2.bf16.msra.mxu0 %v1482
      %1884 = vmatprep.subr.bf16.mxu0 0
      %1885 = vmatpush2.bf16.msra.mxu0 %v1481
      %1886 = vmatprep.subr.bf16.mxu0 0
      %1887 = vmatpush2.bf16.msra.mxu0 %v1480
      %1888 = vmatprep.subr.bf16.mxu0 0
      %1889 = vmatpush2.bf16.msra.mxu0 %v1479
      %1890 = vmatprep.subr.bf16.mxu0 0
      %1891 = vmatpush2.bf16.msra.mxu0 %v1478
      %1892 = vmatprep.mubr.bf16.mxu0 %v753
      %1893 = vmatmul.mubr.bf16.gmra.mxu0 %v752
      %v1894 = vpop.f32.mrf.mxu0
      %v1895 = vadd.f32 %v1830, %v1894
      %v1896 = vpop.f32.mrf.mxu0
      %v1897 = vpop.f32.mrf.mxu0
      %v1898 = vadd.f32 %v1833, %v1897
      %v1899 = vpop.f32.mrf.mxu0
      %1900 = vmatprep.mubr.bf16.mxu0 %v771
      %1901 = vmatmul.mubr.bf16.gmra.mxu0 %v770
      %v1902 = vpop.f32.mrf.mxu0
      %v1903 = vadd.f32 %v1838, %v1902
      %v1904 = vpop.f32.mrf.mxu0
      %v1905 = vpop.f32.mrf.mxu0
      %v1906 = vadd.f32 %v1841, %v1905
      %v1907 = vpop.f32.mrf.mxu0
      %1908 = vmatprep.mubr.bf16.mxu0 %v789
      %1909 = vmatmul.mubr.bf16.gmra.mxu0 %v788
      %v1910 = vpop.f32.mrf.mxu0
      %v1911 = vadd.f32 %v1846, %v1910
      %v1912 = vpop.f32.mrf.mxu0
      %v1913 = vpop.f32.mrf.mxu0
      %v1914 = vadd.f32 %v1849, %v1913
      %v1915 = vpop.f32.mrf.mxu0
      %1916 = vmatprep.mubr.bf16.mxu0 %v807
      %1917 = vmatmul.mubr.bf16.gmra.mxu0 %v806
      %v1918 = vpop.f32.mrf.mxu0
      %v1919 = vadd.f32 %v1854, %v1918
      %v1920 = vpop.f32.mrf.mxu0
      %v1921 = vpop.f32.mrf.mxu0
      %v1922 = vadd.f32 %v1857, %v1921
      %v1923 = vpop.f32.mrf.mxu0
      %1924 = vdwg.mxu0
      %1925 = vmatprep.subr.bf16.mxu0 0
      %1926 = vmatpush1.bf16.msra.mxu0 %v1493
      %1927 = vmatprep.subr.bf16.mxu0 0
      %1928 = vmatpush1.bf16.msra.mxu0 %v1492
      %1929 = vmatprep.subr.bf16.mxu0 0
      %1930 = vmatpush1.bf16.msra.mxu0 %v1491
      %1931 = vmatprep.subr.bf16.mxu0 0
      %1932 = vmatpush1.bf16.msra.mxu0 %v1490
      %1933 = vmatprep.subr.bf16.mxu0 0
      %1934 = vmatpush1.bf16.msra.mxu0 %v1489
      %1935 = vmatprep.subr.bf16.mxu0 0
      %1936 = vmatpush1.bf16.msra.mxu0 %v1488
      %1937 = vmatprep.subr.bf16.mxu0 0
      %1938 = vmatpush1.bf16.msra.mxu0 %v1487
      %1939 = vmatprep.subr.bf16.mxu0 0
      %1940 = vmatpush1.bf16.msra.mxu0 %v1486
      %1941 = vmatprep.subr.bf16.mxu0 0
      %1942 = vmatpush2.bf16.msra.mxu0 %v1501
      %1943 = vmatprep.subr.bf16.mxu0 0
      %1944 = vmatpush2.bf16.msra.mxu0 %v1500
      %1945 = vmatprep.subr.bf16.mxu0 0
      %1946 = vmatpush2.bf16.msra.mxu0 %v1499
      %1947 = vmatprep.subr.bf16.mxu0 0
      %1948 = vmatpush2.bf16.msra.mxu0 %v1498
      %1949 = vmatprep.subr.bf16.mxu0 0
      %1950 = vmatpush2.bf16.msra.mxu0 %v1497
      %1951 = vmatprep.subr.bf16.mxu0 0
      %1952 = vmatpush2.bf16.msra.mxu0 %v1496
      %1953 = vmatprep.subr.bf16.mxu0 0
      %1954 = vmatpush2.bf16.msra.mxu0 %v1495
      %1955 = vmatprep.subr.bf16.mxu0 0
      %1956 = vmatpush2.bf16.msra.mxu0 %v1494
      %1957 = vmatprep.mubr.bf16.mxu0 %v755
      %1958 = vmatmul.mubr.bf16.gmra.mxu0 %v754
      %v1959 = vpop.f32.mrf.mxu0
      %v1960 = vadd.f32 %v1895, %v1959
      %v1961 = vpop.f32.mrf.mxu0
      %v1962 = vpop.f32.mrf.mxu0
      %v1963 = vadd.f32 %v1898, %v1962
      %v1964 = vpop.f32.mrf.mxu0
      %1965 = vmatprep.mubr.bf16.mxu0 %v773
      %1966 = vmatmul.mubr.bf16.gmra.mxu0 %v772
      %v1967 = vpop.f32.mrf.mxu0
      %v1968 = vadd.f32 %v1903, %v1967
      %v1969 = vpop.f32.mrf.mxu0
      %v1970 = vpop.f32.mrf.mxu0
      %v1971 = vadd.f32 %v1906, %v1970
      %v1972 = vpop.f32.mrf.mxu0
      %1973 = vmatprep.mubr.bf16.mxu0 %v791
      %1974 = vmatmul.mubr.bf16.gmra.mxu0 %v790
      %v1975 = vpop.f32.mrf.mxu0
      %v1976 = vadd.f32 %v1911, %v1975
      %v1977 = vpop.f32.mrf.mxu0
      %v1978 = vpop.f32.mrf.mxu0
      %v1979 = vadd.f32 %v1914, %v1978
      %v1980 = vpop.f32.mrf.mxu0
      %1981 = vmatprep.mubr.bf16.mxu0 %v809
      %1982 = vmatmul.mubr.bf16.gmra.mxu0 %v808
      %v1983 = vpop.f32.mrf.mxu0
      %v1984 = vadd.f32 %v1919, %v1983
      %v1985 = vpop.f32.mrf.mxu0
      %v1986 = vpop.f32.mrf.mxu0
      %v1987 = vadd.f32 %v1922, %v1986
      %v1988 = vpop.f32.mrf.mxu0
      %1989 = vdwg.mxu0
      %1990 = vmatprep.subr.bf16.mxu0 0
      %1991 = vmatpush1.bf16.msra.mxu0 %v1509
      %1992 = vmatprep.subr.bf16.mxu0 0
      %1993 = vmatpush1.bf16.msra.mxu0 %v1508
      %1994 = vmatprep.subr.bf16.mxu0 0
      %1995 = vmatpush1.bf16.msra.mxu0 %v1507
      %1996 = vmatprep.subr.bf16.mxu0 0
      %1997 = vmatpush1.bf16.msra.mxu0 %v1506
      %1998 = vmatprep.subr.bf16.mxu0 0
      %1999 = vmatpush1.bf16.msra.mxu0 %v1505
      %2000 = vmatprep.subr.bf16.mxu0 0
      %2001 = vmatpush1.bf16.msra.mxu0 %v1504
      %2002 = vmatprep.subr.bf16.mxu0 0
      %2003 = vmatpush1.bf16.msra.mxu0 %v1503
      %2004 = vmatprep.subr.bf16.mxu0 0
      %2005 = vmatpush1.bf16.msra.mxu0 %v1502
      %2006 = vmatprep.subr.bf16.mxu0 0
      %2007 = vmatpush2.bf16.msra.mxu0 %v1517
      %2008 = vmatprep.subr.bf16.mxu0 0
      %2009 = vmatpush2.bf16.msra.mxu0 %v1516
      %2010 = vmatprep.subr.bf16.mxu0 0
      %2011 = vmatpush2.bf16.msra.mxu0 %v1515
      %2012 = vmatprep.subr.bf16.mxu0 0
      %2013 = vmatpush2.bf16.msra.mxu0 %v1514
      %2014 = vmatprep.subr.bf16.mxu0 0
      %2015 = vmatpush2.bf16.msra.mxu0 %v1513
      %2016 = vmatprep.subr.bf16.mxu0 0
      %2017 = vmatpush2.bf16.msra.mxu0 %v1512
      %2018 = vmatprep.subr.bf16.mxu0 0
      %2019 = vmatpush2.bf16.msra.mxu0 %v1511
      %2020 = vmatprep.subr.bf16.mxu0 0
      %2021 = vmatpush2.bf16.msra.mxu0 %v1510
      %2022 = vmatprep.mubr.bf16.mxu0 %v757
      %2023 = vmatmul.mubr.bf16.gmra.mxu0 %v756
      %v2024 = vpop.f32.mrf.mxu0
      %v2025 = vadd.f32 %v1960, %v2024
      %v2026 = vpop.f32.mrf.mxu0
      %v2027 = vpop.f32.mrf.mxu0
      %v2028 = vadd.f32 %v1963, %v2027
      %v2029 = vpop.f32.mrf.mxu0
      %2030 = vmatprep.mubr.bf16.mxu0 %v775
      %2031 = vmatmul.mubr.bf16.gmra.mxu0 %v774
      %v2032 = vpop.f32.mrf.mxu0
      %v2033 = vadd.f32 %v1968, %v2032
      %v2034 = vpop.f32.mrf.mxu0
      %v2035 = vpop.f32.mrf.mxu0
      %v2036 = vadd.f32 %v1971, %v2035
      %v2037 = vpop.f32.mrf.mxu0
      %2038 = vmatprep.mubr.bf16.mxu0 %v793
      %2039 = vmatmul.mubr.bf16.gmra.mxu0 %v792
      %v2040 = vpop.f32.mrf.mxu0
      %v2041 = vadd.f32 %v1976, %v2040
      %v2042 = vpop.f32.mrf.mxu0
      %v2043 = vpop.f32.mrf.mxu0
      %v2044 = vadd.f32 %v1979, %v2043
      %v2045 = vpop.f32.mrf.mxu0
      %2046 = vmatprep.mubr.bf16.mxu0 %v811
      %2047 = vmatmul.mubr.bf16.gmra.mxu0 %v810
      %v2048 = vpop.f32.mrf.mxu0
      %v2049 = vadd.f32 %v1984, %v2048
      %v2050 = vpop.f32.mrf.mxu0
      %v2051 = vpop.f32.mrf.mxu0
      %v2052 = vadd.f32 %v1987, %v2051
      %v2053 = vpop.f32.mrf.mxu0
      %2054 = vdwg.mxu0
      %2055 = vmatprep.subr.bf16.mxu0 0
      %2056 = vmatpush1.bf16.msra.mxu0 %v1525
      %2057 = vmatprep.subr.bf16.mxu0 0
      %2058 = vmatpush1.bf16.msra.mxu0 %v1524
      %2059 = vmatprep.subr.bf16.mxu0 0
      %2060 = vmatpush1.bf16.msra.mxu0 %v1523
      %2061 = vmatprep.subr.bf16.mxu0 0
      %2062 = vmatpush1.bf16.msra.mxu0 %v1522
      %2063 = vmatprep.subr.bf16.mxu0 0
      %2064 = vmatpush1.bf16.msra.mxu0 %v1521
      %2065 = vmatprep.subr.bf16.mxu0 0
      %2066 = vmatpush1.bf16.msra.mxu0 %v1520
      %2067 = vmatprep.subr.bf16.mxu0 0
      %2068 = vmatpush1.bf16.msra.mxu0 %v1519
      %2069 = vmatprep.subr.bf16.mxu0 0
      %2070 = vmatpush1.bf16.msra.mxu0 %v1518
      %2071 = vmatprep.subr.bf16.mxu0 0
      %2072 = vmatpush2.bf16.msra.mxu0 %v1533
      %2073 = vmatprep.subr.bf16.mxu0 0
      %2074 = vmatpush2.bf16.msra.mxu0 %v1532
      %2075 = vmatprep.subr.bf16.mxu0 0
      %2076 = vmatpush2.bf16.msra.mxu0 %v1531
      %2077 = vmatprep.subr.bf16.mxu0 0
      %2078 = vmatpush2.bf16.msra.mxu0 %v1530
      %2079 = vmatprep.subr.bf16.mxu0 0
      %2080 = vmatpush2.bf16.msra.mxu0 %v1529
      %2081 = vmatprep.subr.bf16.mxu0 0
      %2082 = vmatpush2.bf16.msra.mxu0 %v1528
      %2083 = vmatprep.subr.bf16.mxu0 0
      %2084 = vmatpush2.bf16.msra.mxu0 %v1527
      %2085 = vmatprep.subr.bf16.mxu0 0
      %2086 = vmatpush2.bf16.msra.mxu0 %v1526
      %2087 = vmatprep.mubr.bf16.mxu0 %v759
      %2088 = vmatmul.mubr.bf16.gmra.mxu0 %v758
      %v2089 = vpop.f32.mrf.mxu0
      %v2090 = vadd.f32 %v2025, %v2089
      %v2091 = vpop.f32.mrf.mxu0
      %v2092 = vpop.f32.mrf.mxu0
      %v2093 = vadd.f32 %v2028, %v2092
      %v2094 = vpop.f32.mrf.mxu0
      %2095 = vmatprep.mubr.bf16.mxu0 %v777
      %2096 = vmatmul.mubr.bf16.gmra.mxu0 %v776
      %v2097 = vpop.f32.mrf.mxu0
      %v2098 = vadd.f32 %v2033, %v2097
      %v2099 = vpop.f32.mrf.mxu0
      %v2100 = vpop.f32.mrf.mxu0
      %v2101 = vadd.f32 %v2036, %v2100
      %v2102 = vpop.f32.mrf.mxu0
      %2103 = vmatprep.mubr.bf16.mxu0 %v795
      %2104 = vmatmul.mubr.bf16.gmra.mxu0 %v794
      %v2105 = vpop.f32.mrf.mxu0
      %v2106 = vadd.f32 %v2041, %v2105
      %v2107 = vpop.f32.mrf.mxu0
      %v2108 = vpop.f32.mrf.mxu0
      %v2109 = vadd.f32 %v2044, %v2108
      %v2110 = vpop.f32.mrf.mxu0
      %2111 = vmatprep.mubr.bf16.mxu0 %v813
      %2112 = vmatmul.mubr.bf16.gmra.mxu0 %v812
      %v2113 = vpop.f32.mrf.mxu0
      %v2114 = vadd.f32 %v2049, %v2113
      %v2115 = vpop.f32.mrf.mxu0
      %v2116 = vpop.f32.mrf.mxu0
      %v2117 = vadd.f32 %v2052, %v2116
      %v2118 = vpop.f32.mrf.mxu0
      %2119 = vdwg.mxu0
      %2120 = vmatprep.subr.bf16.mxu0 0
      %2121 = vmatpush1.bf16.msra.mxu0 %v1541
      %2122 = vmatprep.subr.bf16.mxu0 0
      %2123 = vmatpush1.bf16.msra.mxu0 %v1540
      %2124 = vmatprep.subr.bf16.mxu0 0
      %2125 = vmatpush1.bf16.msra.mxu0 %v1539
      %2126 = vmatprep.subr.bf16.mxu0 0
      %2127 = vmatpush1.bf16.msra.mxu0 %v1538
      %2128 = vmatprep.subr.bf16.mxu0 0
      %2129 = vmatpush1.bf16.msra.mxu0 %v1537
      %2130 = vmatprep.subr.bf16.mxu0 0
      %2131 = vmatpush1.bf16.msra.mxu0 %v1536
      %2132 = vmatprep.subr.bf16.mxu0 0
      %2133 = vmatpush1.bf16.msra.mxu0 %v1535
      %2134 = vmatprep.subr.bf16.mxu0 0
      %2135 = vmatpush1.bf16.msra.mxu0 %v1534
      %2136 = vmatprep.subr.bf16.mxu0 0
      %2137 = vmatpush2.bf16.msra.mxu0 %v1549
      %2138 = vmatprep.subr.bf16.mxu0 0
      %2139 = vmatpush2.bf16.msra.mxu0 %v1548
      %2140 = vmatprep.subr.bf16.mxu0 0
      %2141 = vmatpush2.bf16.msra.mxu0 %v1547
      %2142 = vmatprep.subr.bf16.mxu0 0
      %2143 = vmatpush2.bf16.msra.mxu0 %v1546
      %2144 = vmatprep.subr.bf16.mxu0 0
      %2145 = vmatpush2.bf16.msra.mxu0 %v1545
      %2146 = vmatprep.subr.bf16.mxu0 0
      %2147 = vmatpush2.bf16.msra.mxu0 %v1544
      %2148 = vmatprep.subr.bf16.mxu0 0
      %2149 = vmatpush2.bf16.msra.mxu0 %v1543
      %2150 = vmatprep.subr.bf16.mxu0 0
      %2151 = vmatpush2.bf16.msra.mxu0 %v1542
      %2152 = vmatprep.mubr.bf16.mxu0 %v761
      %2153 = vmatmul.mubr.bf16.gmra.mxu0 %v760
      %v2154 = vpop.f32.mrf.mxu0
      %v2155 = vadd.f32 %v2090, %v2154
      %v2156 = vpop.f32.mrf.mxu0
      %v2157 = vpop.f32.mrf.mxu0
      %v2158 = vadd.f32 %v2093, %v2157
      %v2159 = vpop.f32.mrf.mxu0
      %2160 = vmatprep.mubr.bf16.mxu0 %v779
      %2161 = vmatmul.mubr.bf16.gmra.mxu0 %v778
      %v2162 = vpop.f32.mrf.mxu0
      %v2163 = vadd.f32 %v2098, %v2162
      %v2164 = vpop.f32.mrf.mxu0
      %v2165 = vpop.f32.mrf.mxu0
      %v2166 = vadd.f32 %v2101, %v2165
      %v2167 = vpop.f32.mrf.mxu0
      %2168 = vmatprep.mubr.bf16.mxu0 %v797
      %2169 = vmatmul.mubr.bf16.gmra.mxu0 %v796
      %v2170 = vpop.f32.mrf.mxu0
      %v2171 = vadd.f32 %v2106, %v2170
      %v2172 = vpop.f32.mrf.mxu0
      %v2173 = vpop.f32.mrf.mxu0
      %v2174 = vadd.f32 %v2109, %v2173
      %v2175 = vpop.f32.mrf.mxu0
      %2176 = vmatprep.mubr.bf16.mxu0 %v815
      %2177 = vmatmul.mubr.bf16.gmra.mxu0 %v814
      %v2178 = vpop.f32.mrf.mxu0
      %v2179 = vadd.f32 %v2114, %v2178
      %v2180 = vpop.f32.mrf.mxu0
      %v2181 = vpop.f32.mrf.mxu0
      %v2182 = vadd.f32 %v2117, %v2181
      %v2183 = vpop.f32.mrf.mxu0
      %2184 = vdwg.mxu0
      %2185 = vmatprep.subr.bf16.mxu0 0
      %2186 = vmatpush1.bf16.msra.mxu0 %v1557
      %2187 = vmatprep.subr.bf16.mxu0 0
      %2188 = vmatpush1.bf16.msra.mxu0 %v1556
      %2189 = vmatprep.subr.bf16.mxu0 0
      %2190 = vmatpush1.bf16.msra.mxu0 %v1555
      %2191 = vmatprep.subr.bf16.mxu0 0
      %2192 = vmatpush1.bf16.msra.mxu0 %v1554
      %2193 = vmatprep.subr.bf16.mxu0 0
      %2194 = vmatpush1.bf16.msra.mxu0 %v1553
      %2195 = vmatprep.subr.bf16.mxu0 0
      %2196 = vmatpush1.bf16.msra.mxu0 %v1552
      %2197 = vmatprep.subr.bf16.mxu0 0
      %2198 = vmatpush1.bf16.msra.mxu0 %v1551
      %2199 = vmatprep.subr.bf16.mxu0 0
      %2200 = vmatpush1.bf16.msra.mxu0 %v1550
      %2201 = vmatprep.subr.bf16.mxu0 0
      %2202 = vmatpush2.bf16.msra.mxu0 %v1565
      %2203 = vmatprep.subr.bf16.mxu0 0
      %2204 = vmatpush2.bf16.msra.mxu0 %v1564
      %2205 = vmatprep.subr.bf16.mxu0 0
      %2206 = vmatpush2.bf16.msra.mxu0 %v1563
      %2207 = vmatprep.subr.bf16.mxu0 0
      %2208 = vmatpush2.bf16.msra.mxu0 %v1562
      %2209 = vmatprep.subr.bf16.mxu0 0
      %2210 = vmatpush2.bf16.msra.mxu0 %v1561
      %2211 = vmatprep.subr.bf16.mxu0 0
      %2212 = vmatpush2.bf16.msra.mxu0 %v1560
      %2213 = vmatprep.subr.bf16.mxu0 0
      %2214 = vmatpush2.bf16.msra.mxu0 %v1559
      %2215 = vmatprep.subr.bf16.mxu0 0
      %2216 = vmatpush2.bf16.msra.mxu0 %v1558
      %2217 = vmatprep.mubr.bf16.mxu0 %v763
      %2218 = vmatmul.mubr.bf16.gmra.mxu0 %v762
      %v2219 = vpop.f32.mrf.mxu0
      %v2220 = vadd.f32 %v2155, %v2219
      %v2221 = vpop.f32.mrf.mxu0
      %v2222 = vpop.f32.mrf.mxu0
      %v2223 = vadd.f32 %v2158, %v2222
      %v2224 = vpop.f32.mrf.mxu0
      %2225 = vmatprep.mubr.bf16.mxu0 %v781
      %2226 = vmatmul.mubr.bf16.gmra.mxu0 %v780
      %v2227 = vpop.f32.mrf.mxu0
      %v2228 = vadd.f32 %v2163, %v2227
      %v2229 = vpop.f32.mrf.mxu0
      %v2230 = vpop.f32.mrf.mxu0
      %v2231 = vadd.f32 %v2166, %v2230
      %v2232 = vpop.f32.mrf.mxu0
      %2233 = vmatprep.mubr.bf16.mxu0 %v799
      %2234 = vmatmul.mubr.bf16.gmra.mxu0 %v798
      %v2235 = vpop.f32.mrf.mxu0
      %v2236 = vadd.f32 %v2171, %v2235
      %v2237 = vpop.f32.mrf.mxu0
      %v2238 = vpop.f32.mrf.mxu0
      %v2239 = vadd.f32 %v2174, %v2238
      %v2240 = vpop.f32.mrf.mxu0
      %2241 = vmatprep.mubr.bf16.mxu0 %v817
      %2242 = vmatmul.mubr.bf16.gmra.mxu0 %v816
      %v2243 = vpop.f32.mrf.mxu0
      %v2244 = vadd.f32 %v2179, %v2243
      %v2245 = vpop.f32.mrf.mxu0
      %v2246 = vpop.f32.mrf.mxu0
      %v2247 = vadd.f32 %v2182, %v2246
      %v2248 = vpop.f32.mrf.mxu0
      %2249 = vdwg.mxu0
      %2250 = vmatprep.subr.bf16.mxu0 0
      %2251 = vmatpush1.bf16.msra.mxu0 %v1573
      %2252 = vmatprep.subr.bf16.mxu0 0
      %2253 = vmatpush1.bf16.msra.mxu0 %v1572
      %2254 = vmatprep.subr.bf16.mxu0 0
      %2255 = vmatpush1.bf16.msra.mxu0 %v1571
      %2256 = vmatprep.subr.bf16.mxu0 0
      %2257 = vmatpush1.bf16.msra.mxu0 %v1570
      %2258 = vmatprep.subr.bf16.mxu0 0
      %2259 = vmatpush1.bf16.msra.mxu0 %v1569
      %2260 = vmatprep.subr.bf16.mxu0 0
      %2261 = vmatpush1.bf16.msra.mxu0 %v1568
      %2262 = vmatprep.subr.bf16.mxu0 0
      %2263 = vmatpush1.bf16.msra.mxu0 %v1567
      %2264 = vmatprep.subr.bf16.mxu0 0
      %2265 = vmatpush1.bf16.msra.mxu0 %v1566
      %2266 = vmatprep.subr.bf16.mxu0 0
      %2267 = vmatpush2.bf16.msra.mxu0 0
      %2268 = vmatprep.subr.bf16.mxu0 0
      %2269 = vmatpush2.bf16.msra.mxu0 0
      %2270 = vmatprep.subr.bf16.mxu0 0
      %2271 = vmatpush2.bf16.msra.mxu0 0
      %2272 = vmatprep.subr.bf16.mxu0 0
      %2273 = vmatpush2.bf16.msra.mxu0 0
      %2274 = vmatprep.subr.bf16.mxu0 0
      %2275 = vmatpush2.bf16.msra.mxu0 0
      %2276 = vmatprep.subr.bf16.mxu0 0
      %2277 = vmatpush2.bf16.msra.mxu0 0
      %2278 = vmatprep.subr.bf16.mxu0 0
      %2279 = vmatpush2.bf16.msra.mxu0 %v1728
      %2280 = vmatprep.subr.bf16.mxu0 0
      %2281 = vmatpush2.bf16.msra.mxu0 %v1574
      %2282 = vmatprep.mubr.bf16.mxu0 %v1715
      %2283 = vmatmul.mubr.bf16.gmra.mxu0 %v764
      %v2284 = vpop.f32.mrf.mxu0
      %v2285 = vadd.f32 %v2220, %v2284
      %v2286 = vpop.f32.mrf.mxu0
      %v2287 = vpop.f32.mrf.mxu0
      %v2288 = vadd.f32 %v2223, %v2287
      %v2289 = vpop.f32.mrf.mxu0
      %2290 = vmatprep.mubr.bf16.mxu0 %v1718
      %2291 = vmatmul.mubr.bf16.gmra.mxu0 %v782
      %v2292 = vpop.f32.mrf.mxu0
      %v2293 = vadd.f32 %v2228, %v2292
      %v2294 = vpop.f32.mrf.mxu0
      %v2295 = vpop.f32.mrf.mxu0
      %v2296 = vadd.f32 %v2231, %v2295
      %v2297 = vpop.f32.mrf.mxu0
      %2298 = vmatprep.mubr.bf16.mxu0 %v1721
      %2299 = vmatmul.mubr.bf16.gmra.mxu0 %v800
      %v2300 = vpop.f32.mrf.mxu0
      %v2301 = vadd.f32 %v2236, %v2300
      %v2302 = vpop.f32.mrf.mxu0
      %v2303 = vpop.f32.mrf.mxu0
      %v2304 = vadd.f32 %v2239, %v2303
      %v2305 = vpop.f32.mrf.mxu0
      %2306 = vmatprep.mubr.bf16.mxu0 %v1724
      %2307 = vmatmul.mubr.bf16.gmra.mxu0 %v818
      %v2308 = vpop.f32.mrf.mxu0
      %v2309 = vadd.f32 %v2244, %v2308
      %v2310 = vpop.f32.mrf.mxu0
      %v2311 = vpop.f32.mrf.mxu0
      %v2312 = vadd.f32 %v2247, %v2311
      %v2313 = vpop.f32.mrf.mxu0
      %2314 = vdwg.mxu0
      %v2315 = vmax.f32 %v2285, 0.0
      %v2316 = vmax.f32 %v2288, 0.0
      %v2317 = vmax.f32 %v2293, 0.0
      %v2318 = vmax.f32 %v2296, 0.0
      %v2319 = vmax.f32 %v2301, 0.0
      %v2320 = vmax.f32 %v2304, 0.0
      %v2321 = vmax.f32 %v2309, 0.0
      %v2322 = vmax.f32 %v2312, 0.0
      %v2323 = vpack.c.bf16 %v2316, %v2315
      %v2324 = vpack.c.bf16 %v2318, %v2317
      %v2325 = vpack.c.bf16 %v2320, %v2319
      %v2326 = vpack.c.bf16 %v2322, %v2321
      %v2331 = vunpack.c.l.b16 %v2323
      %v2332 = vunpack.c.h.b16 %v2323
      %v2333 = vunpack.c.l.b16 %v2324
      %v2334 = vunpack.c.h.b16 %v2324
      %v2335 = vunpack.c.l.b16 %v2325
      %v2336 = vunpack.c.h.b16 %v2325
      %v2337 = vunpack.c.l.b16 %v2326
      %v2338 = vunpack.c.h.b16 %v2326
      %v2339 = vpack.c.b16 %v2331, %v2331
      %v2340 = vpack.c.b16 %v2332, %v2332
      %v2341 = vpack.c.b16 %v2333, %v2333
      %v2342 = vpack.c.b16 %v2334, %v2334
      %v2343 = vpack.c.b16 %v2335, %v2335
      %v2344 = vpack.c.b16 %v2336, %v2336
      %v2345 = vpack.c.b16 %v2337, %v2337
      %v2346 = vpack.c.b16 %v2338, %v2338
      %vm2355 = vcmask 158720
      %2356 = vst.msk [vmem:[%s175] sm:$0xf] %vm2355, %v2339
      %2357 = vst.msk [vmem:[%s175 + $0x4] sm:$0xf] %vm2355, %v2340
      %2358 = vst.msk [vmem:[%s175 + $0x8] sm:$0xf] %vm2355, %v2341
      %2359 = vst.msk [vmem:[%s175 + $0xc] sm:$0xf] %vm2355, %v2342
      %2360 = vst.msk [vmem:[%s175 + $0x10] sm:$0xf] %vm2355, %v2343
      %2361 = vst.msk [vmem:[%s175 + $0x14] sm:$0xf] %vm2355, %v2344
      %2362 = vst.msk [vmem:[%s175 + $0x18] sm:$0xf] %vm2355, %v2345
      %2363 = vst.msk [vmem:[%s175 + $0x1c] sm:$0xf] %vm2355, %v2346
      %s2364 = smul.u32 8, %s14
      %p2365 = scmp.lt.s32.totalorder %s2364, 15
      %s2366 = scalar_select %p2365, %s2364, 15
      %s2367 = smul.addr %s2366, 4
      %s2368 = scalar_lea.vmem %s3, %s2367
      // Predicated region
      $region33: #{net_forward.10} parent=31 // pred_check
        %p2369 = pneg %p100
      $region34: #{net_forward.10} parent=31 // pred_check_branch
        %2371 = sbr.rel (%p2369) target = $region36
      $region35: #{net_forward.10} parent=31 // pred_region
        %s2372 = smul.u32 8, %s14
      $region36: #{net_forward.10} parent=31 // pred_fallthru
        _
    $region32: #{net_forward.10} parent=5 // pred_fallthru
      _
    %p2373 = scmp.le.s32.totalorder 2, %s9
    // Predicated region
    $region37: #{net_forward.10} parent=5 // pred_check
      %p2374 = pneg %p2373
    $region38: #{net_forward.10} parent=5 // pred_check_branch
      %2376 = sbr.rel (%p2374) target = $region40
    $region39: #{net_forward.10} parent=5 // pred_region
      %s2377 = ssub.s32 %s9, 2
      // Predicated region
      $region41: #{net_forward.10} parent=39 // pred_check
        %p2378 = pneg %p106
      $region42: #{net_forward.10} parent=39 // pred_check_branch
        %2380 = sbr.rel (%p2378) target = $region44
      $region43: #{net_forward.10} parent=39 // pred_region
        %s2381 = smul.u32 8, %s15
        %p2382 = scmp.lt.s32.totalorder %s2381, 15
        %s2383 = scalar_select %p2382, %s2381, 15
        %s2384 = smul.addr %s2383, 4
        %s2385 = scalar_lea.vmem %s3, %s2384
      $region44: #{net_forward.10} parent=39 // pred_fallthru
        _
    $region40: #{net_forward.10} parent=5 // pred_fallthru
      _
  $region6: #{net_forward.10} parent=0 // loop_footer
    %s13 = sadd.s32 1, %s9
  $region7: #{net_forward.10} parent=0 // loop_footer_branch
    %8 = sbr.rel target = $region3
  $region8: #{net_forward.10} parent=0 // loop_exit
    _

// kernel: net_forward.11
$region0: #{net_forward.11}
  #allocation0 [shape = 'u32[]', space=smem, size = 0x4, offset = 0x4, fixed_abs, tag = 'smem constant byte address 0x4 - core index']
  #allocation1 [shape = 'u32[144,128]{1,0:T(1,128)}', space=vmem, size = 0x12000, scoped, tag = 'internal scratch']
  %s0 = inlined_call_operand.vmem [shape: bf16[32,500], index: 0, kind: input, shape index: {}]
  %s1 = inlined_call_operand.vmem [shape: bf16[500,88], index: 1, kind: input, shape index: {}]
  %s2 = inlined_call_operand.vmem [shape: f32[16,88], index: 2, kind: input, shape index: {}]
  %s3 = inlined_call_operand.vmem [shape: f32[32,88], index: 3, kind: output, shape index: {}]
  %s4 = sld [smem:[#allocation0]]
  $region45: #{net_forward.11} parent=0
    _
  %s6 = ssub.s32 1, %s4
  %s7 = scalar_select 0, %s6, %s4
  loop: start=0, step=1, limit=4
  $region2: #{net_forward.11} parent=0 // loop_pre_header
    _
  $region3: #{net_forward.11} parent=0 // loop_header
    %s9 = sphi 0, %s13
    %p10 = scmp.ge.s32.totalorder %s9, 4
    %s19 = sphi 0, %s21
    %s22 = sphi 0, %s19
    %s23 = sphi 0, %s22
    %s39 = sphi 0, %s23
    %s43 = sphi 0, %s43
    %s45 = sphi 0, %s43
    %s46 = sphi 0, %s45
    %s60 = sphi 0, %s46
    %s64 = sphi 0, %s64
    %s66 = sphi 0, %s64
    %s67 = sphi 0, %s66
    %s81 = sphi 0, %s67
    %s87 = sphi 0, %s89
    %s90 = sphi 0, %s87
    %s91 = sphi 0, %s90
    %s107 = sphi 0, %s91
  $region4: #{net_forward.11} parent=0 // loop_header_branch
    %12 = sbr.rel (%p10) target = $region8
  $region5: #{net_forward.11} parent=0 // loop_body
    %s14 = ssub.s32 %s9, 1
    %s15 = ssub.s32 %s9, 2
    %s16 = sadd.s32 %s9, 1
    %s17 = ssub.s32 %s9, %s16
    %p18 = scmp.eq.s32.totalorder %s17, 0
    %s20 = sadd.s32 %s19, 1
    %s21 = scalar_select %p18, %s19, %s20
    %p24 = pneg %p18
    %p25 = scmp.eq.s32.totalorder %s9, 1
    %p26 = por %p24, %p25
    %p27 = scmp.ne.s32.totalorder %s19, %s22
    %p28 = scmp.eq.s32.totalorder %s9, 0
    %p29 = por %p27, %p28
    %p30 = scmp.ne.s32.totalorder %s19, %s22
    %p31 = scmp.eq.s32.totalorder %s14, 1
    %p32 = por %p30, %p31
    %p33 = scmp.ne.s32.totalorder %s22, %s23
    %p34 = scmp.eq.s32.totalorder %s14, 0
    %p35 = por %p33, %p34
    %p36 = scmp.ne.s32.totalorder %s22, %s23
    %p37 = scmp.eq.s32.totalorder %s15, 1
    %p38 = por %p36, %p37
    %p40 = scmp.ne.s32.totalorder %s23, %s39
    %p41 = scmp.eq.s32.totalorder %s15, 0
    %p42 = por %p40, %p41
    %s44 = sadd.s32 %s43, 1
    %p47 = scmp.eq.s32.totalorder %s9, 1
    %p48 = scmp.ne.s32.totalorder %s43, %s45
    %p49 = scmp.eq.s32.totalorder %s9, 0
    %p50 = por %p48, %p49
    %p51 = scmp.ne.s32.totalorder %s43, %s45
    %p52 = scmp.eq.s32.totalorder %s14, 1
    %p53 = por %p51, %p52
    %p54 = scmp.ne.s32.totalorder %s45, %s46
    %p55 = scmp.eq.s32.totalorder %s14, 0
    %p56 = por %p54, %p55
    %p57 = scmp.ne.s32.totalorder %s45, %s46
    %p58 = scmp.eq.s32.totalorder %s15, 1
    %p59 = por %p57, %p58
    %p61 = scmp.ne.s32.totalorder %s46, %s60
    %p62 = scmp.eq.s32.totalorder %s15, 0
    %p63 = por %p61, %p62
    %s65 = sadd.s32 %s64, 1
    %p68 = scmp.eq.s32.totalorder %s9, 1
    %p69 = scmp.ne.s32.totalorder %s64, %s66
    %p70 = scmp.eq.s32.totalorder %s9, 0
    %p71 = por %p69, %p70
    %p72 = scmp.ne.s32.totalorder %s64, %s66
    %p73 = scmp.eq.s32.totalorder %s14, 1
    %p74 = por %p72, %p73
    %p75 = scmp.ne.s32.totalorder %s66, %s67
    %p76 = scmp.eq.s32.totalorder %s14, 0
    %p77 = por %p75, %p76
    %p78 = scmp.ne.s32.totalorder %s66, %s67
    %p79 = scmp.eq.s32.totalorder %s15, 1
    %p80 = por %p78, %p79
    %p82 = scmp.ne.s32.totalorder %s67, %s81
    %p83 = scmp.eq.s32.totalorder %s15, 0
    %p84 = por %p82, %p83
    %s85 = ssub.s32 %s9, %s16
    %p86 = scmp.eq.s32.totalorder %s85, 0
    %s88 = sadd.s32 %s87, 1
    %s89 = scalar_select %p86, %s87, %s88
    %p92 = pneg %p86
    %p93 = scmp.eq.s32.totalorder %s9, 1
    %p94 = por %p92, %p93
    %p95 = scmp.ne.s32.totalorder %s87, %s90
    %p96 = scmp.eq.s32.totalorder %s9, 0
    %p97 = por %p95, %p96
    %p98 = scmp.ne.s32.totalorder %s87, %s90
    %p99 = scmp.eq.s32.totalorder %s14, 1
    %p100 = por %p98, %p99
    %p101 = scmp.ne.s32.totalorder %s90, %s91
    %p102 = scmp.eq.s32.totalorder %s14, 0
    %p103 = por %p101, %p102
    %p104 = scmp.ne.s32.totalorder %s90, %s91
    %p105 = scmp.eq.s32.totalorder %s15, 1
    %p106 = por %p104, %p105
    %p108 = scmp.ne.s32.totalorder %s91, %s107
    %p109 = scmp.eq.s32.totalorder %s15, 0
    %p110 = por %p108, %p109
    %p111 = scmp.le.s32.totalorder 1, %s9
    %p112 = scmp.lt.s32.totalorder %s9, 3
    %p113 = pnand %p111, %p112
    %p114 = pneg %p113
    // Predicated region
    $region9: #{net_forward.11} parent=5 // pred_check
      _
    $region10: #{net_forward.11} parent=5 // pred_check_branch
      %116 = sbr.rel (%p113) target = $region12
    $region11: #{net_forward.11} parent=5 // pred_region
      %s117 = ssub.s32 %s9, 1
      // Predicated region
      $region13: #{net_forward.11} parent=11 // pred_check
        %p118 = pneg %p56
      $region14: #{net_forward.11} parent=11 // pred_check_branch
        %120 = sbr.rel (%p118) target = $region16
      $region15: #{net_forward.11} parent=11 // pred_region
        _
      $region16: #{net_forward.11} parent=11 // pred_fallthru
        _
      // Predicated region
      $region17: #{net_forward.11} parent=11 // pred_check
        %p121 = pneg %p77
      $region18: #{net_forward.11} parent=11 // pred_check_branch
        %123 = sbr.rel (%p121) target = $region20
      $region19: #{net_forward.11} parent=11 // pred_region
        _
      $region20: #{net_forward.11} parent=11 // pred_fallthru
        _
    $region12: #{net_forward.11} parent=5 // pred_fallthru
      _
    %p124 = scmp.lt.s32.totalorder %s9, 2
    // Predicated region
    $region21: #{net_forward.11} parent=5 // pred_check
      %p125 = pneg %p124
    $region22: #{net_forward.11} parent=5 // pred_check_branch
      %127 = sbr.rel (%p125) target = $region24
    $region23: #{net_forward.11} parent=5 // pred_region
      // Predicated region
      $region25: #{net_forward.11} parent=23 // pred_check
        %p128 = pneg %p29
      $region26: #{net_forward.11} parent=23 // pred_check_branch
        %130 = sbr.rel (%p128) target = $region28
      $region27: #{net_forward.11} parent=23 // pred_region
        %s131 = smul.u32 2, %s9
        %p132 = scmp.lt.s32.totalorder %s131, 3
        %s133 = scalar_select %p132, %s131, 3
        %s134 = smul.addr %s133, 4
        %s135 = smul.addr %s134, 4
        %s136 = scalar_lea.vmem %s0, %s135
        %s137 = smul.u32 2, %s9
      $region28: #{net_forward.11} parent=23 // pred_fallthru
        _
    $region24: #{net_forward.11} parent=5 // pred_fallthru
      _
    %p138 = scmp.le.s32.totalorder 1, %s9
    %p139 = scmp.lt.s32.totalorder %s9, 3
    %p140 = pnand %p138, %p139
    %p141 = pneg %p140
    // Predicated region
    $region29: #{net_forward.11} parent=5 // pred_check
      _
    $region30: #{net_forward.11} parent=5 // pred_check_branch
      %143 = sbr.rel (%p140) target = $region32
    $region31: #{net_forward.11} parent=5 // pred_region
      %s144 = ssub.s32 %s9, 1
      %s145 = smul.u32 2, %s14
      %p146 = scmp.lt.s32.totalorder %s145, 3
      %s147 = scalar_select %p146, %s145, 3
      %s148 = smul.addr %s147, 4
      %s149 = smul.addr %s148, 4
      %s150 = scalar_lea.vmem %s0, %s149
      %p151 = pneg %p35
      %p152 = pneg %p32
      %p153 = pneg %p56
      %p154 = pneg %p53
      %p155 = pneg %p77
      %p156 = pneg %p74
      %p157 = pneg %p103
      %p158 = pneg %p100
      %s159 = smul.u32 2, %s14
      %p160 = scmp.lt.s32.totalorder %s159, 3
      %s161 = scalar_select %p160, %s159, 3
      %s162 = smul.addr %s161, 8
      %s163 = scalar_lea.vmem %s3, %s162
      %s164 = smul.u32 2, %s14
      %p165 = scmp.lt.s32.totalorder %s164, 3
      %s166 = scalar_select %p165, %s164, 3
      %s167 = smul.addr %s166, 4
      %s168 = smul.addr %s167, 4
      %s169 = scalar_lea.vmem %s0, %s168
      %s170 = smul.u32 2, %s14
      %s171 = smul.u32 2, %s14
      %p172 = scmp.lt.s32.totalorder %s171, 3
      %s173 = scalar_select %p172, %s171, 3
      %s174 = smul.addr %s173, 8
      %s175 = scalar_lea.vmem %s3, %s174
      %s176 = smul.u32 2, %s14
      %v178 = vld [vmem:[%s169] sm:$0xff]
      %v179 = vld [vmem:[%s169 + $0x8] sm:$0xff]
      %v180 = vld [vmem:[%s169 + $0x10] sm:$0xff]
      %v181 = vld [vmem:[%s169 + $0x18] sm:$0xff]
      %v182 = vld [vmem:[%s1] sm:$0xf]
      %v183 = vld [vmem:[%s1 + $0x4] sm:$0xf]
      %v184 = vld [vmem:[%s1 + $0x8] sm:$0xf]
      %v185 = vld [vmem:[%s1 + $0xc] sm:$0xf]
      %v186 = vld [vmem:[%s1 + $0x10] sm:$0xf]
      %v187 = vld [vmem:[%s1 + $0x14] sm:$0xf]
      %v188 = vld [vmem:[%s1 + $0x18] sm:$0xf]
      %v189 = vld [vmem:[%s1 + $0x1c] sm:$0xf]
      %v190 = vld [vmem:[%s1 + $0x20] sm:$0xf]
      %v191 = vld [vmem:[%s1 + $0x24] sm:$0xf]
      %v192 = vld [vmem:[%s1 + $0x28] sm:$0xf]
      %v193 = vld [vmem:[%s1 + $0x2c] sm:$0xf]
      %v194 = vld [vmem:[%s1 + $0x30] sm:$0xf]
      %v195 = vld [vmem:[%s1 + $0x34] sm:$0xf]
      %v196 = vld [vmem:[%s1 + $0x38] sm:$0xf]
      %v197 = vld [vmem:[%s1 + $0x3c] sm:$0xf]
      %v198 = vld [vmem:[%s1 + $0x40] sm:$0xf]
      %v199 = vld [vmem:[%s1 + $0x44] sm:$0xf]
      %v200 = vld [vmem:[%s1 + $0x48] sm:$0xf]
      %v201 = vld [vmem:[%s1 + $0x4c] sm:$0xf]
      %v202 = vld [vmem:[%s1 + $0x50] sm:$0xf]
      %v203 = vld [vmem:[%s1 + $0x54] sm:$0xf]
      %v204 = vld [vmem:[%s1 + $0x58] sm:$0xf]
      %v205 = vld [vmem:[%s1 + $0x5c] sm:$0xf]
      %v206 = vld [vmem:[%s1 + $0x60] sm:$0xf]
      %v207 = vld [vmem:[%s1 + $0x64] sm:$0xf]
      %v208 = vld [vmem:[%s1 + $0x68] sm:$0xf]
      %v209 = vld [vmem:[%s1 + $0x6c] sm:$0xf]
      %v210 = vld [vmem:[%s1 + $0x70] sm:$0xf]
      %v211 = vld [vmem:[%s1 + $0x74] sm:$0xf]
      %v212 = vld [vmem:[%s1 + $0x78] sm:$0xf]
      %v213 = vld [vmem:[%s1 + $0x7c] sm:$0xf]
      %v214 = vld [vmem:[%s1 + $0x80] sm:$0xf]
      %v215 = vld [vmem:[%s1 + $0x84] sm:$0xf]
      %v216 = vld [vmem:[%s1 + $0x88] sm:$0xf]
      %v217 = vld [vmem:[%s1 + $0x8c] sm:$0xf]
      %v218 = vld [vmem:[%s1 + $0x90] sm:$0xf]
      %v219 = vld [vmem:[%s1 + $0x94] sm:$0xf]
      %v220 = vld [vmem:[%s1 + $0x98] sm:$0xf]
      %v221 = vld [vmem:[%s1 + $0x9c] sm:$0xf]
      %v222 = vld [vmem:[%s1 + $0xa0] sm:$0xf]
      %v223 = vld [vmem:[%s1 + $0xa4] sm:$0xf]
      %v224 = vld [vmem:[%s1 + $0xa8] sm:$0xf]
      %v225 = vld [vmem:[%s1 + $0xac] sm:$0xf]
      %v226 = vld [vmem:[%s1 + $0xb0] sm:$0xf]
      %v227 = vld [vmem:[%s1 + $0xb4] sm:$0xf]
      %v228 = vld [vmem:[%s1 + $0xb8] sm:$0xf]
      %v229 = vld [vmem:[%s1 + $0xbc] sm:$0xf]
      %v230 = vld [vmem:[%s1 + $0xc0] sm:$0xf]
      %v231 = vld [vmem:[%s1 + $0xc4] sm:$0xf]
      %v232 = vld [vmem:[%s1 + $0xc8] sm:$0xf]
      %v233 = vld [vmem:[%s1 + $0xcc] sm:$0xf]
      %v234 = vld [vmem:[%s1 + $0xd0] sm:$0xf]
      %v235 = vld [vmem:[%s1 + $0xd4] sm:$0xf]
      %v236 = vld [vmem:[%s1 + $0xd8] sm:$0xf]
      %v237 = vld [vmem:[%s1 + $0xdc] sm:$0xf]
      %v238 = vld [vmem:[%s1 + $0xe0] sm:$0xf]
      %v239 = vld [vmem:[%s1 + $0xe4] sm:$0xf]
      %v240 = vld [vmem:[%s1 + $0xe8] sm:$0xf]
      %v241 = vld [vmem:[%s1 + $0xec] sm:$0xf]
      %v242 = vld [vmem:[%s1 + $0xf0] sm:$0xf]
      %v243 = vld [vmem:[%s1 + $0xf4] sm:$0xf]
      %v244 = vld [vmem:[%s1 + $0xf8] sm:$0x3]
      %v245 = vld [vmem:[%s2] sm:$0xff]
      %v246 = vld [vmem:[%s2 + $0x8] sm:$0xff]
      %v251 = vunpack.c.l.b16 %v178
      %v252 = vunpack.c.h.b16 %v178
      %v253 = vunpack.c.l.b16 %v179
      %v254 = vunpack.c.h.b16 %v179
      %v255 = vunpack.c.l.b16 %v180
      %v256 = vunpack.c.h.b16 %v180
      %v257 = vunpack.c.l.b16 %v181
      %v258 = vunpack.c.h.b16 %v181
      %v259 = vpack.c.b16 %v255, %v251
      %v260 = vpack.c.b16 %v256, %v252
      %v261 = vpack.c.b16 %v257, %v253
      %v262 = vpack.c.b16 %v258, %v254
      %v329 = vunpack.c.l.b16 %v182
      %v330 = vunpack.c.l.b16 %v183
      %v331 = vunpack.c.l.b16 %v184
      %v332 = vunpack.c.l.b16 %v185
      %v333 = vunpack.c.l.b16 %v186
      %v334 = vunpack.c.l.b16 %v187
      %v335 = vunpack.c.l.b16 %v188
      %v336 = vunpack.c.l.b16 %v189
      %v337 = vunpack.c.l.b16 %v190
      %v338 = vunpack.c.l.b16 %v191
      %v339 = vunpack.c.l.b16 %v192
      %v340 = vunpack.c.l.b16 %v193
      %v341 = vunpack.c.l.b16 %v194
      %v342 = vunpack.c.l.b16 %v195
      %v343 = vunpack.c.l.b16 %v196
      %v344 = vunpack.c.l.b16 %v197
      %v345 = vunpack.c.l.b16 %v198
      %v346 = vunpack.c.l.b16 %v199
      %v347 = vunpack.c.l.b16 %v200
      %v348 = vunpack.c.l.b16 %v201
      %v349 = vunpack.c.l.b16 %v202
      %v350 = vunpack.c.l.b16 %v203
      %v351 = vunpack.c.l.b16 %v204
      %v352 = vunpack.c.l.b16 %v205
      %v353 = vunpack.c.l.b16 %v206
      %v354 = vunpack.c.l.b16 %v207
      %v355 = vunpack.c.l.b16 %v208
      %v356 = vunpack.c.l.b16 %v209
      %v357 = vunpack.c.l.b16 %v210
      %v358 = vunpack.c.l.b16 %v211
      %v359 = vunpack.c.l.b16 %v212
      %v360 = vunpack.c.l.b16 %v213
      %v361 = vunpack.c.l.b16 %v214
      %v362 = vunpack.c.l.b16 %v215
      %v363 = vunpack.c.l.b16 %v216
      %v364 = vunpack.c.l.b16 %v217
      %v365 = vunpack.c.l.b16 %v218
      %v366 = vunpack.c.l.b16 %v219
      %v367 = vunpack.c.l.b16 %v220
      %v368 = vunpack.c.l.b16 %v221
      %v369 = vunpack.c.l.b16 %v222
      %v370 = vunpack.c.l.b16 %v223
      %v371 = vunpack.c.l.b16 %v224
      %v372 = vunpack.c.l.b16 %v225
      %v373 = vunpack.c.l.b16 %v226
      %v374 = vunpack.c.l.b16 %v227
      %v375 = vunpack.c.l.b16 %v228
      %v376 = vunpack.c.l.b16 %v229
      %v377 = vunpack.c.l.b16 %v230
      %v378 = vunpack.c.l.b16 %v231
      %v379 = vunpack.c.l.b16 %v232
      %v380 = vunpack.c.l.b16 %v233
      %v381 = vunpack.c.l.b16 %v234
      %v382 = vunpack.c.l.b16 %v235
      %v383 = vunpack.c.l.b16 %v236
      %v384 = vunpack.c.l.b16 %v237
      %v385 = vunpack.c.l.b16 %v238
      %v386 = vunpack.c.l.b16 %v239
      %v387 = vunpack.c.l.b16 %v240
      %v388 = vunpack.c.l.b16 %v241
      %v389 = vunpack.c.l.b16 %v242
      %v390 = vunpack.c.l.b16 %v243
      %v391 = vunpack.c.l.b16 %v244
      %v392 = vpack.c.b16 %v330, %v329
      %v393 = vpack.c.b16 %v332, %v331
      %v394 = vpack.c.b16 %v334, %v333
      %v395 = vpack.c.b16 %v336, %v335
      %v396 = vpack.c.b16 %v338, %v337
      %v397 = vpack.c.b16 %v340, %v339
      %v398 = vpack.c.b16 %v342, %v341
      %v399 = vpack.c.b16 %v344, %v343
      %v400 = vpack.c.b16 %v346, %v345
      %v401 = vpack.c.b16 %v348, %v347
      %v402 = vpack.c.b16 %v350, %v349
      %v403 = vpack.c.b16 %v352, %v351
      %v404 = vpack.c.b16 %v354, %v353
      %v405 = vpack.c.b16 %v356, %v355
      %v406 = vpack.c.b16 %v358, %v357
      %v407 = vpack.c.b16 %v360, %v359
      %v408 = vpack.c.b16 %v362, %v361
      %v409 = vpack.c.b16 %v364, %v363
      %v410 = vpack.c.b16 %v366, %v365
      %v411 = vpack.c.b16 %v368, %v367
      %v412 = vpack.c.b16 %v370, %v369
      %v413 = vpack.c.b16 %v372, %v371
      %v414 = vpack.c.b16 %v374, %v373
      %v415 = vpack.c.b16 %v376, %v375
      %v416 = vpack.c.b16 %v378, %v377
      %v417 = vpack.c.b16 %v380, %v379
      %v418 = vpack.c.b16 %v382, %v381
      %v419 = vpack.c.b16 %v384, %v383
      %v420 = vpack.c.b16 %v386, %v385
      %v421 = vpack.c.b16 %v388, %v387
      %v422 = vpack.c.b16 %v390, %v389
      %v423 = vpack.c.b16 %v391, %v391
      %vm455 = vcmask 949248
      %v457 = vsel %vm455, %v262, 0
      %vm459 = vcmask 1041408
      %v461 = vsel %vm459, %v423, 0
      %463 = vmatprep.subr.bf16.mxu0 0
      %464 = vmatpush1.bf16.msra.mxu0 %v399
      %465 = vmatprep.subr.bf16.mxu0 0
      %466 = vmatpush1.bf16.msra.mxu0 %v398
      %467 = vmatprep.subr.bf16.mxu0 0
      %468 = vmatpush1.bf16.msra.mxu0 %v397
      %469 = vmatprep.subr.bf16.mxu0 0
      %470 = vmatpush1.bf16.msra.mxu0 %v396
      %471 = vmatprep.subr.bf16.mxu0 0
      %472 = vmatpush1.bf16.msra.mxu0 %v395
      %473 = vmatprep.subr.bf16.mxu0 0
      %474 = vmatpush1.bf16.msra.mxu0 %v394
      %475 = vmatprep.subr.bf16.mxu0 0
      %476 = vmatpush1.bf16.msra.mxu0 %v393
      %477 = vmatprep.subr.bf16.mxu0 0
      %478 = vmatpush1.bf16.msra.mxu0 %v392
      %479 = vmatprep.subr.bf16.mxu0 0
      %480 = vmatpush2.bf16.msra.mxu0 %v407
      %481 = vmatprep.subr.bf16.mxu0 0
      %482 = vmatpush2.bf16.msra.mxu0 %v406
      %483 = vmatprep.subr.bf16.mxu0 0
      %484 = vmatpush2.bf16.msra.mxu0 %v405
      %485 = vmatprep.subr.bf16.mxu0 0
      %486 = vmatpush2.bf16.msra.mxu0 %v404
      %487 = vmatprep.subr.bf16.mxu0 0
      %488 = vmatpush2.bf16.msra.mxu0 %v403
      %489 = vmatprep.subr.bf16.mxu0 0
      %490 = vmatpush2.bf16.msra.mxu0 %v402
      %491 = vmatprep.subr.bf16.mxu0 0
      %492 = vmatpush2.bf16.msra.mxu0 %v401
      %493 = vmatprep.subr.bf16.mxu0 0
      %494 = vmatpush2.bf16.msra.mxu0 %v400
      %495 = vmatprep.mubr.bf16.mxu0 %v260
      %496 = vmatmul.mubr.bf16.gmra.mxu0 %v259
      %v497 = vpop.f32.mrf.mxu0
      %v498 = vadd.f32 %v245, %v497
      %v499 = vpop.f32.mrf.mxu0
      %v500 = vpop.f32.mrf.mxu0
      %v501 = vadd.f32 %v246, %v500
      %v502 = vpop.f32.mrf.mxu0
      %503 = vdwg.mxu0
      %504 = vmatprep.subr.bf16.mxu0 0
      %505 = vmatpush1.bf16.msra.mxu0 %v415
      %506 = vmatprep.subr.bf16.mxu0 0
      %507 = vmatpush1.bf16.msra.mxu0 %v414
      %508 = vmatprep.subr.bf16.mxu0 0
      %509 = vmatpush1.bf16.msra.mxu0 %v413
      %510 = vmatprep.subr.bf16.mxu0 0
      %511 = vmatpush1.bf16.msra.mxu0 %v412
      %512 = vmatprep.subr.bf16.mxu0 0
      %513 = vmatpush1.bf16.msra.mxu0 %v411
      %514 = vmatprep.subr.bf16.mxu0 0
      %515 = vmatpush1.bf16.msra.mxu0 %v410
      %516 = vmatprep.subr.bf16.mxu0 0
      %517 = vmatpush1.bf16.msra.mxu0 %v409
      %518 = vmatprep.subr.bf16.mxu0 0
      %519 = vmatpush1.bf16.msra.mxu0 %v408
      %520 = vmatprep.subr.bf16.mxu0 0
      %521 = vmatpush2.bf16.msra.mxu0 %v461
      %522 = vmatprep.subr.bf16.mxu0 0
      %523 = vmatpush2.bf16.msra.mxu0 %v422
      %524 = vmatprep.subr.bf16.mxu0 0
      %525 = vmatpush2.bf16.msra.mxu0 %v421
      %526 = vmatprep.subr.bf16.mxu0 0
      %527 = vmatpush2.bf16.msra.mxu0 %v420
      %528 = vmatprep.subr.bf16.mxu0 0
      %529 = vmatpush2.bf16.msra.mxu0 %v419
      %530 = vmatprep.subr.bf16.mxu0 0
      %531 = vmatpush2.bf16.msra.mxu0 %v418
      %532 = vmatprep.subr.bf16.mxu0 0
      %533 = vmatpush2.bf16.msra.mxu0 %v417
      %534 = vmatprep.subr.bf16.mxu0 0
      %535 = vmatpush2.bf16.msra.mxu0 %v416
      %536 = vmatprep.mubr.bf16.mxu0 %v457
      %537 = vmatmul.mubr.bf16.gmra.mxu0 %v261
      %v538 = vpop.f32.mrf.mxu0
      %v539 = vadd.f32 %v498, %v538
      %v540 = vpop.f32.mrf.mxu0
      %v541 = vpop.f32.mrf.mxu0
      %v542 = vadd.f32 %v501, %v541
      %v543 = vpop.f32.mrf.mxu0
      %544 = vdwg.mxu0
      %vm545 = vcmask 719872
      %546 = vst.msk [vmem:[%s175] sm:$0xff] %vm545, %v539
      %547 = vst.msk [vmem:[%s175 + $0x8] sm:$0xff] %vm545, %v542
      %s548 = smul.u32 2, %s14
      %p549 = scmp.lt.s32.totalorder %s548, 3
      %s550 = scalar_select %p549, %s548, 3
      %s551 = smul.addr %s550, 8
      %s552 = scalar_lea.vmem %s3, %s551
      // Predicated region
      $region33: #{net_forward.11} parent=31 // pred_check
        %p553 = pneg %p100
      $region34: #{net_forward.11} parent=31 // pred_check_branch
        %555 = sbr.rel (%p553) target = $region36
      $region35: #{net_forward.11} parent=31 // pred_region
        %s556 = smul.u32 2, %s14
      $region36: #{net_forward.11} parent=31 // pred_fallthru
        _
    $region32: #{net_forward.11} parent=5 // pred_fallthru
      _
    %p557 = scmp.le.s32.totalorder 2, %s9
    // Predicated region
    $region37: #{net_forward.11} parent=5 // pred_check
      %p558 = pneg %p557
    $region38: #{net_forward.11} parent=5 // pred_check_branch
      %560 = sbr.rel (%p558) target = $region40
    $region39: #{net_forward.11} parent=5 // pred_region
      %s561 = ssub.s32 %s9, 2
      // Predicated region
      $region41: #{net_forward.11} parent=39 // pred_check
        %p562 = pneg %p106
      $region42: #{net_forward.11} parent=39 // pred_check_branch
        %564 = sbr.rel (%p562) target = $region44
      $region43: #{net_forward.11} parent=39 // pred_region
        %s565 = smul.u32 2, %s15
        %p566 = scmp.lt.s32.totalorder %s565, 3
        %s567 = scalar_select %p566, %s565, 3
        %s568 = smul.addr %s567, 8
        %s569 = scalar_lea.vmem %s3, %s568
      $region44: #{net_forward.11} parent=39 // pred_fallthru
        _
    $region40: #{net_forward.11} parent=5 // pred_fallthru
      _
  $region6: #{net_forward.11} parent=0 // loop_footer
    %s13 = sadd.s32 1, %s9
  $region7: #{net_forward.11} parent=0 // loop_footer_branch
    %8 = sbr.rel target = $region3
  $region8: #{net_forward.11} parent=0 // loop_exit
    _

// kernel: net_forward.12
$region0: #{net_forward.12}
  #allocation0 [shape = 'u32[]', space=smem, size = 0x4, offset = 0x4, fixed_abs, tag = 'smem constant byte address 0x4 - core index']
  #allocation1 [shape = 'u32[144,128]{1,0:T(1,128)}', space=vmem, size = 0x12000, scoped, tag = 'internal scratch']
  %s0 = inlined_call_operand.vmem [shape: bf16[32,216], index: 0, kind: input, shape index: {}]
  %s1 = inlined_call_operand.vmem [shape: bf16[216,24], index: 1, kind: input, shape index: {}]
  %s2 = inlined_call_operand.vmem [shape: f32[1,24], index: 2, kind: input, shape index: {}]
  %s3 = inlined_call_operand.vmem [shape: f32[32,24], index: 3, kind: output, shape index: {}]
  %s4 = sld [smem:[#allocation0]]
  $region45: #{net_forward.12} parent=0
    _
  %s6 = ssub.s32 1, %s4
  %s7 = scalar_select 0, %s6, %s4
  loop: start=0, step=1, limit=4
  $region2: #{net_forward.12} parent=0 // loop_pre_header
    _
  $region3: #{net_forward.12} parent=0 // loop_header
    %s9 = sphi 0, %s13
    %p10 = scmp.ge.s32.totalorder %s9, 4
    %s19 = sphi 0, %s21
    %s22 = sphi 0, %s19
    %s23 = sphi 0, %s22
    %s39 = sphi 0, %s23
    %s43 = sphi 0, %s43
    %s45 = sphi 0, %s43
    %s46 = sphi 0, %s45
    %s60 = sphi 0, %s46
    %s64 = sphi 0, %s64
    %s66 = sphi 0, %s64
    %s67 = sphi 0, %s66
    %s81 = sphi 0, %s67
    %s87 = sphi 0, %s89
    %s90 = sphi 0, %s87
    %s91 = sphi 0, %s90
    %s107 = sphi 0, %s91
  $region4: #{net_forward.12} parent=0 // loop_header_branch
    %12 = sbr.rel (%p10) target = $region8
  $region5: #{net_forward.12} parent=0 // loop_body
    %s14 = ssub.s32 %s9, 1
    %s15 = ssub.s32 %s9, 2
    %s16 = sadd.s32 %s9, 1
    %s17 = ssub.s32 %s9, %s16
    %p18 = scmp.eq.s32.totalorder %s17, 0
    %s20 = sadd.s32 %s19, 1
    %s21 = scalar_select %p18, %s19, %s20
    %p24 = pneg %p18
    %p25 = scmp.eq.s32.totalorder %s9, 1
    %p26 = por %p24, %p25
    %p27 = scmp.ne.s32.totalorder %s19, %s22
    %p28 = scmp.eq.s32.totalorder %s9, 0
    %p29 = por %p27, %p28
    %p30 = scmp.ne.s32.totalorder %s19, %s22
    %p31 = scmp.eq.s32.totalorder %s14, 1
    %p32 = por %p30, %p31
    %p33 = scmp.ne.s32.totalorder %s22, %s23
    %p34 = scmp.eq.s32.totalorder %s14, 0
    %p35 = por %p33, %p34
    %p36 = scmp.ne.s32.totalorder %s22, %s23
    %p37 = scmp.eq.s32.totalorder %s15, 1
    %p38 = por %p36, %p37
    %p40 = scmp.ne.s32.totalorder %s23, %s39
    %p41 = scmp.eq.s32.totalorder %s15, 0
    %p42 = por %p40, %p41
    %s44 = sadd.s32 %s43, 1
    %p47 = scmp.eq.s32.totalorder %s9, 1
    %p48 = scmp.ne.s32.totalorder %s43, %s45
    %p49 = scmp.eq.s32.totalorder %s9, 0
    %p50 = por %p48, %p49
    %p51 = scmp.ne.s32.totalorder %s43, %s45
    %p52 = scmp.eq.s32.totalorder %s14, 1
    %p53 = por %p51, %p52
    %p54 = scmp.ne.s32.totalorder %s45, %s46
    %p55 = scmp.eq.s32.totalorder %s14, 0
    %p56 = por %p54, %p55
    %p57 = scmp.ne.s32.totalorder %s45, %s46
    %p58 = scmp.eq.s32.totalorder %s15, 1
    %p59 = por %p57, %p58
    %p61 = scmp.ne.s32.totalorder %s46, %s60
    %p62 = scmp.eq.s32.totalorder %s15, 0
    %p63 = por %p61, %p62
    %s65 = sadd.s32 %s64, 1
    %p68 = scmp.eq.s32.totalorder %s9, 1
    %p69 = scmp.ne.s32.totalorder %s64, %s66
    %p70 = scmp.eq.s32.totalorder %s9, 0
    %p71 = por %p69, %p70
    %p72 = scmp.ne.s32.totalorder %s64, %s66
    %p73 = scmp.eq.s32.totalorder %s14, 1
    %p74 = por %p72, %p73
    %p75 = scmp.ne.s32.totalorder %s66, %s67
    %p76 = scmp.eq.s32.totalorder %s14, 0
    %p77 = por %p75, %p76
    %p78 = scmp.ne.s32.totalorder %s66, %s67
    %p79 = scmp.eq.s32.totalorder %s15, 1
    %p80 = por %p78, %p79
    %p82 = scmp.ne.s32.totalorder %s67, %s81
    %p83 = scmp.eq.s32.totalorder %s15, 0
    %p84 = por %p82, %p83
    %s85 = ssub.s32 %s9, %s16
    %p86 = scmp.eq.s32.totalorder %s85, 0
    %s88 = sadd.s32 %s87, 1
    %s89 = scalar_select %p86, %s87, %s88
    %p92 = pneg %p86
    %p93 = scmp.eq.s32.totalorder %s9, 1
    %p94 = por %p92, %p93
    %p95 = scmp.ne.s32.totalorder %s87, %s90
    %p96 = scmp.eq.s32.totalorder %s9, 0
    %p97 = por %p95, %p96
    %p98 = scmp.ne.s32.totalorder %s87, %s90
    %p99 = scmp.eq.s32.totalorder %s14, 1
    %p100 = por %p98, %p99
    %p101 = scmp.ne.s32.totalorder %s90, %s91
    %p102 = scmp.eq.s32.totalorder %s14, 0
    %p103 = por %p101, %p102
    %p104 = scmp.ne.s32.totalorder %s90, %s91
    %p105 = scmp.eq.s32.totalorder %s15, 1
    %p106 = por %p104, %p105
    %p108 = scmp.ne.s32.totalorder %s91, %s107
    %p109 = scmp.eq.s32.totalorder %s15, 0
    %p110 = por %p108, %p109
    %p111 = scmp.le.s32.totalorder 1, %s9
    %p112 = scmp.lt.s32.totalorder %s9, 3
    %p113 = pnand %p111, %p112
    %p114 = pneg %p113
    // Predicated region
    $region9: #{net_forward.12} parent=5 // pred_check
      _
    $region10: #{net_forward.12} parent=5 // pred_check_branch
      %116 = sbr.rel (%p113) target = $region12
    $region11: #{net_forward.12} parent=5 // pred_region
      %s117 = ssub.s32 %s9, 1
      // Predicated region
      $region13: #{net_forward.12} parent=11 // pred_check
        %p118 = pneg %p56
      $region14: #{net_forward.12} parent=11 // pred_check_branch
        %120 = sbr.rel (%p118) target = $region16
      $region15: #{net_forward.12} parent=11 // pred_region
        _
      $region16: #{net_forward.12} parent=11 // pred_fallthru
        _
      // Predicated region
      $region17: #{net_forward.12} parent=11 // pred_check
        %p121 = pneg %p77
      $region18: #{net_forward.12} parent=11 // pred_check_branch
        %123 = sbr.rel (%p121) target = $region20
      $region19: #{net_forward.12} parent=11 // pred_region
        _
      $region20: #{net_forward.12} parent=11 // pred_fallthru
        _
    $region12: #{net_forward.12} parent=5 // pred_fallthru
      _
    %p124 = scmp.lt.s32.totalorder %s9, 2
    // Predicated region
    $region21: #{net_forward.12} parent=5 // pred_check
      %p125 = pneg %p124
    $region22: #{net_forward.12} parent=5 // pred_check_branch
      %127 = sbr.rel (%p125) target = $region24
    $region23: #{net_forward.12} parent=5 // pred_region
      // Predicated region
      $region25: #{net_forward.12} parent=23 // pred_check
        %p128 = pneg %p29
      $region26: #{net_forward.12} parent=23 // pred_check_branch
        %130 = sbr.rel (%p128) target = $region28
      $region27: #{net_forward.12} parent=23 // pred_region
        %s131 = smul.u32 2, %s9
        %p132 = scmp.lt.s32.totalorder %s131, 3
        %s133 = scalar_select %p132, %s131, 3
        %s134 = smul.addr %s133, 2
        %s135 = smul.addr %s134, 4
        %s136 = scalar_lea.vmem %s0, %s135
        %s137 = smul.u32 2, %s9
      $region28: #{net_forward.12} parent=23 // pred_fallthru
        _
    $region24: #{net_forward.12} parent=5 // pred_fallthru
      _
    %p138 = scmp.le.s32.totalorder 1, %s9
    %p139 = scmp.lt.s32.totalorder %s9, 3
    %p140 = pnand %p138, %p139
    %p141 = pneg %p140
    // Predicated region
    $region29: #{net_forward.12} parent=5 // pred_check
      _
    $region30: #{net_forward.12} parent=5 // pred_check_branch
      %143 = sbr.rel (%p140) target = $region32
    $region31: #{net_forward.12} parent=5 // pred_region
      %s144 = ssub.s32 %s9, 1
      %s145 = smul.u32 2, %s14
      %p146 = scmp.lt.s32.totalorder %s145, 3
      %s147 = scalar_select %p146, %s145, 3
      %s148 = smul.addr %s147, 2
      %s149 = smul.addr %s148, 4
      %s150 = scalar_lea.vmem %s0, %s149
      %p151 = pneg %p35
      %p152 = pneg %p32
      %p153 = pneg %p56
      %p154 = pneg %p53
      %p155 = pneg %p77
      %p156 = pneg %p74
      %p157 = pneg %p103
      %p158 = pneg %p100
      %s159 = smul.u32 2, %s14
      %p160 = scmp.lt.s32.totalorder %s159, 3
      %s161 = scalar_select %p160, %s159, 3
      %s162 = smul.addr %s161, 8
      %s163 = scalar_lea.vmem %s3, %s162
      %s164 = smul.u32 2, %s14
      %p165 = scmp.lt.s32.totalorder %s164, 3
      %s166 = scalar_select %p165, %s164, 3
      %s167 = smul.addr %s166, 2
      %s168 = smul.addr %s167, 4
      %s169 = scalar_lea.vmem %s0, %s168
      %s170 = smul.u32 2, %s14
      %s171 = smul.u32 2, %s14
      %p172 = scmp.lt.s32.totalorder %s171, 3
      %s173 = scalar_select %p172, %s171, 3
      %s174 = smul.addr %s173, 8
      %s175 = scalar_lea.vmem %s3, %s174
      %s176 = smul.u32 2, %s14
      %v178 = vld [vmem:[%s169] sm:$0xff]
      %v179 = vld [vmem:[%s169 + $0x8] sm:$0xff]
      %v180 = vld [vmem:[%s1] sm:$0xf]
      %v181 = vld [vmem:[%s1 + $0x4] sm:$0xf]
      %v182 = vld [vmem:[%s1 + $0x8] sm:$0xf]
      %v183 = vld [vmem:[%s1 + $0xc] sm:$0xf]
      %v184 = vld [vmem:[%s1 + $0x10] sm:$0xf]
      %v185 = vld [vmem:[%s1 + $0x14] sm:$0xf]
      %v186 = vld [vmem:[%s1 + $0x18] sm:$0xf]
      %v187 = vld [vmem:[%s1 + $0x1c] sm:$0xf]
      %v188 = vld [vmem:[%s1 + $0x20] sm:$0xf]
      %v189 = vld [vmem:[%s1 + $0x24] sm:$0xf]
      %v190 = vld [vmem:[%s1 + $0x28] sm:$0xf]
      %v191 = vld [vmem:[%s1 + $0x2c] sm:$0xf]
      %v192 = vld [vmem:[%s1 + $0x30] sm:$0xf]
      %v193 = vld [vmem:[%s1 + $0x34] sm:$0xf]
      %v194 = vld [vmem:[%s1 + $0x38] sm:$0xf]
      %v195 = vld [vmem:[%s1 + $0x3c] sm:$0xf]
      %v196 = vld [vmem:[%s1 + $0x40] sm:$0xf]
      %v197 = vld [vmem:[%s1 + $0x44] sm:$0xf]
      %v198 = vld [vmem:[%s1 + $0x48] sm:$0xf]
      %v199 = vld [vmem:[%s1 + $0x4c] sm:$0xf]
      %v200 = vld [vmem:[%s1 + $0x50] sm:$0xf]
      %v201 = vld [vmem:[%s1 + $0x54] sm:$0xf]
      %v202 = vld [vmem:[%s1 + $0x58] sm:$0xf]
      %v203 = vld [vmem:[%s1 + $0x5c] sm:$0xf]
      %v204 = vld [vmem:[%s1 + $0x60] sm:$0xf]
      %v205 = vld [vmem:[%s1 + $0x64] sm:$0xf]
      %v206 = vld [vmem:[%s1 + $0x68] sm:$0xf]
      %v207 = vld [vmem:[%s2] sm:$0x1]
      %v209 = vlaneseq
      %v210 = vshrl.u32 %v209, 7
      %v211 = vsub.s32 0, %v210
      %v212 = vrot.slane %v207, %v211
      %v216 = vunpack.c.l.b16 %v178
      %v217 = vunpack.c.h.b16 %v178
      %v218 = vunpack.c.l.b16 %v179
      %v219 = vunpack.c.h.b16 %v179
      %v220 = vpack.c.b16 %v218, %v216
      %v221 = vpack.c.b16 %v219, %v217
      %v250 = vunpack.c.l.b16 %v180
      %v251 = vunpack.c.l.b16 %v181
      %v252 = vunpack.c.l.b16 %v182
      %v253 = vunpack.c.l.b16 %v183
      %v254 = vunpack.c.l.b16 %v184
      %v255 = vunpack.c.l.b16 %v185
      %v256 = vunpack.c.l.b16 %v186
      %v257 = vunpack.c.l.b16 %v187
      %v258 = vunpack.c.l.b16 %v188
      %v259 = vunpack.c.l.b16 %v189
      %v260 = vunpack.c.l.b16 %v190
      %v261 = vunpack.c.l.b16 %v191
      %v262 = vunpack.c.l.b16 %v192
      %v263 = vunpack.c.l.b16 %v193
      %v264 = vunpack.c.l.b16 %v194
      %v265 = vunpack.c.l.b16 %v195
      %v266 = vunpack.c.l.b16 %v196
      %v267 = vunpack.c.l.b16 %v197
      %v268 = vunpack.c.l.b16 %v198
      %v269 = vunpack.c.l.b16 %v199
      %v270 = vunpack.c.l.b16 %v200
      %v271 = vunpack.c.l.b16 %v201
      %v272 = vunpack.c.l.b16 %v202
      %v273 = vunpack.c.l.b16 %v203
      %v274 = vunpack.c.l.b16 %v204
      %v275 = vunpack.c.l.b16 %v205
      %v276 = vunpack.c.l.b16 %v206
      %v277 = vpack.c.b16 %v251, %v250
      %v278 = vpack.c.b16 %v253, %v252
      %v279 = vpack.c.b16 %v255, %v254
      %v280 = vpack.c.b16 %v257, %v256
      %v281 = vpack.c.b16 %v259, %v258
      %v282 = vpack.c.b16 %v261, %v260
      %v283 = vpack.c.b16 %v263, %v262
      %v284 = vpack.c.b16 %v265, %v264
      %v285 = vpack.c.b16 %v267, %v266
      %v286 = vpack.c.b16 %v269, %v268
      %v287 = vpack.c.b16 %v271, %v270
      %v288 = vpack.c.b16 %v273, %v272
      %v289 = vpack.c.b16 %v275, %v274
      %v290 = vpack.c.b16 %v276, %v276
      %vm304 = vcmask 719872
      %v306 = vsel %vm304, %v221, 0
      %vm308 = vcmask 1043456
      %v310 = vsel %vm308, %v290, 0
      %312 = vmatprep.subr.bf16.mxu0 0
      %313 = vmatpush1.bf16.msra.mxu0 %v284
      %314 = vmatprep.subr.bf16.mxu0 0
      %315 = vmatpush1.bf16.msra.mxu0 %v283
      %316 = vmatprep.subr.bf16.mxu0 0
      %317 = vmatpush1.bf16.msra.mxu0 %v282
      %318 = vmatprep.subr.bf16.mxu0 0
      %319 = vmatpush1.bf16.msra.mxu0 %v281
      %320 = vmatprep.subr.bf16.mxu0 0
      %321 = vmatpush1.bf16.msra.mxu0 %v280
      %322 = vmatprep.subr.bf16.mxu0 0
      %323 = vmatpush1.bf16.msra.mxu0 %v279
      %324 = vmatprep.subr.bf16.mxu0 0
      %325 = vmatpush1.bf16.msra.mxu0 %v278
      %326 = vmatprep.subr.bf16.mxu0 0
      %327 = vmatpush1.bf16.msra.mxu0 %v277
      %328 = vmatprep.subr.bf16.mxu0 0
      %329 = vmatpush2.bf16.msra.mxu0 0
      %330 = vmatprep.subr.bf16.mxu0 0
      %331 = vmatpush2.bf16.msra.mxu0 0
      %332 = vmatprep.subr.bf16.mxu0 0
      %333 = vmatpush2.bf16.msra.mxu0 %v310
      %334 = vmatprep.subr.bf16.mxu0 0
      %335 = vmatpush2.bf16.msra.mxu0 %v289
      %336 = vmatprep.subr.bf16.mxu0 0
      %337 = vmatpush2.bf16.msra.mxu0 %v288
      %338 = vmatprep.subr.bf16.mxu0 0
      %339 = vmatpush2.bf16.msra.mxu0 %v287
      %340 = vmatprep.subr.bf16.mxu0 0
      %341 = vmatpush2.bf16.msra.mxu0 %v286
      %342 = vmatprep.subr.bf16.mxu0 0
      %343 = vmatpush2.bf16.msra.mxu0 %v285
      %344 = vmatprep.mubr.bf16.mxu0 %v306
      %345 = vmatmul.mubr.bf16.gmra.mxu0 %v220
      %v346 = vpop.f32.mrf.mxu0
      %v347 = vadd.f32 %v212, %v346
      %v348 = vpop.f32.mrf.mxu0
      %v349 = vpop.f32.mrf.mxu0
      %v350 = vadd.f32 %v212, %v349
      %v351 = vpop.f32.mrf.mxu0
      %352 = vdwg.mxu0
      %vm353 = vcmask 195584
      %354 = vst.msk [vmem:[%s175] sm:$0xff] %vm353, %v347
      %355 = vst.msk [vmem:[%s175 + $0x8] sm:$0xff] %vm353, %v350
      %s356 = smul.u32 2, %s14
      %p357 = scmp.lt.s32.totalorder %s356, 3
      %s358 = scalar_select %p357, %s356, 3
      %s359 = smul.addr %s358, 8
      %s360 = scalar_lea.vmem %s3, %s359
      // Predicated region
      $region33: #{net_forward.12} parent=31 // pred_check
        %p361 = pneg %p100
      $region34: #{net_forward.12} parent=31 // pred_check_branch
        %363 = sbr.rel (%p361) target = $region36
      $region35: #{net_forward.12} parent=31 // pred_region
        %s364 = smul.u32 2, %s14
      $region36: #{net_forward.12} parent=31 // pred_fallthru
        _
    $region32: #{net_forward.12} parent=5 // pred_fallthru
      _
    %p365 = scmp.le.s32.totalorder 2, %s9
    // Predicated region
    $region37: #{net_forward.12} parent=5 // pred_check
      %p366 = pneg %p365
    $region38: #{net_forward.12} parent=5 // pred_check_branch
      %368 = sbr.rel (%p366) target = $region40
    $region39: #{net_forward.12} parent=5 // pred_region
      %s369 = ssub.s32 %s9, 2
      // Predicated region
      $region41: #{net_forward.12} parent=39 // pred_check
        %p370 = pneg %p106
      $region42: #{net_forward.12} parent=39 // pred_check_branch
        %372 = sbr.rel (%p370) target = $region44
      $region43: #{net_forward.12} parent=39 // pred_region
        %s373 = smul.u32 2, %s15
        %p374 = scmp.lt.s32.totalorder %s373, 3
        %s375 = scalar_select %p374, %s373, 3
        %s376 = smul.addr %s375, 8
        %s377 = scalar_lea.vmem %s3, %s376
      $region44: #{net_forward.12} parent=39 // pred_fallthru
        _
    $region40: #{net_forward.12} parent=5 // pred_fallthru
      _
  $region6: #{net_forward.12} parent=0 // loop_footer
    %s13 = sadd.s32 1, %s9
  $region7: #{net_forward.12} parent=0 // loop_footer_branch
    %8 = sbr.rel target = $region3
  $region8: #{net_forward.12} parent=0 // loop_exit
    _

// kernel: net_forward.13
$region0: #{net_forward.13}
  #allocation0 [shape = 'u32[]', space=smem, size = 0x4, offset = 0x4, fixed_abs, tag = 'smem constant byte address 0x4 - core index']
  #allocation1 [shape = 'u32[144,128]{1,0:T(1,128)}', space=vmem, size = 0x12000, scoped, tag = 'internal scratch']
  %s0 = inlined_call_operand.vmem [shape: bf16[8,1408], index: 0, kind: input, shape index: {}]
  %s1 = inlined_call_operand.vmem [shape: bf16[1408,10], index: 1, kind: input, shape index: {}]
  %s2 = inlined_call_operand.vmem [shape: f32[1,10], index: 2, kind: input, shape index: {}]
  %s3 = inlined_call_operand.vmem [shape: f32[8,10], index: 3, kind: output, shape index: {}]
  %s4 = sld [smem:[#allocation0]]
  $region22: #{net_forward.13} parent=0
    _
  %s6 = ssub.s32 1, %s4
  %s7 = scalar_select 0, %s6, %s4
  // Predicated region
  $region2: #{net_forward.13} parent=0 // pred_check
    _
  $region3: #{net_forward.13} parent=0 // pred_check_branch
    %9 = sbr.rel (0) target = $region5
  $region4: #{net_forward.13} parent=0 // pred_region
    _
  $region5: #{net_forward.13} parent=0 // pred_fallthru
    _
  // Predicated region
  $region6: #{net_forward.13} parent=0 // pred_check
    _
  $region7: #{net_forward.13} parent=0 // pred_check_branch
    %11 = sbr.rel (0) target = $region9
  $region8: #{net_forward.13} parent=0 // pred_region
    _
  $region9: #{net_forward.13} parent=0 // pred_fallthru
    _
  // Predicated region
  $region10: #{net_forward.13} parent=0 // pred_check
    _
  $region11: #{net_forward.13} parent=0 // pred_check_branch
    %13 = sbr.rel (0) target = $region13
  $region12: #{net_forward.13} parent=0 // pred_region
    _
  $region13: #{net_forward.13} parent=0 // pred_fallthru
    _
  %v15 = vld [vmem:[%s0] sm:$0xff]
  %v16 = vld [vmem:[%s0 + $0x8] sm:$0xff]
  %v17 = vld [vmem:[%s0 + $0x10] sm:$0xff]
  %v18 = vld [vmem:[%s0 + $0x18] sm:$0xff]
  %v19 = vld [vmem:[%s0 + $0x20] sm:$0xff]
  %v20 = vld [vmem:[%s0 + $0x28] sm:$0xf]
  %v21 = vld [vmem:[%s1] sm:$0xf]
  %v22 = vld [vmem:[%s1 + $0x4] sm:$0xf]
  %v23 = vld [vmem:[%s1 + $0x8] sm:$0xf]
  %v24 = vld [vmem:[%s1 + $0xc] sm:$0xf]
  %v25 = vld [vmem:[%s1 + $0x10] sm:$0xf]
  %v26 = vld [vmem:[%s1 + $0x14] sm:$0xf]
  %v27 = vld [vmem:[%s1 + $0x18] sm:$0xf]
  %v28 = vld [vmem:[%s1 + $0x1c] sm:$0xf]
  %v29 = vld [vmem:[%s1 + $0x20] sm:$0xf]
  %v30 = vld [vmem:[%s1 + $0x24] sm:$0xf]
  %v31 = vld [vmem:[%s1 + $0x28] sm:$0xf]
  %v32 = vld [vmem:[%s1 + $0x2c] sm:$0xf]
  %v33 = vld [vmem:[%s1 + $0x30] sm:$0xf]
  %v34 = vld [vmem:[%s1 + $0x34] sm:$0xf]
  %v35 = vld [vmem:[%s1 + $0x38] sm:$0xf]
  %v36 = vld [vmem:[%s1 + $0x3c] sm:$0xf]
  %v37 = vld [vmem:[%s1 + $0x40] sm:$0xf]
  %v38 = vld [vmem:[%s1 + $0x44] sm:$0xf]
  %v39 = vld [vmem:[%s1 + $0x48] sm:$0xf]
  %v40 = vld [vmem:[%s1 + $0x4c] sm:$0xf]
  %v41 = vld [vmem:[%s1 + $0x50] sm:$0xf]
  %v42 = vld [vmem:[%s1 + $0x54] sm:$0xf]
  %v43 = vld [vmem:[%s1 + $0x58] sm:$0xf]
  %v44 = vld [vmem:[%s1 + $0x5c] sm:$0xf]
  %v45 = vld [vmem:[%s1 + $0x60] sm:$0xf]
  %v46 = vld [vmem:[%s1 + $0x64] sm:$0xf]
  %v47 = vld [vmem:[%s1 + $0x68] sm:$0xf]
  %v48 = vld [vmem:[%s1 + $0x6c] sm:$0xf]
  %v49 = vld [vmem:[%s1 + $0x70] sm:$0xf]
  %v50 = vld [vmem:[%s1 + $0x74] sm:$0xf]
  %v51 = vld [vmem:[%s1 + $0x78] sm:$0xf]
  %v52 = vld [vmem:[%s1 + $0x7c] sm:$0xf]
  %v53 = vld [vmem:[%s1 + $0x80] sm:$0xf]
  %v54 = vld [vmem:[%s1 + $0x84] sm:$0xf]
  %v55 = vld [vmem:[%s1 + $0x88] sm:$0xf]
  %v56 = vld [vmem:[%s1 + $0x8c] sm:$0xf]
  %v57 = vld [vmem:[%s1 + $0x90] sm:$0xf]
  %v58 = vld [vmem:[%s1 + $0x94] sm:$0xf]
  %v59 = vld [vmem:[%s1 + $0x98] sm:$0xf]
  %v60 = vld [vmem:[%s1 + $0x9c] sm:$0xf]
  %v61 = vld [vmem:[%s1 + $0xa0] sm:$0xf]
  %v62 = vld [vmem:[%s1 + $0xa4] sm:$0xf]
  %v63 = vld [vmem:[%s1 + $0xa8] sm:$0xf]
  %v64 = vld [vmem:[%s1 + $0xac] sm:$0xf]
  %v65 = vld [vmem:[%s1 + $0xb0] sm:$0xf]
  %v66 = vld [vmem:[%s1 + $0xb4] sm:$0xf]
  %v67 = vld [vmem:[%s1 + $0xb8] sm:$0xf]
  %v68 = vld [vmem:[%s1 + $0xbc] sm:$0xf]
  %v69 = vld [vmem:[%s1 + $0xc0] sm:$0xf]
  %v70 = vld [vmem:[%s1 + $0xc4] sm:$0xf]
  %v71 = vld [vmem:[%s1 + $0xc8] sm:$0xf]
  %v72 = vld [vmem:[%s1 + $0xcc] sm:$0xf]
  %v73 = vld [vmem:[%s1 + $0xd0] sm:$0xf]
  %v74 = vld [vmem:[%s1 + $0xd4] sm:$0xf]
  %v75 = vld [vmem:[%s1 + $0xd8] sm:$0xf]
  %v76 = vld [vmem:[%s1 + $0xdc] sm:$0xf]
  %v77 = vld [vmem:[%s1 + $0xe0] sm:$0xf]
  %v78 = vld [vmem:[%s1 + $0xe4] sm:$0xf]
  %v79 = vld [vmem:[%s1 + $0xe8] sm:$0xf]
  %v80 = vld [vmem:[%s1 + $0xec] sm:$0xf]
  %v81 = vld [vmem:[%s1 + $0xf0] sm:$0xf]
  %v82 = vld [vmem:[%s1 + $0xf4] sm:$0xf]
  %v83 = vld [vmem:[%s1 + $0xf8] sm:$0xf]
  %v84 = vld [vmem:[%s1 + $0xfc] sm:$0xf]
  %v85 = vld [vmem:[%s1 + $0x100] sm:$0xf]
  %v86 = vld [vmem:[%s1 + $0x104] sm:$0xf]
  %v87 = vld [vmem:[%s1 + $0x108] sm:$0xf]
  %v88 = vld [vmem:[%s1 + $0x10c] sm:$0xf]
  %v89 = vld [vmem:[%s1 + $0x110] sm:$0xf]
  %v90 = vld [vmem:[%s1 + $0x114] sm:$0xf]
  %v91 = vld [vmem:[%s1 + $0x118] sm:$0xf]
  %v92 = vld [vmem:[%s1 + $0x11c] sm:$0xf]
  %v93 = vld [vmem:[%s1 + $0x120] sm:$0xf]
  %v94 = vld [vmem:[%s1 + $0x124] sm:$0xf]
  %v95 = vld [vmem:[%s1 + $0x128] sm:$0xf]
  %v96 = vld [vmem:[%s1 + $0x12c] sm:$0xf]
  %v97 = vld [vmem:[%s1 + $0x130] sm:$0xf]
  %v98 = vld [vmem:[%s1 + $0x134] sm:$0xf]
  %v99 = vld [vmem:[%s1 + $0x138] sm:$0xf]
  %v100 = vld [vmem:[%s1 + $0x13c] sm:$0xf]
  %v101 = vld [vmem:[%s1 + $0x140] sm:$0xf]
  %v102 = vld [vmem:[%s1 + $0x144] sm:$0xf]
  %v103 = vld [vmem:[%s1 + $0x148] sm:$0xf]
  %v104 = vld [vmem:[%s1 + $0x14c] sm:$0xf]
  %v105 = vld [vmem:[%s1 + $0x150] sm:$0xf]
  %v106 = vld [vmem:[%s1 + $0x154] sm:$0xf]
  %v107 = vld [vmem:[%s1 + $0x158] sm:$0xf]
  %v108 = vld [vmem:[%s1 + $0x15c] sm:$0xf]
  %v109 = vld [vmem:[%s1 + $0x160] sm:$0xf]
  %v110 = vld [vmem:[%s1 + $0x164] sm:$0xf]
  %v111 = vld [vmem:[%s1 + $0x168] sm:$0xf]
  %v112 = vld [vmem:[%s1 + $0x16c] sm:$0xf]
  %v113 = vld [vmem:[%s1 + $0x170] sm:$0xf]
  %v114 = vld [vmem:[%s1 + $0x174] sm:$0xf]
  %v115 = vld [vmem:[%s1 + $0x178] sm:$0xf]
  %v116 = vld [vmem:[%s1 + $0x17c] sm:$0xf]
  %v117 = vld [vmem:[%s1 + $0x180] sm:$0xf]
  %v118 = vld [vmem:[%s1 + $0x184] sm:$0xf]
  %v119 = vld [vmem:[%s1 + $0x188] sm:$0xf]
  %v120 = vld [vmem:[%s1 + $0x18c] sm:$0xf]
  %v121 = vld [vmem:[%s1 + $0x190] sm:$0xf]
  %v122 = vld [vmem:[%s1 + $0x194] sm:$0xf]
  %v123 = vld [vmem:[%s1 + $0x198] sm:$0xf]
  %v124 = vld [vmem:[%s1 + $0x19c] sm:$0xf]
  %v125 = vld [vmem:[%s1 + $0x1a0] sm:$0xf]
  %v126 = vld [vmem:[%s1 + $0x1a4] sm:$0xf]
  %v127 = vld [vmem:[%s1 + $0x1a8] sm:$0xf]
  %v128 = vld [vmem:[%s1 + $0x1ac] sm:$0xf]
  %v129 = vld [vmem:[%s1 + $0x1b0] sm:$0xf]
  %v130 = vld [vmem:[%s1 + $0x1b4] sm:$0xf]
  %v131 = vld [vmem:[%s1 + $0x1b8] sm:$0xf]
  %v132 = vld [vmem:[%s1 + $0x1bc] sm:$0xf]
  %v133 = vld [vmem:[%s1 + $0x1c0] sm:$0xf]
  %v134 = vld [vmem:[%s1 + $0x1c4] sm:$0xf]
  %v135 = vld [vmem:[%s1 + $0x1c8] sm:$0xf]
  %v136 = vld [vmem:[%s1 + $0x1cc] sm:$0xf]
  %v137 = vld [vmem:[%s1 + $0x1d0] sm:$0xf]
  %v138 = vld [vmem:[%s1 + $0x1d4] sm:$0xf]
  %v139 = vld [vmem:[%s1 + $0x1d8] sm:$0xf]
  %v140 = vld [vmem:[%s1 + $0x1dc] sm:$0xf]
  %v141 = vld [vmem:[%s1 + $0x1e0] sm:$0xf]
  %v142 = vld [vmem:[%s1 + $0x1e4] sm:$0xf]
  %v143 = vld [vmem:[%s1 + $0x1e8] sm:$0xf]
  %v144 = vld [vmem:[%s1 + $0x1ec] sm:$0xf]
  %v145 = vld [vmem:[%s1 + $0x1f0] sm:$0xf]
  %v146 = vld [vmem:[%s1 + $0x1f4] sm:$0xf]
  %v147 = vld [vmem:[%s1 + $0x1f8] sm:$0xf]
  %v148 = vld [vmem:[%s1 + $0x1fc] sm:$0xf]
  %v149 = vld [vmem:[%s1 + $0x200] sm:$0xf]
  %v150 = vld [vmem:[%s1 + $0x204] sm:$0xf]
  %v151 = vld [vmem:[%s1 + $0x208] sm:$0xf]
  %v152 = vld [vmem:[%s1 + $0x20c] sm:$0xf]
  %v153 = vld [vmem:[%s1 + $0x210] sm:$0xf]
  %v154 = vld [vmem:[%s1 + $0x214] sm:$0xf]
  %v155 = vld [vmem:[%s1 + $0x218] sm:$0xf]
  %v156 = vld [vmem:[%s1 + $0x21c] sm:$0xf]
  %v157 = vld [vmem:[%s1 + $0x220] sm:$0xf]
  %v158 = vld [vmem:[%s1 + $0x224] sm:$0xf]
  %v159 = vld [vmem:[%s1 + $0x228] sm:$0xf]
  %v160 = vld [vmem:[%s1 + $0x22c] sm:$0xf]
  %v161 = vld [vmem:[%s1 + $0x230] sm:$0xf]
  %v162 = vld [vmem:[%s1 + $0x234] sm:$0xf]
  %v163 = vld [vmem:[%s1 + $0x238] sm:$0xf]
  %v164 = vld [vmem:[%s1 + $0x23c] sm:$0xf]
  %v165 = vld [vmem:[%s1 + $0x240] sm:$0xf]
  %v166 = vld [vmem:[%s1 + $0x244] sm:$0xf]
  %v167 = vld [vmem:[%s1 + $0x248] sm:$0xf]
  %v168 = vld [vmem:[%s1 + $0x24c] sm:$0xf]
  %v169 = vld [vmem:[%s1 + $0x250] sm:$0xf]
  %v170 = vld [vmem:[%s1 + $0x254] sm:$0xf]
  %v171 = vld [vmem:[%s1 + $0x258] sm:$0xf]
  %v172 = vld [vmem:[%s1 + $0x25c] sm:$0xf]
  %v173 = vld [vmem:[%s1 + $0x260] sm:$0xf]
  %v174 = vld [vmem:[%s1 + $0x264] sm:$0xf]
  %v175 = vld [vmem:[%s1 + $0x268] sm:$0xf]
  %v176 = vld [vmem:[%s1 + $0x26c] sm:$0xf]
  %v177 = vld [vmem:[%s1 + $0x270] sm:$0xf]
  %v178 = vld [vmem:[%s1 + $0x274] sm:$0xf]
  %v179 = vld [vmem:[%s1 + $0x278] sm:$0xf]
  %v180 = vld [vmem:[%s1 + $0x27c] sm:$0xf]
  %v181 = vld [vmem:[%s1 + $0x280] sm:$0xf]
  %v182 = vld [vmem:[%s1 + $0x284] sm:$0xf]
  %v183 = vld [vmem:[%s1 + $0x288] sm:$0xf]
  %v184 = vld [vmem:[%s1 + $0x28c] sm:$0xf]
  %v185 = vld [vmem:[%s1 + $0x290] sm:$0xf]
  %v186 = vld [vmem:[%s1 + $0x294] sm:$0xf]
  %v187 = vld [vmem:[%s1 + $0x298] sm:$0xf]
  %v188 = vld [vmem:[%s1 + $0x29c] sm:$0xf]
  %v189 = vld [vmem:[%s1 + $0x2a0] sm:$0xf]
  %v190 = vld [vmem:[%s1 + $0x2a4] sm:$0xf]
  %v191 = vld [vmem:[%s1 + $0x2a8] sm:$0xf]
  %v192 = vld [vmem:[%s1 + $0x2ac] sm:$0xf]
  %v193 = vld [vmem:[%s1 + $0x2b0] sm:$0xf]
  %v194 = vld [vmem:[%s1 + $0x2b4] sm:$0xf]
  %v195 = vld [vmem:[%s1 + $0x2b8] sm:$0xf]
  %v196 = vld [vmem:[%s1 + $0x2bc] sm:$0xf]
  %v197 = vld [vmem:[%s2] sm:$0x1]
  %v199 = vlaneseq
  %v200 = vshrl.u32 %v199, 7
  %v201 = vsub.s32 0, %v200
  %v202 = vrot.slane %v197, %v201
  %v210 = vunpack.c.l.b16 %v15
  %v211 = vunpack.c.h.b16 %v15
  %v212 = vunpack.c.l.b16 %v16
  %v213 = vunpack.c.h.b16 %v16
  %v214 = vunpack.c.l.b16 %v17
  %v215 = vunpack.c.h.b16 %v17
  %v216 = vunpack.c.l.b16 %v18
  %v217 = vunpack.c.h.b16 %v18
  %v218 = vunpack.c.l.b16 %v19
  %v219 = vunpack.c.h.b16 %v19
  %v220 = vunpack.c.l.b16 %v20
  %v221 = vpack.c.b16 %v210, %v210
  %v222 = vpack.c.b16 %v211, %v211
  %v223 = vpack.c.b16 %v212, %v212
  %v224 = vpack.c.b16 %v213, %v213
  %v225 = vpack.c.b16 %v214, %v214
  %v226 = vpack.c.b16 %v215, %v215
  %v227 = vpack.c.b16 %v216, %v216
  %v228 = vpack.c.b16 %v217, %v217
  %v229 = vpack.c.b16 %v218, %v218
  %v230 = vpack.c.b16 %v219, %v219
  %v231 = vpack.c.b16 %v220, %v220
  %v419 = vunpack.c.l.b16 %v21
  %v420 = vunpack.c.l.b16 %v22
  %v421 = vunpack.c.l.b16 %v23
  %v422 = vunpack.c.l.b16 %v24
  %v423 = vunpack.c.l.b16 %v25
  %v424 = vunpack.c.l.b16 %v26
  %v425 = vunpack.c.l.b16 %v27
  %v426 = vunpack.c.l.b16 %v28
  %v427 = vunpack.c.l.b16 %v29
  %v428 = vunpack.c.l.b16 %v30
  %v429 = vunpack.c.l.b16 %v31
  %v430 = vunpack.c.l.b16 %v32
  %v431 = vunpack.c.l.b16 %v33
  %v432 = vunpack.c.l.b16 %v34
  %v433 = vunpack.c.l.b16 %v35
  %v434 = vunpack.c.l.b16 %v36
  %v435 = vunpack.c.l.b16 %v37
  %v436 = vunpack.c.l.b16 %v38
  %v437 = vunpack.c.l.b16 %v39
  %v438 = vunpack.c.l.b16 %v40
  %v439 = vunpack.c.l.b16 %v41
  %v440 = vunpack.c.l.b16 %v42
  %v441 = vunpack.c.l.b16 %v43
  %v442 = vunpack.c.l.b16 %v44
  %v443 = vunpack.c.l.b16 %v45
  %v444 = vunpack.c.l.b16 %v46
  %v445 = vunpack.c.l.b16 %v47
  %v446 = vunpack.c.l.b16 %v48
  %v447 = vunpack.c.l.b16 %v49
  %v448 = vunpack.c.l.b16 %v50
  %v449 = vunpack.c.l.b16 %v51
  %v450 = vunpack.c.l.b16 %v52
  %v451 = vunpack.c.l.b16 %v53
  %v452 = vunpack.c.l.b16 %v54
  %v453 = vunpack.c.l.b16 %v55
  %v454 = vunpack.c.l.b16 %v56
  %v455 = vunpack.c.l.b16 %v57
  %v456 = vunpack.c.l.b16 %v58
  %v457 = vunpack.c.l.b16 %v59
  %v458 = vunpack.c.l.b16 %v60
  %v459 = vunpack.c.l.b16 %v61
  %v460 = vunpack.c.l.b16 %v62
  %v461 = vunpack.c.l.b16 %v63
  %v462 = vunpack.c.l.b16 %v64
  %v463 = vunpack.c.l.b16 %v65
  %v464 = vunpack.c.l.b16 %v66
  %v465 = vunpack.c.l.b16 %v67
  %v466 = vunpack.c.l.b16 %v68
  %v467 = vunpack.c.l.b16 %v69
  %v468 = vunpack.c.l.b16 %v70
  %v469 = vunpack.c.l.b16 %v71
  %v470 = vunpack.c.l.b16 %v72
  %v471 = vunpack.c.l.b16 %v73
  %v472 = vunpack.c.l.b16 %v74
  %v473 = vunpack.c.l.b16 %v75
  %v474 = vunpack.c.l.b16 %v76
  %v475 = vunpack.c.l.b16 %v77
  %v476 = vunpack.c.l.b16 %v78
  %v477 = vunpack.c.l.b16 %v79
  %v478 = vunpack.c.l.b16 %v80
  %v479 = vunpack.c.l.b16 %v81
  %v480 = vunpack.c.l.b16 %v82
  %v481 = vunpack.c.l.b16 %v83
  %v482 = vunpack.c.l.b16 %v84
  %v483 = vunpack.c.l.b16 %v85
  %v484 = vunpack.c.l.b16 %v86
  %v485 = vunpack.c.l.b16 %v87
  %v486 = vunpack.c.l.b16 %v88
  %v487 = vunpack.c.l.b16 %v89
  %v488 = vunpack.c.l.b16 %v90
  %v489 = vunpack.c.l.b16 %v91
  %v490 = vunpack.c.l.b16 %v92
  %v491 = vunpack.c.l.b16 %v93
  %v492 = vunpack.c.l.b16 %v94
  %v493 = vunpack.c.l.b16 %v95
  %v494 = vunpack.c.l.b16 %v96
  %v495 = vunpack.c.l.b16 %v97
  %v496 = vunpack.c.l.b16 %v98
  %v497 = vunpack.c.l.b16 %v99
  %v498 = vunpack.c.l.b16 %v100
  %v499 = vunpack.c.l.b16 %v101
  %v500 = vunpack.c.l.b16 %v102
  %v501 = vunpack.c.l.b16 %v103
  %v502 = vunpack.c.l.b16 %v104
  %v503 = vunpack.c.l.b16 %v105
  %v504 = vunpack.c.l.b16 %v106
  %v505 = vunpack.c.l.b16 %v107
  %v506 = vunpack.c.l.b16 %v108
  %v507 = vunpack.c.l.b16 %v109
  %v508 = vunpack.c.l.b16 %v110
  %v509 = vunpack.c.l.b16 %v111
  %v510 = vunpack.c.l.b16 %v112
  %v511 = vunpack.c.l.b16 %v113
  %v512 = vunpack.c.l.b16 %v114
  %v513 = vunpack.c.l.b16 %v115
  %v514 = vunpack.c.l.b16 %v116
  %v515 = vunpack.c.l.b16 %v117
  %v516 = vunpack.c.l.b16 %v118
  %v517 = vunpack.c.l.b16 %v119
  %v518 = vunpack.c.l.b16 %v120
  %v519 = vunpack.c.l.b16 %v121
  %v520 = vunpack.c.l.b16 %v122
  %v521 = vunpack.c.l.b16 %v123
  %v522 = vunpack.c.l.b16 %v124
  %v523 = vunpack.c.l.b16 %v125
  %v524 = vunpack.c.l.b16 %v126
  %v525 = vunpack.c.l.b16 %v127
  %v526 = vunpack.c.l.b16 %v128
  %v527 = vunpack.c.l.b16 %v129
  %v528 = vunpack.c.l.b16 %v130
  %v529 = vunpack.c.l.b16 %v131
  %v530 = vunpack.c.l.b16 %v132
  %v531 = vunpack.c.l.b16 %v133
  %v532 = vunpack.c.l.b16 %v134
  %v533 = vunpack.c.l.b16 %v135
  %v534 = vunpack.c.l.b16 %v136
  %v535 = vunpack.c.l.b16 %v137
  %v536 = vunpack.c.l.b16 %v138
  %v537 = vunpack.c.l.b16 %v139
  %v538 = vunpack.c.l.b16 %v140
  %v539 = vunpack.c.l.b16 %v141
  %v540 = vunpack.c.l.b16 %v142
  %v541 = vunpack.c.l.b16 %v143
  %v542 = vunpack.c.l.b16 %v144
  %v543 = vunpack.c.l.b16 %v145
  %v544 = vunpack.c.l.b16 %v146
  %v545 = vunpack.c.l.b16 %v147
  %v546 = vunpack.c.l.b16 %v148
  %v547 = vunpack.c.l.b16 %v149
  %v548 = vunpack.c.l.b16 %v150
  %v549 = vunpack.c.l.b16 %v151
  %v550 = vunpack.c.l.b16 %v152
  %v551 = vunpack.c.l.b16 %v153
  %v552 = vunpack.c.l.b16 %v154
  %v553 = vunpack.c.l.b16 %v155
  %v554 = vunpack.c.l.b16 %v156
  %v555 = vunpack.c.l.b16 %v157
  %v556 = vunpack.c.l.b16 %v158
  %v557 = vunpack.c.l.b16 %v159
  %v558 = vunpack.c.l.b16 %v160
  %v559 = vunpack.c.l.b16 %v161
  %v560 = vunpack.c.l.b16 %v162
  %v561 = vunpack.c.l.b16 %v163
  %v562 = vunpack.c.l.b16 %v164
  %v563 = vunpack.c.l.b16 %v165
  %v564 = vunpack.c.l.b16 %v166
  %v565 = vunpack.c.l.b16 %v167
  %v566 = vunpack.c.l.b16 %v168
  %v567 = vunpack.c.l.b16 %v169
  %v568 = vunpack.c.l.b16 %v170
  %v569 = vunpack.c.l.b16 %v171
  %v570 = vunpack.c.l.b16 %v172
  %v571 = vunpack.c.l.b16 %v173
  %v572 = vunpack.c.l.b16 %v174
  %v573 = vunpack.c.l.b16 %v175
  %v574 = vunpack.c.l.b16 %v176
  %v575 = vunpack.c.l.b16 %v177
  %v576 = vunpack.c.l.b16 %v178
  %v577 = vunpack.c.l.b16 %v179
  %v578 = vunpack.c.l.b16 %v180
  %v579 = vunpack.c.l.b16 %v181
  %v580 = vunpack.c.l.b16 %v182
  %v581 = vunpack.c.l.b16 %v183
  %v582 = vunpack.c.l.b16 %v184
  %v583 = vunpack.c.l.b16 %v185
  %v584 = vunpack.c.l.b16 %v186
  %v585 = vunpack.c.l.b16 %v187
  %v586 = vunpack.c.l.b16 %v188
  %v587 = vunpack.c.l.b16 %v189
  %v588 = vunpack.c.l.b16 %v190
  %v589 = vunpack.c.l.b16 %v191
  %v590 = vunpack.c.l.b16 %v192
  %v591 = vunpack.c.l.b16 %v193
  %v592 = vunpack.c.l.b16 %v194
  %v593 = vunpack.c.l.b16 %v195
  %v594 = vunpack.c.l.b16 %v196
  %v595 = vpack.c.b16 %v420, %v419
  %v596 = vpack.c.b16 %v422, %v421
  %v597 = vpack.c.b16 %v424, %v423
  %v598 = vpack.c.b16 %v426, %v425
  %v599 = vpack.c.b16 %v428, %v427
  %v600 = vpack.c.b16 %v430, %v429
  %v601 = vpack.c.b16 %v432, %v431
  %v602 = vpack.c.b16 %v434, %v433
  %v603 = vpack.c.b16 %v436, %v435
  %v604 = vpack.c.b16 %v438, %v437
  %v605 = vpack.c.b16 %v440, %v439
  %v606 = vpack.c.b16 %v442, %v441
  %v607 = vpack.c.b16 %v444, %v443
  %v608 = vpack.c.b16 %v446, %v445
  %v609 = vpack.c.b16 %v448, %v447
  %v610 = vpack.c.b16 %v450, %v449
  %v611 = vpack.c.b16 %v452, %v451
  %v612 = vpack.c.b16 %v454, %v453
  %v613 = vpack.c.b16 %v456, %v455
  %v614 = vpack.c.b16 %v458, %v457
  %v615 = vpack.c.b16 %v460, %v459
  %v616 = vpack.c.b16 %v462, %v461
  %v617 = vpack.c.b16 %v464, %v463
  %v618 = vpack.c.b16 %v466, %v465
  %v619 = vpack.c.b16 %v468, %v467
  %v620 = vpack.c.b16 %v470, %v469
  %v621 = vpack.c.b16 %v472, %v471
  %v622 = vpack.c.b16 %v474, %v473
  %v623 = vpack.c.b16 %v476, %v475
  %v624 = vpack.c.b16 %v478, %v477
  %v625 = vpack.c.b16 %v480, %v479
  %v626 = vpack.c.b16 %v482, %v481
  %v627 = vpack.c.b16 %v484, %v483
  %v628 = vpack.c.b16 %v486, %v485
  %v629 = vpack.c.b16 %v488, %v487
  %v630 = vpack.c.b16 %v490, %v489
  %v631 = vpack.c.b16 %v492, %v491
  %v632 = vpack.c.b16 %v494, %v493
  %v633 = vpack.c.b16 %v496, %v495
  %v634 = vpack.c.b16 %v498, %v497
  %v635 = vpack.c.b16 %v500, %v499
  %v636 = vpack.c.b16 %v502, %v501
  %v637 = vpack.c.b16 %v504, %v503
  %v638 = vpack.c.b16 %v506, %v505
  %v639 = vpack.c.b16 %v508, %v507
  %v640 = vpack.c.b16 %v510, %v509
  %v641 = vpack.c.b16 %v512, %v511
  %v642 = vpack.c.b16 %v514, %v513
  %v643 = vpack.c.b16 %v516, %v515
  %v644 = vpack.c.b16 %v518, %v517
  %v645 = vpack.c.b16 %v520, %v519
  %v646 = vpack.c.b16 %v522, %v521
  %v647 = vpack.c.b16 %v524, %v523
  %v648 = vpack.c.b16 %v526, %v525
  %v649 = vpack.c.b16 %v528, %v527
  %v650 = vpack.c.b16 %v530, %v529
  %v651 = vpack.c.b16 %v532, %v531
  %v652 = vpack.c.b16 %v534, %v533
  %v653 = vpack.c.b16 %v536, %v535
  %v654 = vpack.c.b16 %v538, %v537
  %v655 = vpack.c.b16 %v540, %v539
  %v656 = vpack.c.b16 %v542, %v541
  %v657 = vpack.c.b16 %v544, %v543
  %v658 = vpack.c.b16 %v546, %v545
  %v659 = vpack.c.b16 %v548, %v547
  %v660 = vpack.c.b16 %v550, %v549
  %v661 = vpack.c.b16 %v552, %v551
  %v662 = vpack.c.b16 %v554, %v553
  %v663 = vpack.c.b16 %v556, %v555
  %v664 = vpack.c.b16 %v558, %v557
  %v665 = vpack.c.b16 %v560, %v559
  %v666 = vpack.c.b16 %v562, %v561
  %v667 = vpack.c.b16 %v564, %v563
  %v668 = vpack.c.b16 %v566, %v565
  %v669 = vpack.c.b16 %v568, %v567
  %v670 = vpack.c.b16 %v570, %v569
  %v671 = vpack.c.b16 %v572, %v571
  %v672 = vpack.c.b16 %v574, %v573
  %v673 = vpack.c.b16 %v576, %v575
  %v674 = vpack.c.b16 %v578, %v577
  %v675 = vpack.c.b16 %v580, %v579
  %v676 = vpack.c.b16 %v582, %v581
  %v677 = vpack.c.b16 %v584, %v583
  %v678 = vpack.c.b16 %v586, %v585
  %v679 = vpack.c.b16 %v588, %v587
  %v680 = vpack.c.b16 %v590, %v589
  %v681 = vpack.c.b16 %v592, %v591
  %v682 = vpack.c.b16 %v594, %v593
  %771 = vmatprep.subr.bf16.mxu0 0
  %772 = vmatpush1.bf16.msra.mxu0 %v602
  %773 = vmatprep.subr.bf16.mxu0 0
  %774 = vmatpush1.bf16.msra.mxu0 %v601
  %775 = vmatprep.subr.bf16.mxu0 0
  %776 = vmatpush1.bf16.msra.mxu0 %v600
  %777 = vmatprep.subr.bf16.mxu0 0
  %778 = vmatpush1.bf16.msra.mxu0 %v599
  %779 = vmatprep.subr.bf16.mxu0 0
  %780 = vmatpush1.bf16.msra.mxu0 %v598
  %781 = vmatprep.subr.bf16.mxu0 0
  %782 = vmatpush1.bf16.msra.mxu0 %v597
  %783 = vmatprep.subr.bf16.mxu0 0
  %784 = vmatpush1.bf16.msra.mxu0 %v596
  %785 = vmatprep.subr.bf16.mxu0 0
  %786 = vmatpush1.bf16.msra.mxu0 %v595
  %787 = vmatprep.subr.bf16.mxu0 0
  %788 = vmatpush2.bf16.msra.mxu0 %v610
  %789 = vmatprep.subr.bf16.mxu0 0
  %790 = vmatpush2.bf16.msra.mxu0 %v609
  %791 = vmatprep.subr.bf16.mxu0 0
  %792 = vmatpush2.bf16.msra.mxu0 %v608
  %793 = vmatprep.subr.bf16.mxu0 0
  %794 = vmatpush2.bf16.msra.mxu0 %v607
  %795 = vmatprep.subr.bf16.mxu0 0
  %796 = vmatpush2.bf16.msra.mxu0 %v606
  %797 = vmatprep.subr.bf16.mxu0 0
  %798 = vmatpush2.bf16.msra.mxu0 %v605
  %799 = vmatprep.subr.bf16.mxu0 0
  %800 = vmatpush2.bf16.msra.mxu0 %v604
  %801 = vmatprep.subr.bf16.mxu0 0
  %802 = vmatpush2.bf16.msra.mxu0 %v603
  %803 = vmatprep.mubr.bf16.mxu0 %v222
  %804 = vmatmul.mubr.bf16.gmra.mxu0 %v221
  %v805 = vpop.f32.mrf.mxu0
  %v806 = vadd.f32 %v202, %v805
  %v807 = vpop.f32.mrf.mxu0
  %v808 = vpop.f32.mrf.mxu0
  %v809 = vpop.f32.mrf.mxu0
  %810 = vdwg.mxu0
  %811 = vmatprep.subr.bf16.mxu0 0
  %812 = vmatpush1.bf16.msra.mxu0 %v618
  %813 = vmatprep.subr.bf16.mxu0 0
  %814 = vmatpush1.bf16.msra.mxu0 %v617
  %815 = vmatprep.subr.bf16.mxu0 0
  %816 = vmatpush1.bf16.msra.mxu0 %v616
  %817 = vmatprep.subr.bf16.mxu0 0
  %818 = vmatpush1.bf16.msra.mxu0 %v615
  %819 = vmatprep.subr.bf16.mxu0 0
  %820 = vmatpush1.bf16.msra.mxu0 %v614
  %821 = vmatprep.subr.bf16.mxu0 0
  %822 = vmatpush1.bf16.msra.mxu0 %v613
  %823 = vmatprep.subr.bf16.mxu0 0
  %824 = vmatpush1.bf16.msra.mxu0 %v612
  %825 = vmatprep.subr.bf16.mxu0 0
  %826 = vmatpush1.bf16.msra.mxu0 %v611
  %827 = vmatprep.subr.bf16.mxu0 0
  %828 = vmatpush2.bf16.msra.mxu0 %v626
  %829 = vmatprep.subr.bf16.mxu0 0
  %830 = vmatpush2.bf16.msra.mxu0 %v625
  %831 = vmatprep.subr.bf16.mxu0 0
  %832 = vmatpush2.bf16.msra.mxu0 %v624
  %833 = vmatprep.subr.bf16.mxu0 0
  %834 = vmatpush2.bf16.msra.mxu0 %v623
  %835 = vmatprep.subr.bf16.mxu0 0
  %836 = vmatpush2.bf16.msra.mxu0 %v622
  %837 = vmatprep.subr.bf16.mxu0 0
  %838 = vmatpush2.bf16.msra.mxu0 %v621
  %839 = vmatprep.subr.bf16.mxu0 0
  %840 = vmatpush2.bf16.msra.mxu0 %v620
  %841 = vmatprep.subr.bf16.mxu0 0
  %842 = vmatpush2.bf16.msra.mxu0 %v619
  %843 = vmatprep.mubr.bf16.mxu0 %v224
  %844 = vmatmul.mubr.bf16.gmra.mxu0 %v223
  %v845 = vpop.f32.mrf.mxu0
  %v846 = vadd.f32 %v806, %v845
  %v847 = vpop.f32.mrf.mxu0
  %v848 = vpop.f32.mrf.mxu0
  %v849 = vpop.f32.mrf.mxu0
  %850 = vdwg.mxu0
  %851 = vmatprep.subr.bf16.mxu0 0
  %852 = vmatpush1.bf16.msra.mxu0 %v634
  %853 = vmatprep.subr.bf16.mxu0 0
  %854 = vmatpush1.bf16.msra.mxu0 %v633
  %855 = vmatprep.subr.bf16.mxu0 0
  %856 = vmatpush1.bf16.msra.mxu0 %v632
  %857 = vmatprep.subr.bf16.mxu0 0
  %858 = vmatpush1.bf16.msra.mxu0 %v631
  %859 = vmatprep.subr.bf16.mxu0 0
  %860 = vmatpush1.bf16.msra.mxu0 %v630
  %861 = vmatprep.subr.bf16.mxu0 0
  %862 = vmatpush1.bf16.msra.mxu0 %v629
  %863 = vmatprep.subr.bf16.mxu0 0
  %864 = vmatpush1.bf16.msra.mxu0 %v628
  %865 = vmatprep.subr.bf16.mxu0 0
  %866 = vmatpush1.bf16.msra.mxu0 %v627
  %867 = vmatprep.subr.bf16.mxu0 0
  %868 = vmatpush2.bf16.msra.mxu0 %v642
  %869 = vmatprep.subr.bf16.mxu0 0
  %870 = vmatpush2.bf16.msra.mxu0 %v641
  %871 = vmatprep.subr.bf16.mxu0 0
  %872 = vmatpush2.bf16.msra.mxu0 %v640
  %873 = vmatprep.subr.bf16.mxu0 0
  %874 = vmatpush2.bf16.msra.mxu0 %v639
  %875 = vmatprep.subr.bf16.mxu0 0
  %876 = vmatpush2.bf16.msra.mxu0 %v638
  %877 = vmatprep.subr.bf16.mxu0 0
  %878 = vmatpush2.bf16.msra.mxu0 %v637
  %879 = vmatprep.subr.bf16.mxu0 0
  %880 = vmatpush2.bf16.msra.mxu0 %v636
  %881 = vmatprep.subr.bf16.mxu0 0
  %882 = vmatpush2.bf16.msra.mxu0 %v635
  %883 = vmatprep.mubr.bf16.mxu0 %v226
  %884 = vmatmul.mubr.bf16.gmra.mxu0 %v225
  %v885 = vpop.f32.mrf.mxu0
  %v886 = vadd.f32 %v846, %v885
  %v887 = vpop.f32.mrf.mxu0
  %v888 = vpop.f32.mrf.mxu0
  %v889 = vpop.f32.mrf.mxu0
  %890 = vdwg.mxu0
  %891 = vmatprep.subr.bf16.mxu0 0
  %892 = vmatpush1.bf16.msra.mxu0 %v650
  %893 = vmatprep.subr.bf16.mxu0 0
  %894 = vmatpush1.bf16.msra.mxu0 %v649
  %895 = vmatprep.subr.bf16.mxu0 0
  %896 = vmatpush1.bf16.msra.mxu0 %v648
  %897 = vmatprep.subr.bf16.mxu0 0
  %898 = vmatpush1.bf16.msra.mxu0 %v647
  %899 = vmatprep.subr.bf16.mxu0 0
  %900 = vmatpush1.bf16.msra.mxu0 %v646
  %901 = vmatprep.subr.bf16.mxu0 0
  %902 = vmatpush1.bf16.msra.mxu0 %v645
  %903 = vmatprep.subr.bf16.mxu0 0
  %904 = vmatpush1.bf16.msra.mxu0 %v644
  %905 = vmatprep.subr.bf16.mxu0 0
  %906 = vmatpush1.bf16.msra.mxu0 %v643
  %907 = vmatprep.subr.bf16.mxu0 0
  %908 = vmatpush2.bf16.msra.mxu0 %v658
  %909 = vmatprep.subr.bf16.mxu0 0
  %910 = vmatpush2.bf16.msra.mxu0 %v657
  %911 = vmatprep.subr.bf16.mxu0 0
  %912 = vmatpush2.bf16.msra.mxu0 %v656
  %913 = vmatprep.subr.bf16.mxu0 0
  %914 = vmatpush2.bf16.msra.mxu0 %v655
  %915 = vmatprep.subr.bf16.mxu0 0
  %916 = vmatpush2.bf16.msra.mxu0 %v654
  %917 = vmatprep.subr.bf16.mxu0 0
  %918 = vmatpush2.bf16.msra.mxu0 %v653
  %919 = vmatprep.subr.bf16.mxu0 0
  %920 = vmatpush2.bf16.msra.mxu0 %v652
  %921 = vmatprep.subr.bf16.mxu0 0
  %922 = vmatpush2.bf16.msra.mxu0 %v651
  %923 = vmatprep.mubr.bf16.mxu0 %v228
  %924 = vmatmul.mubr.bf16.gmra.mxu0 %v227
  %v925 = vpop.f32.mrf.mxu0
  %v926 = vadd.f32 %v886, %v925
  %v927 = vpop.f32.mrf.mxu0
  %v928 = vpop.f32.mrf.mxu0
  %v929 = vpop.f32.mrf.mxu0
  %930 = vdwg.mxu0
  %931 = vmatprep.subr.bf16.mxu0 0
  %932 = vmatpush1.bf16.msra.mxu0 %v666
  %933 = vmatprep.subr.bf16.mxu0 0
  %934 = vmatpush1.bf16.msra.mxu0 %v665
  %935 = vmatprep.subr.bf16.mxu0 0
  %936 = vmatpush1.bf16.msra.mxu0 %v664
  %937 = vmatprep.subr.bf16.mxu0 0
  %938 = vmatpush1.bf16.msra.mxu0 %v663
  %939 = vmatprep.subr.bf16.mxu0 0
  %940 = vmatpush1.bf16.msra.mxu0 %v662
  %941 = vmatprep.subr.bf16.mxu0 0
  %942 = vmatpush1.bf16.msra.mxu0 %v661
  %943 = vmatprep.subr.bf16.mxu0 0
  %944 = vmatpush1.bf16.msra.mxu0 %v660
  %945 = vmatprep.subr.bf16.mxu0 0
  %946 = vmatpush1.bf16.msra.mxu0 %v659
  %947 = vmatprep.subr.bf16.mxu0 0
  %948 = vmatpush2.bf16.msra.mxu0 %v674
  %949 = vmatprep.subr.bf16.mxu0 0
  %950 = vmatpush2.bf16.msra.mxu0 %v673
  %951 = vmatprep.subr.bf16.mxu0 0
  %952 = vmatpush2.bf16.msra.mxu0 %v672
  %953 = vmatprep.subr.bf16.mxu0 0
  %954 = vmatpush2.bf16.msra.mxu0 %v671
  %955 = vmatprep.subr.bf16.mxu0 0
  %956 = vmatpush2.bf16.msra.mxu0 %v670
  %957 = vmatprep.subr.bf16.mxu0 0
  %958 = vmatpush2.bf16.msra.mxu0 %v669
  %959 = vmatprep.subr.bf16.mxu0 0
  %960 = vmatpush2.bf16.msra.mxu0 %v668
  %961 = vmatprep.subr.bf16.mxu0 0
  %962 = vmatpush2.bf16.msra.mxu0 %v667
  %963 = vmatprep.mubr.bf16.mxu0 %v230
  %964 = vmatmul.mubr.bf16.gmra.mxu0 %v229
  %v965 = vpop.f32.mrf.mxu0
  %v966 = vadd.f32 %v926, %v965
  %v967 = vpop.f32.mrf.mxu0
  %v968 = vpop.f32.mrf.mxu0
  %v969 = vpop.f32.mrf.mxu0
  %970 = vdwg.mxu0
  %971 = vmatprep.subr.bf16.mxu0 0
  %972 = vmatpush1.bf16.msra.mxu0 %v682
  %973 = vmatprep.subr.bf16.mxu0 0
  %974 = vmatpush1.bf16.msra.mxu0 %v681
  %975 = vmatprep.subr.bf16.mxu0 0
  %976 = vmatpush1.bf16.msra.mxu0 %v680
  %977 = vmatprep.subr.bf16.mxu0 0
  %978 = vmatpush1.bf16.msra.mxu0 %v679
  %979 = vmatprep.subr.bf16.mxu0 0
  %980 = vmatpush1.bf16.msra.mxu0 %v678
  %981 = vmatprep.subr.bf16.mxu0 0
  %982 = vmatpush1.bf16.msra.mxu0 %v677
  %983 = vmatprep.subr.bf16.mxu0 0
  %984 = vmatpush1.bf16.msra.mxu0 %v676
  %985 = vmatprep.subr.bf16.mxu0 0
  %986 = vmatpush1.bf16.msra.mxu0 %v675
  %987 = vmatprep.subr.bf16.mxu0 0
  %988 = vmatpush2.bf16.msra.mxu0 0
  %989 = vmatprep.subr.bf16.mxu0 0
  %990 = vmatpush2.bf16.msra.mxu0 0
  %991 = vmatprep.subr.bf16.mxu0 0
  %992 = vmatpush2.bf16.msra.mxu0 0
  %993 = vmatprep.subr.bf16.mxu0 0
  %994 = vmatpush2.bf16.msra.mxu0 0
  %995 = vmatprep.subr.bf16.mxu0 0
  %996 = vmatpush2.bf16.msra.mxu0 0
  %997 = vmatprep.subr.bf16.mxu0 0
  %998 = vmatpush2.bf16.msra.mxu0 0
  %999 = vmatprep.subr.bf16.mxu0 0
  %1000 = vmatpush2.bf16.msra.mxu0 0
  %1001 = vmatprep.subr.bf16.mxu0 0
  %1002 = vmatpush2.bf16.msra.mxu0 0
  %1003 = vmatprep.mubr.bf16.mxu0 0
  %1004 = vmatmul.mubr.bf16.gmra.mxu0 %v231
  %v1005 = vpop.f32.mrf.mxu0
  %v1006 = vadd.f32 %v966, %v1005
  %v1007 = vpop.f32.mrf.mxu0
  %v1008 = vpop.f32.mrf.mxu0
  %v1009 = vpop.f32.mrf.mxu0
  %1010 = vdwg.mxu0
  %vm1011 = vcmask 80896
  %1012 = vst.msk [vmem:[%s3] sm:$0xff] %vm1011, %v1006
  // Predicated region
  $region14: #{net_forward.13} parent=0 // pred_check
    _
  $region15: #{net_forward.13} parent=0 // pred_check_branch
    %1014 = sbr.rel (0) target = $region17
  $region16: #{net_forward.13} parent=0 // pred_region
    _
  $region17: #{net_forward.13} parent=0 // pred_fallthru
    _
  // Predicated region
  $region18: #{net_forward.13} parent=0 // pred_check
    _
  $region19: #{net_forward.13} parent=0 // pred_check_branch
    %1016 = sbr.rel (0) target = $region21
  $region20: #{net_forward.13} parent=0 // pred_region
    _
  $region21: #{net_forward.13} parent=0 // pred_fallthru
    _

</llo_original>
